<compile_context>
chip_gen: v6e
topology: v6e:2x2x1
jax: 0.10.0
libtpu: 0.0.40
codegen_flags: <defaults>
</compile_context>

<pallas_src>
import jax
import jax.numpy as jnp
from jax.experimental import pallas as pl
from jax.experimental.pallas import tpu as pltpu


# ----------------------------------------------------------------------------
# helpers
# ----------------------------------------------------------------------------
def _silu(x):
    return x * jax.nn.sigmoid(x)


_STACKED_ORDER = (
    'w1xi', 'w1xj', 'w1ea', 'w1d', 'b1', 'w2', 'b2',   # edge MLP (W1 pre-split)
    'wu', 'bu',                                        # edge-attr update
    'wn1f', 'wn1m', 'bn1', 'wn2', 'bn2',               # node MLP (W1 pre-split)
    'wf1', 'bf1', 'lnw', 'lnb', 'wf2', 'bf2',          # FF + graph LayerNorm
)


def _full_spec(arr):
    nd = arr.ndim
    return pl.BlockSpec(tuple(arr.shape), lambda l, e: (0,) * nd)


def _layer_spec(arr):
    nd = arr.ndim
    return pl.BlockSpec((None,) + tuple(arr.shape[1:]),
                        lambda l, e: (l,) + (0,) * (nd - 1))


# ----------------------------------------------------------------------------
# single fused kernel for the whole network: grid = (layer, edge_tile)
# ----------------------------------------------------------------------------
def _egnn_net_kernel(
    # data
    feats_ref, ea_ref, rd_ref, gsrc_ref, gdst_ref, agg_ref, boh_ref,
    scale_ref, shift_ref, ss_ref,
    # per-layer stacked weights: edge MLP
    w1xi_ref, w1xj_ref, w1ea_ref, w1d_ref, b1_ref, w2_ref, b2_ref,
    # edge-attr update
    wu_ref, bu_ref,
    # node MLP
    wn1f_ref, wn1m_ref, bn1_ref, wn2_ref, bn2_ref,
    # FF + graph LayerNorm
    wf1_ref, bf1_ref, lnw_ref, lnb_ref, wf2_ref, bf2_ref,
    # fixed: ss_mlp + final projection
    ws1_ref, bs1_ref, ws2_ref, bs2_ref, wl_ref, bl_ref,
    # output
    out_ref,
    # scratch (persist across the whole grid)
    feats_scr, ea_scr, m_acc,
):
    l = pl.program_id(0)
    e = pl.program_id(1)
    n_l = pl.num_programs(0)
    n_e = pl.num_programs(1)

    TE = rd_ref.shape[0]
    off = pl.multiple_of(e * TE, TE)

    # load the network inputs into resident VMEM state once
    @pl.when(jnp.logical_and(l == 0, e == 0))
    def _():
        feats_scr[...] = feats_ref[...]
        ea_scr[...] = ea_ref[...]

    # per-layer message accumulator init
    @pl.when(e == 0)
    def _():
        m_acc[...] = jnp.zeros_like(m_acc)

    feats = feats_scr[...]                                             # (N, D)
    ea_tile = ea_scr[pl.ds(off, TE), :]                                # (TE, Ea)

    # gathers as one-hot matmuls (MXU): x_i = feats[dst], x_j = feats[src]
    x_i = jnp.dot(gdst_ref[...], feats, preferred_element_type=jnp.float32)
    x_j = jnp.dot(gsrc_ref[...], feats, preferred_element_type=jnp.float32)

    # edge MLP: concat([x_i, x_j, edge_attr, rel_dist]) @ W1 as split matmuls
    h = (jnp.dot(x_i, w1xi_ref[...], preferred_element_type=jnp.float32)
         + jnp.dot(x_j, w1xj_ref[...], preferred_element_type=jnp.float32)
         + jnp.dot(ea_tile, w1ea_ref[...], preferred_element_type=jnp.float32)
         + rd_ref[...] * w1d_ref[...]
         + b1_ref[...])
    h = _silu(h)
    m_ij = _silu(jnp.dot(h, w2_ref[...], preferred_element_type=jnp.float32)
                 + b2_ref[...])                                        # (TE, m_dim)

    # edge-attribute update (update_edge=True); safe in-place (tile touched once per layer)
    ea_scr[pl.ds(off, TE), :] = _silu(
        jnp.dot(m_ij, wu_ref[...], preferred_element_type=jnp.float32) + bu_ref[...])

    # scatter-sum onto target nodes: one-hot (N, TE) @ (TE, m_dim) on the MXU
    m_acc[...] += jnp.dot(agg_ref[...], m_ij, preferred_element_type=jnp.float32)

    # per-layer node update runs once all edge tiles have been aggregated
    @pl.when(e == n_e - 1)
    def _():
        m_i = m_acc[...]                                               # (N, m_dim)

        # residual node MLP: concat([feats, m_i]) @ Wn1 as split matmuls
        hn = _silu(jnp.dot(feats, wn1f_ref[...], preferred_element_type=jnp.float32)
                   + jnp.dot(m_i, wn1m_ref[...], preferred_element_type=jnp.float32)
                   + bn1_ref[...])
        feats_new = feats + jnp.dot(hn, wn2_ref[...],
                                    preferred_element_type=jnp.float32) + bn2_ref[...]

        # time FiLM: per-node scale/shift gathered from per-graph rows (one-hot matmul)
        scale = jnp.dot(boh_ref[...], scale_ref[...], preferred_element_type=jnp.float32)
        shift = jnp.dot(boh_ref[...], shift_ref[...], preferred_element_type=jnp.float32)
        f = feats_new * (scale + 1.0) + shift

        # feed-forward: Linear -> SiLU -> graph LayerNorm (batch=None) -> Linear
        g = _silu(jnp.dot(f, wf1_ref[...], preferred_element_type=jnp.float32)
                  + bf1_ref[...])
        mu = jnp.mean(g)
        gc = g - mu
        std = jnp.sqrt(jnp.mean(gc * gc))
        gn = gc * (1.0 / (std + 1e-5)) * lnw_ref[...] + lnb_ref[...]
        feats_ff = jnp.dot(gn, wf2_ref[...],
                           preferred_element_type=jnp.float32) + bf2_ref[...]
        feats_scr[...] = feats_ff

        # final stage (embed_ss == -1): x = x + ss_mlp(ss); dropout(eval)=id; lin
        @pl.when(l == n_l - 1)
        def _():
            hs = _silu(jnp.dot(ss_ref[...], ws1_ref[...],
                               preferred_element_type=jnp.float32) + bs1_ref[...])
            ss_embed = jnp.dot(hs, ws2_ref[...],
                               preferred_element_type=jnp.float32) + bs2_ref[...]
            s = feats_ff + ss_embed
            out_ref[...] = jnp.dot(s, wl_ref[...],
                                   preferred_element_type=jnp.float32) + bl_ref[...]


def egnn_net_fused(feats, edge_attr, rel_dist, gsrc, gdst, agg, boh,
                   scale_stack, shift_stack, ss,
                   layer_stack, ss_mlp, lin, *, edge_tile=128):
    N, D = feats.shape
    E, Ea = edge_attr.shape
    L = scale_stack.shape[0]
    TE = edge_tile if (E >= edge_tile and E % edge_tile == 0) else E
    m_dim = layer_stack['w2'].shape[-1]
    out_dim = lin[0].shape[1]

    stacked = [layer_stack[k] for k in _STACKED_ORDER]
    fixed = list(ss_mlp) + list(lin)

    in_specs = ([
        _full_spec(feats),                               # feats (resident, read once)
        _full_spec(edge_attr),                           # edge_attr (resident, read once)
        pl.BlockSpec((TE, 1), lambda l, e: (e, 0)),      # rel_dist tile
        pl.BlockSpec((TE, N), lambda l, e: (e, 0)),      # one-hot gather (src)
        pl.BlockSpec((TE, N), lambda l, e: (e, 0)),      # one-hot gather (dst)
        pl.BlockSpec((N, TE), lambda l, e: (0, e)),      # one-hot scatter-sum
        _full_spec(boh),                                 # batch one-hot (N, B)
        _layer_spec(scale_stack),                        # (L, B, D) -> (B, D)
        _layer_spec(shift_stack),                        # (L, B, D) -> (B, D)
        _full_spec(ss),                                  # (N, 8)
    ] + [_layer_spec(w) for w in stacked]                # per-layer weights
      + [_full_spec(w) for w in fixed])                  # ss_mlp + lin weights

    return pl.pallas_call(
        _egnn_net_kernel,
        out_shape=jax.ShapeDtypeStruct((N, out_dim), jnp.float32),
        grid_spec=pltpu.PrefetchScalarGridSpec(
            num_scalar_prefetch=0,
            grid=(L, E // TE),
            in_specs=in_specs,
            out_specs=pl.BlockSpec((N, out_dim), lambda l, e: (0, 0)),
            scratch_shapes=[pltpu.VMEM((N, D), jnp.float32),      # feats state
                            pltpu.VMEM((E, Ea), jnp.float32),     # edge-attr state
                            pltpu.VMEM((N, m_dim), jnp.float32)], # message accumulator
        ),
        compiler_params=pltpu.CompilerParams(
            dimension_semantics=("arbitrary", "arbitrary")),
    )(feats, edge_attr, rel_dist, gsrc, gdst, agg, boh,
      scale_stack, shift_stack, ss, *stacked, *fixed)


# ----------------------------------------------------------------------------
# parameter init (deterministic, PyTorch-Linear-style uniform); weights are
# pre-split / pre-reshaped / pre-stacked at init so no per-forward reshaping.
# ----------------------------------------------------------------------------
def init_linear(key, d_in, d_out):
    k1, k2 = jax.random.split(key)
    bound = 1.0 / float(d_in) ** 0.5
    w = jax.random.uniform(k1, (d_in, d_out), jnp.float32, -bound, bound)
    b = jax.random.uniform(k2, (d_out,), jnp.float32, -bound, bound)
    return w, b


def init_params(key, input_feat_dim, hidden, edge_attr_dim, n_layers, output_dim, m_dim):
    D, Ea = input_feat_dim, edge_attr_dim
    keys = iter(jax.random.split(key, 8 * n_layers + 8))
    p = {}
    wt1, bt1 = init_linear(next(keys), 1, hidden)
    wt2, bt2 = init_linear(next(keys), hidden, D)
    p['time_mlp'] = (wt1, bt1, wt2, bt2)                       # tiny -> plain JAX
    ws1, bs1 = init_linear(next(keys), 8, hidden)
    ws2, bs2 = init_linear(next(keys), hidden, D)
    p['ss_mlp'] = (ws1, bs1.reshape(1, -1), ws2, bs2.reshape(1, -1))

    per_layer = {k: [] for k in _STACKED_ORDER}
    p['time_proj'] = []
    edge_in = 2 * D + Ea + 1
    for _ in range(n_layers):
        w1, b1 = init_linear(next(keys), edge_in, edge_in * 2)
        w2, b2 = init_linear(next(keys), edge_in * 2, m_dim)
        per_layer['w1xi'].append(w1[:D])
        per_layer['w1xj'].append(w1[D:2 * D])
        per_layer['w1ea'].append(w1[2 * D:2 * D + Ea])
        per_layer['w1d'].append(w1[2 * D + Ea:])
        per_layer['b1'].append(b1.reshape(1, -1))
        per_layer['w2'].append(w2)
        per_layer['b2'].append(b2.reshape(1, -1))
        wu, bu = init_linear(next(keys), m_dim, Ea)
        per_layer['wu'].append(wu)
        per_layer['bu'].append(bu.reshape(1, -1))
        wn1, bn1 = init_linear(next(keys), D + m_dim, D * 2)
        wn2, bn2 = init_linear(next(keys), D * 2, D)
        per_layer['wn1f'].append(wn1[:D])
        per_layer['wn1m'].append(wn1[D:])
        per_layer['bn1'].append(bn1.reshape(1, -1))
        per_layer['wn2'].append(wn2)
        per_layer['bn2'].append(bn2.reshape(1, -1))
        p['time_proj'].append(init_linear(next(keys), D, D * 2))   # tiny -> plain JAX
        wf1, bf1 = init_linear(next(keys), D, D)
        wf2, bf2 = init_linear(next(keys), D, D)
        per_layer['wf1'].append(wf1)
        per_layer['bf1'].append(bf1.reshape(1, -1))
        per_layer['lnw'].append(jnp.ones((1, D), jnp.float32))
        per_layer['lnb'].append(jnp.zeros((1, D), jnp.float32))
        per_layer['wf2'].append(wf2)
        per_layer['bf2'].append(bf2.reshape(1, -1))
    p['layer_stack'] = {k: jnp.stack(v) for k, v in per_layer.items()}

    wl, bl = init_linear(next(keys), D, output_dim)
    p['lin'] = (wl, bl.reshape(1, -1))
    return p


# ----------------------------------------------------------------------------
# forward pass
# ----------------------------------------------------------------------------
def egnn_net_forward(params, x, pos, extra_x, edge_index, edge_attr, ss, batch, time):
    N = x.shape[0]
    B = time.shape[0]

    # t = time_mlp(time): (B,1)->(B,H)->(B,D); B=2 -> pure launch overhead as a
    # kernel, keep in plain JAX (fused by XLA under jit).
    wt1, bt1, wt2, bt2 = params['time_mlp']
    t = jnp.dot(_silu(jnp.dot(time, wt1) + bt1), wt2) + bt2            # (B, D)

    # per-layer FiLM scale/shift (tiny), stacked along the layer axis
    scale_l, shift_l = [], []
    for wp, bp in params['time_proj']:
        te = jnp.dot(_silu(t), wp) + bp                                # (B, 2D)
        sc, sh = jnp.split(te, 2, axis=1)
        scale_l.append(sc)
        shift_l.append(sh)
    scale_stack = jnp.stack(scale_l)                                   # (L, B, D)
    shift_stack = jnp.stack(shift_l)                                   # (L, B, D)

    feats = jnp.concatenate([x, extra_x], axis=1)                      # (N, D)
    coors = pos                                                        # coords pass through

    src, dst = edge_index[0], edge_index[1]   # PyG flow: j = source, i = target

    # layer-invariant edge geometry and one-hot gather/scatter operators
    rel = jnp.take(coors, src, axis=0) - jnp.take(coors, dst, axis=0)
    rel_dist = jnp.sum(rel * rel, axis=-1, keepdims=True)              # (E, 1)
    gsrc = jax.nn.one_hot(src, N, dtype=jnp.float32)                   # (E, N)
    gdst = jax.nn.one_hot(dst, N, dtype=jnp.float32)                   # (E, N)
    agg = gdst.T                                                       # (N, E) scatter-sum
    boh = jax.nn.one_hot(batch, B, dtype=jnp.float32)                  # (N, B)

    return egnn_net_fused(feats, edge_attr, rel_dist, gsrc, gdst, agg, boh,
                          scale_stack, shift_stack, ss,
                          params['layer_stack'], params['ss_mlp'], params['lin'])


# ----------------------------------------------------------------------------
# demo
# ----------------------------------------------------------------------------
if __name__ == "__main__":
    N, B = 64, 2                       # nodes, graphs
    D_X, D_EXTRA = 20, 12              # cat -> input_feat_dim
    INPUT_FEAT_DIM = D_X + D_EXTRA     # 32
    HIDDEN = 32                        # hidden_channels (= m_dim of EGNN layer)
    EDGE_ATTR_DIM = 16
    OUTPUT_DIM = 20
    N_LAYERS = 2
    E = 256

    key = jax.random.PRNGKey(0)
    ks = iter(jax.random.split(key, 16))
    x = jax.random.normal(next(ks), (N, D_X), jnp.float32)
    extra_x = jax.random.normal(next(ks), (N, D_EXTRA), jnp.float32)
    pos = jax.random.normal(next(ks), (N, 3), jnp.float32)
    ss = jax.random.normal(next(ks), (N, 8), jnp.float32)
    edge_attr = jax.random.normal(next(ks), (E, EDGE_ATTR_DIM), jnp.float32)
    time = jax.random.uniform(next(ks), (B, 1), jnp.float32)
    batch = jnp.concatenate([jnp.zeros(N // 2, jnp.int32), jnp.ones(N // 2, jnp.int32)])
    # random edges, kept within each graph
    src0 = jax.random.randint(next(ks), (E // 2,), 0, N // 2, jnp.int32)
    dst0 = jax.random.randint(next(ks), (E // 2,), 0, N // 2, jnp.int32)
    src1 = jax.random.randint(next(ks), (E // 2,), N // 2, N, jnp.int32)
    dst1 = jax.random.randint(next(ks), (E // 2,), N // 2, N, jnp.int32)
    edge_index = jnp.stack([jnp.concatenate([src0, src1]),
                            jnp.concatenate([dst0, dst1])])

    params = init_params(jax.random.PRNGKey(12345), INPUT_FEAT_DIM, HIDDEN,
                         EDGE_ATTR_DIM, N_LAYERS, OUTPUT_DIM, m_dim=HIDDEN)

    fwd = jax.jit(egnn_net_forward)
    out = fwd(params, x, pos, extra_x, edge_index, edge_attr, ss, batch, time)
    out = jax.block_until_ready(out)
    assert out.shape == (N, OUTPUT_DIM) and out.dtype == jnp.float32
    print("KERNEL_OK")
</pallas_src>

<mosaic_0001>
module attributes {stable_mosaic.version = 11 : i64} {
  func.func @_egnn_net_kernel(%arg0: i32, %arg1: i32, %arg2: memref<64x32xf32, #tpu.memory_space<vmem>>, %arg3: memref<256x16xf32, #tpu.memory_space<vmem>>, %arg4: memref<128x1xf32, #tpu.memory_space<vmem>>, %arg5: memref<128x64xf32, #tpu.memory_space<vmem>>, %arg6: memref<128x64xf32, #tpu.memory_space<vmem>>, %arg7: memref<64x128xf32, #tpu.memory_space<vmem>>, %arg8: memref<64x2xf32, #tpu.memory_space<vmem>>, %arg9: memref<1x2x32xf32, #tpu.memory_space<vmem>>, %arg10: memref<1x2x32xf32, #tpu.memory_space<vmem>>, %arg11: memref<64x8xf32, #tpu.memory_space<vmem>>, %arg12: memref<1x32x162xf32, #tpu.memory_space<vmem>>, %arg13: memref<1x32x162xf32, #tpu.memory_space<vmem>>, %arg14: memref<1x16x162xf32, #tpu.memory_space<vmem>>, %arg15: memref<1x1x162xf32, #tpu.memory_space<vmem>>, %arg16: memref<1x1x162xf32, #tpu.memory_space<vmem>>, %arg17: memref<1x162x32xf32, #tpu.memory_space<vmem>>, %arg18: memref<1x1x32xf32, #tpu.memory_space<vmem>>, %arg19: memref<1x32x16xf32, #tpu.memory_space<vmem>>, %arg20: memref<1x1x16xf32, #tpu.memory_space<vmem>>, %arg21: memref<1x32x64xf32, #tpu.memory_space<vmem>>, %arg22: memref<1x32x64xf32, #tpu.memory_space<vmem>>, %arg23: memref<1x1x64xf32, #tpu.memory_space<vmem>>, %arg24: memref<1x64x32xf32, #tpu.memory_space<vmem>>, %arg25: memref<1x1x32xf32, #tpu.memory_space<vmem>>, %arg26: memref<1x32x32xf32, #tpu.memory_space<vmem>>, %arg27: memref<1x1x32xf32, #tpu.memory_space<vmem>>, %arg28: memref<1x1x32xf32, #tpu.memory_space<vmem>>, %arg29: memref<1x1x32xf32, #tpu.memory_space<vmem>>, %arg30: memref<1x32x32xf32, #tpu.memory_space<vmem>>, %arg31: memref<1x1x32xf32, #tpu.memory_space<vmem>>, %arg32: memref<8x32xf32, #tpu.memory_space<vmem>>, %arg33: memref<1x32xf32, #tpu.memory_space<vmem>>, %arg34: memref<32x32xf32, #tpu.memory_space<vmem>>, %arg35: memref<1x32xf32, #tpu.memory_space<vmem>>, %arg36: memref<32x20xf32, #tpu.memory_space<vmem>>, %arg37: memref<1x20xf32, #tpu.memory_space<vmem>>, %arg38: memref<64x20xf32, #tpu.memory_space<vmem>>, %arg39: memref<64x32xf32, #tpu.memory_space<vmem>>, %arg40: memref<256x16xf32, #tpu.memory_space<vmem>>, %arg41: memref<64x32xf32, #tpu.memory_space<vmem>>) attributes {dimension_semantics = [#tpu.dimension_semantics<arbitrary>, #tpu.dimension_semantics<arbitrary>], iteration_bounds = array<i64: 2, 2>, scalar_prefetch = 0 : i64, scratch_operands = 3 : i64, tpu.core_type = #tpu.core_type<tc>, window_params = [{pipeline_mode = #tpu.pipeline_mode<synchronous>, transform_indices = @transform_0, window_bounds = array<i64: 64, 32>}, {pipeline_mode = #tpu.pipeline_mode<synchronous>, transform_indices = @transform_1, window_bounds = array<i64: 256, 16>}, {transform_indices = @transform_2, window_bounds = array<i64: 128, 1>}, {transform_indices = @transform_3, window_bounds = array<i64: 128, 64>}, {transform_indices = @transform_4, window_bounds = array<i64: 128, 64>}, {transform_indices = @transform_5, window_bounds = array<i64: 64, 128>}, {pipeline_mode = #tpu.pipeline_mode<synchronous>, transform_indices = @transform_6, window_bounds = array<i64: 64, 2>}, {transform_indices = @transform_7, window_bounds = array<i64: 1, 2, 32>}, {transform_indices = @transform_8, window_bounds = array<i64: 1, 2, 32>}, {pipeline_mode = #tpu.pipeline_mode<synchronous>, transform_indices = @transform_9, window_bounds = array<i64: 64, 8>}, {transform_indices = @transform_10, window_bounds = array<i64: 1, 32, 162>}, {transform_indices = @transform_11, window_bounds = array<i64: 1, 32, 162>}, {transform_indices = @transform_12, window_bounds = array<i64: 1, 16, 162>}, {transform_indices = @transform_13, window_bounds = array<i64: 1, 1, 162>}, {transform_indices = @transform_14, window_bounds = array<i64: 1, 1, 162>}, {transform_indices = @transform_15, window_bounds = array<i64: 1, 162, 32>}, {transform_indices = @transform_16, window_bounds = array<i64: 1, 1, 32>}, {transform_indices = @transform_17, window_bounds = array<i64: 1, 32, 16>}, {transform_indices = @transform_18, window_bounds = array<i64: 1, 1, 16>}, {transform_indices = @transform_19, window_bounds = array<i64: 1, 32, 64>}, {transform_indices = @transform_20, window_bounds = array<i64: 1, 32, 64>}, {transform_indices = @transform_21, window_bounds = array<i64: 1, 1, 64>}, {transform_indices = @transform_22, window_bounds = array<i64: 1, 64, 32>}, {transform_indices = @transform_23, window_bounds = array<i64: 1, 1, 32>}, {transform_indices = @transform_24, window_bounds = array<i64: 1, 32, 32>}, {transform_indices = @transform_25, window_bounds = array<i64: 1, 1, 32>}, {transform_indices = @transform_26, window_bounds = array<i64: 1, 1, 32>}, {transform_indices = @transform_27, window_bounds = array<i64: 1, 1, 32>}, {transform_indices = @transform_28, window_bounds = array<i64: 1, 32, 32>}, {transform_indices = @transform_29, window_bounds = array<i64: 1, 1, 32>}, {pipeline_mode = #tpu.pipeline_mode<synchronous>, transform_indices = @transform_30, window_bounds = array<i64: 8, 32>}, {pipeline_mode = #tpu.pipeline_mode<synchronous>, transform_indices = @transform_31, window_bounds = array<i64: 1, 32>}, {pipeline_mode = #tpu.pipeline_mode<synchronous>, transform_indices = @transform_32, window_bounds = array<i64: 32, 32>}, {pipeline_mode = #tpu.pipeline_mode<synchronous>, transform_indices = @transform_33, window_bounds = array<i64: 1, 32>}, {pipeline_mode = #tpu.pipeline_mode<synchronous>, transform_indices = @transform_34, window_bounds = array<i64: 32, 20>}, {pipeline_mode = #tpu.pipeline_mode<synchronous>, transform_indices = @transform_35, window_bounds = array<i64: 1, 20>}, {pipeline_mode = #tpu.pipeline_mode<synchronous>, transform_indices = @transform_36, window_bounds = array<i64: 64, 20>}]} {
    %c128_i32 = arith.constant 128 : i32
    %0 = arith.muli %arg1, %c128_i32 : i32
    %1 = tpu.assume_multiple %0, 128 : i32
    %c0_i32 = arith.constant 0 : i32
    %2 = arith.cmpi eq, %arg0, %c0_i32 : i32
    %c0_i32_0 = arith.constant 0 : i32
    %3 = arith.cmpi eq, %arg1, %c0_i32_0 : i32
    %4 = arith.andi %2, %3 : i1
    %5 = arith.extui %4 : i1 to i32
    %c0_i32_1 = arith.constant 0 : i32
    %6 = arith.cmpi ne, %5, %c0_i32_1 : i32
    scf.if %6 {
      %c0_57 = arith.constant 0 : index
      %c0_58 = arith.constant 0 : index
      %81 = vector.load %arg2[%c0_57, %c0_58] : memref<64x32xf32, #tpu.memory_space<vmem>>, vector<64x32xf32>
      %c0_59 = arith.constant 0 : index
      %c0_60 = arith.constant 0 : index
      %82 = vector.load %arg39[%c0_59, %c0_60] : memref<64x32xf32, #tpu.memory_space<vmem>>, vector<64x32xf32>
      tpu.vector_store %arg39[%c0_59, %c0_60], %81 {strides = array<i32>} : memref<64x32xf32, #tpu.memory_space<vmem>>, vector<64x32xf32>,
      %c0_61 = arith.constant 0 : index
      %c0_62 = arith.constant 0 : index
      %83 = vector.load %arg3[%c0_61, %c0_62] : memref<256x16xf32, #tpu.memory_space<vmem>>, vector<256x16xf32>
      %c0_63 = arith.constant 0 : index
      %c0_64 = arith.constant 0 : index
      %84 = vector.load %arg40[%c0_63, %c0_64] : memref<256x16xf32, #tpu.memory_space<vmem>>, vector<256x16xf32>
      tpu.vector_store %arg40[%c0_63, %c0_64], %83 {strides = array<i32>} : memref<256x16xf32, #tpu.memory_space<vmem>>, vector<256x16xf32>,
    } else {
    }
    %c0_i32_2 = arith.constant 0 : i32
    %7 = arith.cmpi eq, %arg1, %c0_i32_2 : i32
    %8 = arith.extui %7 : i1 to i32
    %c0_i32_3 = arith.constant 0 : i32
    %9 = arith.cmpi ne, %8, %c0_i32_3 : i32
    scf.if %9 {
      %cst_57 = arith.constant 0.000000e+00 : f32
      %81 = vector.broadcast %cst_57 : f32 to vector<64x32xf32>
      %c0_58 = arith.constant 0 : index
      %c0_59 = arith.constant 0 : index
      %82 = vector.load %arg41[%c0_58, %c0_59] : memref<64x32xf32, #tpu.memory_space<vmem>>, vector<64x32xf32>
      tpu.vector_store %arg41[%c0_58, %c0_59], %81 {strides = array<i32>} : memref<64x32xf32, #tpu.memory_space<vmem>>, vector<64x32xf32>,
    } else {
    }
    %c0 = arith.constant 0 : index
    %c0_4 = arith.constant 0 : index
    %10 = vector.load %arg39[%c0, %c0_4] : memref<64x32xf32, #tpu.memory_space<vmem>>, vector<64x32xf32>
    %11 = arith.index_cast %1 : i32 to index
    %c0_5 = arith.constant 0 : index
    %12 = vector.load %arg40[%11, %c0_5] : memref<256x16xf32, #tpu.memory_space<vmem>>, vector<128x16xf32>
    %c0_6 = arith.constant 0 : index
    %c0_7 = arith.constant 0 : index
    %13 = vector.load %arg6[%c0_6, %c0_7] : memref<128x64xf32, #tpu.memory_space<vmem>>, vector<128x64xf32>
    %cst = arith.constant dense<0.000000e+00> : vector<128x32xf32>
    %14 = tpu.matmul %13, %10, %cst {dimension_numbers = #tpu.dot_dimension_numbers<[1], [0], [0], [1], [0, 0, 1, 1], [], []>} : vector<128x64xf32>, vector<64x32xf32>, vector<128x32xf32> -> vector<128x32xf32>
    %c0_8 = arith.constant 0 : index
    %c0_9 = arith.constant 0 : index
    %15 = vector.load %arg5[%c0_8, %c0_9] : memref<128x64xf32, #tpu.memory_space<vmem>>, vector<128x64xf32>
    %cst_10 = arith.constant dense<0.000000e+00> : vector<128x32xf32>
    %16 = tpu.matmul %15, %10, %cst_10 {dimension_numbers = #tpu.dot_dimension_numbers<[1], [0], [0], [1], [0, 0, 1, 1], [], []>} : vector<128x64xf32>, vector<64x32xf32>, vector<128x32xf32> -> vector<128x32xf32>
    %c0_11 = arith.constant 0 : index
    %c0_12 = arith.constant 0 : index
    %c0_13 = arith.constant 0 : index
    %17 = vector.load %arg12[%c0_11, %c0_12, %c0_13] : memref<1x32x162xf32, #tpu.memory_space<vmem>>, vector<1x32x162xf32>
    %18 = vector.shape_cast %17 : vector<1x32x162xf32> to vector<32x162xf32>
    %cst_14 = arith.constant dense<0.000000e+00> : vector<128x162xf32>
    %19 = tpu.matmul %14, %18, %cst_14 {dimension_numbers = #tpu.dot_dimension_numbers<[1], [0], [0], [1], [0, 0, 1, 1], [], []>} : vector<128x32xf32>, vector<32x162xf32>, vector<128x162xf32> -> vector<128x162xf32>
    %c0_15 = arith.constant 0 : index
    %c0_16 = arith.constant 0 : index
    %c0_17 = arith.constant 0 : index
    %20 = vector.load %arg13[%c0_15, %c0_16, %c0_17] : memref<1x32x162xf32, #tpu.memory_space<vmem>>, vector<1x32x162xf32>
    %21 = vector.shape_cast %20 : vector<1x32x162xf32> to vector<32x162xf32>
    %cst_18 = arith.constant dense<0.000000e+00> : vector<128x162xf32>
    %22 = tpu.matmul %16, %21, %cst_18 {dimension_numbers = #tpu.dot_dimension_numbers<[1], [0], [0], [1], [0, 0, 1, 1], [], []>} : vector<128x32xf32>, vector<32x162xf32>, vector<128x162xf32> -> vector<128x162xf32>
    %23 = arith.addf %19, %22 : vector<128x162xf32>
    %c0_19 = arith.constant 0 : index
    %c0_20 = arith.constant 0 : index
    %c0_21 = arith.constant 0 : index
    %24 = vector.load %arg14[%c0_19, %c0_20, %c0_21] : memref<1x16x162xf32, #tpu.memory_space<vmem>>, vector<1x16x162xf32>
    %25 = vector.shape_cast %24 : vector<1x16x162xf32> to vector<16x162xf32>
    %cst_22 = arith.constant dense<0.000000e+00> : vector<128x162xf32>
    %26 = tpu.matmul %12, %25, %cst_22 {dimension_numbers = #tpu.dot_dimension_numbers<[1], [0], [0], [1], [0, 0, 1, 1], [], []>} : vector<128x16xf32>, vector<16x162xf32>, vector<128x162xf32> -> vector<128x162xf32>
    %27 = arith.addf %23, %26 : vector<128x162xf32>
    %c0_23 = arith.constant 0 : index
    %c0_24 = arith.constant 0 : index
    %28 = vector.load %arg4[%c0_23, %c0_24] : memref<128x1xf32, #tpu.memory_space<vmem>>, vector<128x1xf32>
    %c0_25 = arith.constant 0 : index
    %c0_26 = arith.constant 0 : index
    %c0_27 = arith.constant 0 : index
    %29 = vector.load %arg15[%c0_25, %c0_26, %c0_27] : memref<1x1x162xf32, #tpu.memory_space<vmem>>, vector<1x1x162xf32>
    %30 = vector.shape_cast %29 : vector<1x1x162xf32> to vector<1x162xf32>
    %31 = vector.broadcast %28 : vector<128x1xf32> to vector<128x162xf32>
    %32 = vector.broadcast %30 : vector<1x162xf32> to vector<128x162xf32>
    %33 = arith.mulf %31, %32 : vector<128x162xf32>
    %34 = arith.addf %27, %33 : vector<128x162xf32>
    %c0_28 = arith.constant 0 : index
    %c0_29 = arith.constant 0 : index
    %c0_30 = arith.constant 0 : index
    %35 = vector.load %arg16[%c0_28, %c0_29, %c0_30] : memref<1x1x162xf32, #tpu.memory_space<vmem>>, vector<1x1x162xf32>
    %36 = vector.shape_cast %35 : vector<1x1x162xf32> to vector<1x162xf32>
    %37 = vector.broadcast %36 : vector<1x162xf32> to vector<128x162xf32>
    %38 = arith.addf %34, %37 : vector<128x162xf32>
    %39 = arith.negf %38 : vector<128x162xf32>
    %40 = math.exp %39 : vector<128x162xf32>
    %cst_31 = arith.constant 1.000000e+00 : f32
    %41 = vector.broadcast %cst_31 : f32 to vector<128x162xf32>
    %42 = arith.addf %41, %40 : vector<128x162xf32>
    %43 = arith.divf %41, %42 : vector<128x162xf32>
    %44 = arith.mulf %38, %43 : vector<128x162xf32>
    %c0_32 = arith.constant 0 : index
    %c0_33 = arith.constant 0 : index
    %c0_34 = arith.constant 0 : index
    %45 = vector.load %arg17[%c0_32, %c0_33, %c0_34] : memref<1x162x32xf32, #tpu.memory_space<vmem>>, vector<1x162x32xf32>
    %46 = vector.shape_cast %45 : vector<1x162x32xf32> to vector<162x32xf32>
    %cst_35 = arith.constant dense<0.000000e+00> : vector<128x32xf32>
    %47 = tpu.matmul %44, %46, %cst_35 {dimension_numbers = #tpu.dot_dimension_numbers<[1], [0], [0], [1], [0, 0, 1, 1], [], []>} : vector<128x162xf32>, vector<162x32xf32>, vector<128x32xf32> -> vector<128x32xf32>
    %c0_36 = arith.constant 0 : index
    %c0_37 = arith.constant 0 : index
    %c0_38 = arith.constant 0 : index
    %48 = vector.load %arg18[%c0_36, %c0_37, %c0_38] : memref<1x1x32xf32, #tpu.memory_space<vmem>>, vector<1x1x32xf32>
    %49 = vector.shape_cast %48 : vector<1x1x32xf32> to vector<1x32xf32>
    %50 = vector.broadcast %49 : vector<1x32xf32> to vector<128x32xf32>
    %51 = arith.addf %47, %50 : vector<128x32xf32>
    %52 = arith.negf %51 : vector<128x32xf32>
    %53 = math.exp %52 : vector<128x32xf32>
    %cst_39 = arith.constant 1.000000e+00 : f32
    %54 = vector.broadcast %cst_39 : f32 to vector<128x32xf32>
    %55 = arith.addf %54, %53 : vector<128x32xf32>
    %56 = arith.divf %54, %55 : vector<128x32xf32>
    %57 = arith.mulf %51, %56 : vector<128x32xf32>
    %c0_40 = arith.constant 0 : index
    %c0_41 = arith.constant 0 : index
    %c0_42 = arith.constant 0 : index
    %58 = vector.load %arg19[%c0_40, %c0_41, %c0_42] : memref<1x32x16xf32, #tpu.memory_space<vmem>>, vector<1x32x16xf32>
    %59 = vector.shape_cast %58 : vector<1x32x16xf32> to vector<32x16xf32>
    %cst_43 = arith.constant dense<0.000000e+00> : vector<128x16xf32>
    %60 = tpu.matmul %57, %59, %cst_43 {dimension_numbers = #tpu.dot_dimension_numbers<[1], [0], [0], [1], [0, 0, 1, 1], [], []>} : vector<128x32xf32>, vector<32x16xf32>, vector<128x16xf32> -> vector<128x16xf32>
    %c0_44 = arith.constant 0 : index
    %c0_45 = arith.constant 0 : index
    %c0_46 = arith.constant 0 : index
    %61 = vector.load %arg20[%c0_44, %c0_45, %c0_46] : memref<1x1x16xf32, #tpu.memory_space<vmem>>, vector<1x1x16xf32>
    %62 = vector.shape_cast %61 : vector<1x1x16xf32> to vector<1x16xf32>
    %63 = vector.broadcast %62 : vector<1x16xf32> to vector<128x16xf32>
    %64 = arith.addf %60, %63 : vector<128x16xf32>
    %65 = arith.negf %64 : vector<128x16xf32>
    %66 = math.exp %65 : vector<128x16xf32>
    %cst_47 = arith.constant 1.000000e+00 : f32
    %67 = vector.broadcast %cst_47 : f32 to vector<128x16xf32>
    %68 = arith.addf %67, %66 : vector<128x16xf32>
    %69 = arith.divf %67, %68 : vector<128x16xf32>
    %70 = arith.mulf %64, %69 : vector<128x16xf32>
    %71 = arith.index_cast %1 : i32 to index
    %c0_48 = arith.constant 0 : index
    %72 = vector.load %arg40[%71, %c0_48] : memref<256x16xf32, #tpu.memory_space<vmem>>, vector<128x16xf32>
    tpu.vector_store %arg40[%71, %c0_48], %70 {strides = array<i32>} : memref<256x16xf32, #tpu.memory_space<vmem>>, vector<128x16xf32>,
    %c0_49 = arith.constant 0 : index
    %c0_50 = arith.constant 0 : index
    %73 = vector.load %arg41[%c0_49, %c0_50] : memref<64x32xf32, #tpu.memory_space<vmem>>, vector<64x32xf32>
    %c0_51 = arith.constant 0 : index
    %c0_52 = arith.constant 0 : index
    %74 = vector.load %arg7[%c0_51, %c0_52] : memref<64x128xf32, #tpu.memory_space<vmem>>, vector<64x128xf32>
    %cst_53 = arith.constant dense<0.000000e+00> : vector<64x32xf32>
    %75 = tpu.matmul %74, %57, %cst_53 {dimension_numbers = #tpu.dot_dimension_numbers<[1], [0], [0], [1], [0, 0, 1, 1], [], []>} : vector<64x128xf32>, vector<128x32xf32>, vector<64x32xf32> -> vector<64x32xf32>
    %76 = arith.addf %73, %75 : vector<64x32xf32>
    %c0_54 = arith.constant 0 : index
    %c0_55 = arith.constant 0 : index
    %77 = vector.load %arg41[%c0_54, %c0_55] : memref<64x32xf32, #tpu.memory_space<vmem>>, vector<64x32xf32>
    tpu.vector_store %arg41[%c0_54, %c0_55], %76 {strides = array<i32>} : memref<64x32xf32, #tpu.memory_space<vmem>>, vector<64x32xf32>,
    %c1_i32 = arith.constant 1 : i32
    %78 = arith.cmpi eq, %arg1, %c1_i32 : i32
    %79 = arith.extui %78 : i1 to i32
    %c0_i32_56 = arith.constant 0 : i32
    %80 = arith.cmpi ne, %79, %c0_i32_56 : i32
    scf.if %80 {
      %c0_57 = arith.constant 0 : index
      %c0_58 = arith.constant 0 : index
      %81 = vector.load %arg41[%c0_57, %c0_58] : memref<64x32xf32, #tpu.memory_space<vmem>>, vector<64x32xf32>
      %c0_59 = arith.constant 0 : index
      %c0_60 = arith.constant 0 : index
      %c0_61 = arith.constant 0 : index
      %82 = vector.load %arg21[%c0_59, %c0_60, %c0_61] : memref<1x32x64xf32, #tpu.memory_space<vmem>>, vector<1x32x64xf32>
      %83 = vector.shape_cast %82 : vector<1x32x64xf32> to vector<32x64xf32>
      %cst_62 = arith.constant dense<0.000000e+00> : vector<64x64xf32>
      %84 = tpu.matmul %10, %83, %cst_62 {dimension_numbers = #tpu.dot_dimension_numbers<[1], [0], [0], [1], [0, 0, 1, 1], [], []>} : vector<64x32xf32>, vector<32x64xf32>, vector<64x64xf32> -> vector<64x64xf32>
      %c0_63 = arith.constant 0 : index
      %c0_64 = arith.constant 0 : index
      %c0_65 = arith.constant 0 : index
      %85 = vector.load %arg22[%c0_63, %c0_64, %c0_65] : memref<1x32x64xf32, #tpu.memory_space<vmem>>, vector<1x32x64xf32>
      %86 = vector.shape_cast %85 : vector<1x32x64xf32> to vector<32x64xf32>
      %cst_66 = arith.constant dense<0.000000e+00> : vector<64x64xf32>
      %87 = tpu.matmul %81, %86, %cst_66 {dimension_numbers = #tpu.dot_dimension_numbers<[1], [0], [0], [1], [0, 0, 1, 1], [], []>} : vector<64x32xf32>, vector<32x64xf32>, vector<64x64xf32> -> vector<64x64xf32>
      %88 = arith.addf %84, %87 : vector<64x64xf32>
      %c0_67 = arith.constant 0 : index
      %c0_68 = arith.constant 0 : index
      %c0_69 = arith.constant 0 : index
      %89 = vector.load %arg23[%c0_67, %c0_68, %c0_69] : memref<1x1x64xf32, #tpu.memory_space<vmem>>, vector<1x1x64xf32>
      %90 = vector.shape_cast %89 : vector<1x1x64xf32> to vector<1x64xf32>
      %91 = vector.broadcast %90 : vector<1x64xf32> to vector<64x64xf32>
      %92 = arith.addf %88, %91 : vector<64x64xf32>
      %93 = arith.negf %92 : vector<64x64xf32>
      %94 = math.exp %93 : vector<64x64xf32>
      %cst_70 = arith.constant 1.000000e+00 : f32
      %95 = vector.broadcast %cst_70 : f32 to vector<64x64xf32>
      %96 = arith.addf %95, %94 : vector<64x64xf32>
      %97 = arith.divf %95, %96 : vector<64x64xf32>
      %98 = arith.mulf %92, %97 : vector<64x64xf32>
      %c0_71 = arith.constant 0 : index
      %c0_72 = arith.constant 0 : index
      %c0_73 = arith.constant 0 : index
      %99 = vector.load %arg24[%c0_71, %c0_72, %c0_73] : memref<1x64x32xf32, #tpu.memory_space<vmem>>, vector<1x64x32xf32>
      %100 = vector.shape_cast %99 : vector<1x64x32xf32> to vector<64x32xf32>
      %cst_74 = arith.constant dense<0.000000e+00> : vector<64x32xf32>
      %101 = tpu.matmul %98, %100, %cst_74 {dimension_numbers = #tpu.dot_dimension_numbers<[1], [0], [0], [1], [0, 0, 1, 1], [], []>} : vector<64x64xf32>, vector<64x32xf32>, vector<64x32xf32> -> vector<64x32xf32>
      %102 = arith.addf %10, %101 : vector<64x32xf32>
      %c0_75 = arith.constant 0 : index
      %c0_76 = arith.constant 0 : index
      %c0_77 = arith.constant 0 : index
      %103 = vector.load %arg25[%c0_75, %c0_76, %c0_77] : memref<1x1x32xf32, #tpu.memory_space<vmem>>, vector<1x1x32xf32>
      %104 = vector.shape_cast %103 : vector<1x1x32xf32> to vector<1x32xf32>
      %105 = vector.broadcast %104 : vector<1x32xf32> to vector<64x32xf32>
      %106 = arith.addf %102, %105 : vector<64x32xf32>
      %c0_78 = arith.constant 0 : index
      %c0_79 = arith.constant 0 : index
      %107 = vector.load %arg8[%c0_78, %c0_79] : memref<64x2xf32, #tpu.memory_space<vmem>>, vector<64x2xf32>
      %c0_80 = arith.constant 0 : index
      %c0_81 = arith.constant 0 : index
      %c0_82 = arith.constant 0 : index
      %108 = vector.load %arg9[%c0_80, %c0_81, %c0_82] : memref<1x2x32xf32, #tpu.memory_space<vmem>>, vector<1x2x32xf32>
      %109 = vector.shape_cast %108 : vector<1x2x32xf32> to vector<2x32xf32>
      %cst_83 = arith.constant dense<0.000000e+00> : vector<64x32xf32>
      %110 = tpu.matmul %107, %109, %cst_83 {dimension_numbers = #tpu.dot_dimension_numbers<[1], [0], [0], [1], [0, 0, 1, 1], [], []>} : vector<64x2xf32>, vector<2x32xf32>, vector<64x32xf32> -> vector<64x32xf32>
      %c0_84 = arith.constant 0 : index
      %c0_85 = arith.constant 0 : index
      %111 = vector.load %arg8[%c0_84, %c0_85] : memref<64x2xf32, #tpu.memory_space<vmem>>, vector<64x2xf32>
      %c0_86 = arith.constant 0 : index
      %c0_87 = arith.constant 0 : index
      %c0_88 = arith.constant 0 : index
      %112 = vector.load %arg10[%c0_86, %c0_87, %c0_88] : memref<1x2x32xf32, #tpu.memory_space<vmem>>, vector<1x2x32xf32>
      %113 = vector.shape_cast %112 : vector<1x2x32xf32> to vector<2x32xf32>
      %cst_89 = arith.constant dense<0.000000e+00> : vector<64x32xf32>
      %114 = tpu.matmul %111, %113, %cst_89 {dimension_numbers = #tpu.dot_dimension_numbers<[1], [0], [0], [1], [0, 0, 1, 1], [], []>} : vector<64x2xf32>, vector<2x32xf32>, vector<64x32xf32> -> vector<64x32xf32>
      %cst_90 = arith.constant 1.000000e+00 : f32
      %115 = vector.broadcast %cst_90 : f32 to vector<64x32xf32>
      %116 = arith.addf %110, %115 : vector<64x32xf32>
      %117 = arith.mulf %106, %116 : vector<64x32xf32>
      %118 = arith.addf %117, %114 : vector<64x32xf32>
      %c0_91 = arith.constant 0 : index
      %c0_92 = arith.constant 0 : index
      %c0_93 = arith.constant 0 : index
      %119 = vector.load %arg26[%c0_91, %c0_92, %c0_93] : memref<1x32x32xf32, #tpu.memory_space<vmem>>, vector<1x32x32xf32>
      %120 = vector.shape_cast %119 : vector<1x32x32xf32> to vector<32x32xf32>
      %cst_94 = arith.constant dense<0.000000e+00> : vector<64x32xf32>
      %121 = tpu.matmul %118, %120, %cst_94 {dimension_numbers = #tpu.dot_dimension_numbers<[1], [0], [0], [1], [0, 0, 1, 1], [], []>} : vector<64x32xf32>, vector<32x32xf32>, vector<64x32xf32> -> vector<64x32xf32>
      %c0_95 = arith.constant 0 : index
      %c0_96 = arith.constant 0 : index
      %c0_97 = arith.constant 0 : index
      %122 = vector.load %arg27[%c0_95, %c0_96, %c0_97] : memref<1x1x32xf32, #tpu.memory_space<vmem>>, vector<1x1x32xf32>
      %123 = vector.shape_cast %122 : vector<1x1x32xf32> to vector<1x32xf32>
      %124 = vector.broadcast %123 : vector<1x32xf32> to vector<64x32xf32>
      %125 = arith.addf %121, %124 : vector<64x32xf32>
      %126 = arith.negf %125 : vector<64x32xf32>
      %127 = math.exp %126 : vector<64x32xf32>
      %cst_98 = arith.constant 1.000000e+00 : f32
      %128 = vector.broadcast %cst_98 : f32 to vector<64x32xf32>
      %129 = arith.addf %128, %127 : vector<64x32xf32>
      %130 = arith.divf %128, %129 : vector<64x32xf32>
      %131 = arith.mulf %125, %130 : vector<64x32xf32>
      %132 = vector.shape_cast %131 : vector<64x32xf32> to vector<1x64x32xf32>
      %cst_99 = arith.constant dense<0.000000e+00> : vector<1xf32>
      %133 = vector.multi_reduction <add>, %132, %cst_99 [1, 2] : vector<1x64x32xf32> to vector<1xf32>
      %134 = vector.shape_cast %133 : vector<1xf32> to vector<1x1x1xf32>
      %135 = vector.extract %134[0, 0, 0] : f32 from vector<1x1x1xf32>
      %cst_100 = arith.constant 2.048000e+03 : f32
      %136 = arith.divf %135, %cst_100 : f32
      %137 = vector.broadcast %136 : f32 to vector<64x32xf32>
      %138 = arith.subf %131, %137 : vector<64x32xf32>
      %139 = arith.mulf %138, %138 : vector<64x32xf32>
      %140 = vector.shape_cast %139 : vector<64x32xf32> to vector<1x64x32xf32>
      %cst_101 = arith.constant dense<0.000000e+00> : vector<1xf32>
      %141 = vector.multi_reduction <add>, %140, %cst_101 [1, 2] : vector<1x64x32xf32> to vector<1xf32>
      %142 = vector.shape_cast %141 : vector<1xf32> to vector<1x1x1xf32>
      %143 = vector.extract %142[0, 0, 0] : f32 from vector<1x1x1xf32>
      %cst_102 = arith.constant 2.048000e+03 : f32
      %144 = arith.divf %143, %cst_102 : f32
      %145 = math.sqrt %144 : f32
      %cst_103 = arith.constant 9.99999974E-6 : f32
      %146 = arith.addf %145, %cst_103 : f32
      %cst_104 = arith.constant 1.000000e+00 : f32
      %147 = arith.divf %cst_104, %146 : f32
      %148 = vector.broadcast %147 : f32 to vector<64x32xf32>
      %149 = arith.mulf %138, %148 : vector<64x32xf32>
      %c0_105 = arith.constant 0 : index
      %c0_106 = arith.constant 0 : index
      %c0_107 = arith.constant 0 : index
      %150 = vector.load %arg28[%c0_105, %c0_106, %c0_107] : memref<1x1x32xf32, #tpu.memory_space<vmem>>, vector<1x1x32xf32>
      %151 = vector.shape_cast %150 : vector<1x1x32xf32> to vector<1x32xf32>
      %152 = vector.broadcast %151 : vector<1x32xf32> to vector<64x32xf32>
      %153 = arith.mulf %149, %152 : vector<64x32xf32>
      %c0_108 = arith.constant 0 : index
      %c0_109 = arith.constant 0 : index
      %c0_110 = arith.constant 0 : index
      %154 = vector.load %arg29[%c0_108, %c0_109, %c0_110] : memref<1x1x32xf32, #tpu.memory_space<vmem>>, vector<1x1x32xf32>
      %155 = vector.shape_cast %154 : vector<1x1x32xf32> to vector<1x32xf32>
      %156 = vector.broadcast %155 : vector<1x32xf32> to vector<64x32xf32>
      %157 = arith.addf %153, %156 : vector<64x32xf32>
      %c0_111 = arith.constant 0 : index
      %c0_112 = arith.constant 0 : index
      %c0_113 = arith.constant 0 : index
      %158 = vector.load %arg30[%c0_111, %c0_112, %c0_113] : memref<1x32x32xf32, #tpu.memory_space<vmem>>, vector<1x32x32xf32>
      %159 = vector.shape_cast %158 : vector<1x32x32xf32> to vector<32x32xf32>
      %cst_114 = arith.constant dense<0.000000e+00> : vector<64x32xf32>
      %160 = tpu.matmul %157, %159, %cst_114 {dimension_numbers = #tpu.dot_dimension_numbers<[1], [0], [0], [1], [0, 0, 1, 1], [], []>} : vector<64x32xf32>, vector<32x32xf32>, vector<64x32xf32> -> vector<64x32xf32>
      %c0_115 = arith.constant 0 : index
      %c0_116 = arith.constant 0 : index
      %c0_117 = arith.constant 0 : index
      %161 = vector.load %arg31[%c0_115, %c0_116, %c0_117] : memref<1x1x32xf32, #tpu.memory_space<vmem>>, vector<1x1x32xf32>
      %162 = vector.shape_cast %161 : vector<1x1x32xf32> to vector<1x32xf32>
      %163 = vector.broadcast %162 : vector<1x32xf32> to vector<64x32xf32>
      %164 = arith.addf %160, %163 : vector<64x32xf32>
      %c0_118 = arith.constant 0 : index
      %c0_119 = arith.constant 0 : index
      %165 = vector.load %arg39[%c0_118, %c0_119] : memref<64x32xf32, #tpu.memory_space<vmem>>, vector<64x32xf32>
      tpu.vector_store %arg39[%c0_118, %c0_119], %164 {strides = array<i32>} : memref<64x32xf32, #tpu.memory_space<vmem>>, vector<64x32xf32>,
      %c1_i32_120 = arith.constant 1 : i32
      %166 = arith.cmpi eq, %arg0, %c1_i32_120 : i32
      %167 = arith.extui %166 : i1 to i32
      %c0_i32_121 = arith.constant 0 : i32
      %168 = arith.cmpi ne, %167, %c0_i32_121 : i32
      scf.if %168 {
        %c0_122 = arith.constant 0 : index
        %c0_123 = arith.constant 0 : index
        %169 = vector.load %arg11[%c0_122, %c0_123] : memref<64x8xf32, #tpu.memory_space<vmem>>, vector<64x8xf32>
        %c0_124 = arith.constant 0 : index
        %c0_125 = arith.constant 0 : index
        %170 = vector.load %arg32[%c0_124, %c0_125] : memref<8x32xf32, #tpu.memory_space<vmem>>, vector<8x32xf32>
        %cst_126 = arith.constant dense<0.000000e+00> : vector<64x32xf32>
        %171 = tpu.matmul %169, %170, %cst_126 {dimension_numbers = #tpu.dot_dimension_numbers<[1], [0], [0], [1], [0, 0, 1, 1], [], []>} : vector<64x8xf32>, vector<8x32xf32>, vector<64x32xf32> -> vector<64x32xf32>
        %c0_127 = arith.constant 0 : index
        %c0_128 = arith.constant 0 : index
        %172 = vector.load %arg33[%c0_127, %c0_128] : memref<1x32xf32, #tpu.memory_space<vmem>>, vector<1x32xf32>
        %173 = vector.broadcast %172 : vector<1x32xf32> to vector<64x32xf32>
        %174 = arith.addf %171, %173 : vector<64x32xf32>
        %175 = arith.negf %174 : vector<64x32xf32>
        %176 = math.exp %175 : vector<64x32xf32>
        %cst_129 = arith.constant 1.000000e+00 : f32
        %177 = vector.broadcast %cst_129 : f32 to vector<64x32xf32>
        %178 = arith.addf %177, %176 : vector<64x32xf32>
        %179 = arith.divf %177, %178 : vector<64x32xf32>
        %180 = arith.mulf %174, %179 : vector<64x32xf32>
        %c0_130 = arith.constant 0 : index
        %c0_131 = arith.constant 0 : index
        %181 = vector.load %arg34[%c0_130, %c0_131] : memref<32x32xf32, #tpu.memory_space<vmem>>, vector<32x32xf32>
        %cst_132 = arith.constant dense<0.000000e+00> : vector<64x32xf32>
        %182 = tpu.matmul %180, %181, %cst_132 {dimension_numbers = #tpu.dot_dimension_numbers<[1], [0], [0], [1], [0, 0, 1, 1], [], []>} : vector<64x32xf32>, vector<32x32xf32>, vector<64x32xf32> -> vector<64x32xf32>
        %c0_133 = arith.constant 0 : index
        %c0_134 = arith.constant 0 : index
        %183 = vector.load %arg35[%c0_133, %c0_134] : memref<1x32xf32, #tpu.memory_space<vmem>>, vector<1x32xf32>
        %184 = vector.broadcast %183 : vector<1x32xf32> to vector<64x32xf32>
        %185 = arith.addf %182, %184 : vector<64x32xf32>
        %186 = arith.addf %164, %185 : vector<64x32xf32>
        %c0_135 = arith.constant 0 : index
        %c0_136 = arith.constant 0 : index
        %187 = vector.load %arg36[%c0_135, %c0_136] : memref<32x20xf32, #tpu.memory_space<vmem>>, vector<32x20xf32>
        %cst_137 = arith.constant dense<0.000000e+00> : vector<64x20xf32>
        %188 = tpu.matmul %186, %187, %cst_137 {dimension_numbers = #tpu.dot_dimension_numbers<[1], [0], [0], [1], [0, 0, 1, 1], [], []>} : vector<64x32xf32>, vector<32x20xf32>, vector<64x20xf32> -> vector<64x20xf32>
        %c0_138 = arith.constant 0 : index
        %c0_139 = arith.constant 0 : index
        %189 = vector.load %arg37[%c0_138, %c0_139] : memref<1x20xf32, #tpu.memory_space<vmem>>, vector<1x20xf32>
        %190 = vector.broadcast %189 : vector<1x20xf32> to vector<64x20xf32>
        %191 = arith.addf %188, %190 : vector<64x20xf32>
        %c0_140 = arith.constant 0 : index
        %c0_141 = arith.constant 0 : index
        %192 = vector.load %arg38[%c0_140, %c0_141] : memref<64x20xf32, #tpu.memory_space<vmem>>, vector<64x20xf32>
        tpu.vector_store %arg38[%c0_140, %c0_141], %191 {strides = array<i32>} : memref<64x20xf32, #tpu.memory_space<vmem>>, vector<64x20xf32>,
      } else {
      }
    } else {
    }
    return
  }
  func.func @transform_0(%arg0: i32, %arg1: i32) -> (i32, i32) {
    %c0_i32 = arith.constant 0 : i32
    %c0_i32_0 = arith.constant 0 : i32
    %c0_i32_1 = arith.constant 0 : i32
    return %c0_i32, %c0_i32_0 : i32, i32
  }
  func.func @transform_1(%arg0: i32, %arg1: i32) -> (i32, i32) {
    %c0_i32 = arith.constant 0 : i32
    %c0_i32_0 = arith.constant 0 : i32
    %c0_i32_1 = arith.constant 0 : i32
    return %c0_i32, %c0_i32_0 : i32, i32
  }
  func.func @transform_2(%arg0: i32, %arg1: i32) -> (i32, i32) {
    %c0_i32 = arith.constant 0 : i32
    %c0_i32_0 = arith.constant 0 : i32
    return %arg1, %c0_i32 : i32, i32
  }
  func.func @transform_3(%arg0: i32, %arg1: i32) -> (i32, i32) {
    %c0_i32 = arith.constant 0 : i32
    %c0_i32_0 = arith.constant 0 : i32
    return %arg1, %c0_i32 : i32, i32
  }
  func.func @transform_4(%arg0: i32, %arg1: i32) -> (i32, i32) {
    %c0_i32 = arith.constant 0 : i32
    %c0_i32_0 = arith.constant 0 : i32
    return %arg1, %c0_i32 : i32, i32
  }
  func.func @transform_5(%arg0: i32, %arg1: i32) -> (i32, i32) {
    %c0_i32 = arith.constant 0 : i32
    %c0_i32_0 = arith.constant 0 : i32
    return %c0_i32, %arg1 : i32, i32
  }
  func.func @transform_6(%arg0: i32, %arg1: i32) -> (i32, i32) {
    %c0_i32 = arith.constant 0 : i32
    %c0_i32_0 = arith.constant 0 : i32
    %c0_i32_1 = arith.constant 0 : i32
    return %c0_i32, %c0_i32_0 : i32, i32
  }
  func.func @transform_7(%arg0: i32, %arg1: i32) -> (i32, i32, i32) {
    %c0_i32 = arith.constant 0 : i32
    %c0_i32_0 = arith.constant 0 : i32
    %c0_i32_1 = arith.constant 0 : i32
    return %arg0, %c0_i32, %c0_i32_0 : i32, i32, i32
  }
  func.func @transform_8(%arg0: i32, %arg1: i32) -> (i32, i32, i32) {
    %c0_i32 = arith.constant 0 : i32
    %c0_i32_0 = arith.constant 0 : i32
    %c0_i32_1 = arith.constant 0 : i32
    return %arg0, %c0_i32, %c0_i32_0 : i32, i32, i32
  }
  func.func @transform_9(%arg0: i32, %arg1: i32) -> (i32, i32) {
    %c0_i32 = arith.constant 0 : i32
    %c0_i32_0 = arith.constant 0 : i32
    %c0_i32_1 = arith.constant 0 : i32
    return %c0_i32, %c0_i32_0 : i32, i32
  }
  func.func @transform_10(%arg0: i32, %arg1: i32) -> (i32, i32, i32) {
    %c0_i32 = arith.constant 0 : i32
    %c0_i32_0 = arith.constant 0 : i32
    %c0_i32_1 = arith.constant 0 : i32
    return %arg0, %c0_i32, %c0_i32_0 : i32, i32, i32
  }
  func.func @transform_11(%arg0: i32, %arg1: i32) -> (i32, i32, i32) {
    %c0_i32 = arith.constant 0 : i32
    %c0_i32_0 = arith.constant 0 : i32
    %c0_i32_1 = arith.constant 0 : i32
    return %arg0, %c0_i32, %c0_i32_0 : i32, i32, i32
  }
  func.func @transform_12(%arg0: i32, %arg1: i32) -> (i32, i32, i32) {
    %c0_i32 = arith.constant 0 : i32
    %c0_i32_0 = arith.constant 0 : i32
    %c0_i32_1 = arith.constant 0 : i32
    return %arg0, %c0_i32, %c0_i32_0 : i32, i32, i32
  }
  func.func @transform_13(%arg0: i32, %arg1: i32) -> (i32, i32, i32) {
    %c0_i32 = arith.constant 0 : i32
    %c0_i32_0 = arith.constant 0 : i32
    %c0_i32_1 = arith.constant 0 : i32
    return %arg0, %c0_i32, %c0_i32_0 : i32, i32, i32
  }
  func.func @transform_14(%arg0: i32, %arg1: i32) -> (i32, i32, i32) {
    %c0_i32 = arith.constant 0 : i32
    %c0_i32_0 = arith.constant 0 : i32
    %c0_i32_1 = arith.constant 0 : i32
    return %arg0, %c0_i32, %c0_i32_0 : i32, i32, i32
  }
  func.func @transform_15(%arg0: i32, %arg1: i32) -> (i32, i32, i32) {
    %c0_i32 = arith.constant 0 : i32
    %c0_i32_0 = arith.constant 0 : i32
    %c0_i32_1 = arith.constant 0 : i32
    return %arg0, %c0_i32, %c0_i32_0 : i32, i32, i32
  }
  func.func @transform_16(%arg0: i32, %arg1: i32) -> (i32, i32, i32) {
    %c0_i32 = arith.constant 0 : i32
    %c0_i32_0 = arith.constant 0 : i32
    %c0_i32_1 = arith.constant 0 : i32
    return %arg0, %c0_i32, %c0_i32_0 : i32, i32, i32
  }
  func.func @transform_17(%arg0: i32, %arg1: i32) -> (i32, i32, i32) {
    %c0_i32 = arith.constant 0 : i32
    %c0_i32_0 = arith.constant 0 : i32
    %c0_i32_1 = arith.constant 0 : i32
    return %arg0, %c0_i32, %c0_i32_0 : i32, i32, i32
  }
  func.func @transform_18(%arg0: i32, %arg1: i32) -> (i32, i32, i32) {
    %c0_i32 = arith.constant 0 : i32
    %c0_i32_0 = arith.constant 0 : i32
    %c0_i32_1 = arith.constant 0 : i32
    return %arg0, %c0_i32, %c0_i32_0 : i32, i32, i32
  }
  func.func @transform_19(%arg0: i32, %arg1: i32) -> (i32, i32, i32) {
    %c0_i32 = arith.constant 0 : i32
    %c0_i32_0 = arith.constant 0 : i32
    %c0_i32_1 = arith.constant 0 : i32
    return %arg0, %c0_i32, %c0_i32_0 : i32, i32, i32
  }
  func.func @transform_20(%arg0: i32, %arg1: i32) -> (i32, i32, i32) {
    %c0_i32 = arith.constant 0 : i32
    %c0_i32_0 = arith.constant 0 : i32
    %c0_i32_1 = arith.constant 0 : i32
    return %arg0, %c0_i32, %c0_i32_0 : i32, i32, i32
  }
  func.func @transform_21(%arg0: i32, %arg1: i32) -> (i32, i32, i32) {
    %c0_i32 = arith.constant 0 : i32
    %c0_i32_0 = arith.constant 0 : i32
    %c0_i32_1 = arith.constant 0 : i32
    return %arg0, %c0_i32, %c0_i32_0 : i32, i32, i32
  }
  func.func @transform_22(%arg0: i32, %arg1: i32) -> (i32, i32, i32) {
    %c0_i32 = arith.constant 0 : i32
    %c0_i32_0 = arith.constant 0 : i32
    %c0_i32_1 = arith.constant 0 : i32
    return %arg0, %c0_i32, %c0_i32_0 : i32, i32, i32
  }
  func.func @transform_23(%arg0: i32, %arg1: i32) -> (i32, i32, i32) {
    %c0_i32 = arith.constant 0 : i32
    %c0_i32_0 = arith.constant 0 : i32
    %c0_i32_1 = arith.constant 0 : i32
    return %arg0, %c0_i32, %c0_i32_0 : i32, i32, i32
  }
  func.func @transform_24(%arg0: i32, %arg1: i32) -> (i32, i32, i32) {
    %c0_i32 = arith.constant 0 : i32
    %c0_i32_0 = arith.constant 0 : i32
    %c0_i32_1 = arith.constant 0 : i32
    return %arg0, %c0_i32, %c0_i32_0 : i32, i32, i32
  }
  func.func @transform_25(%arg0: i32, %arg1: i32) -> (i32, i32, i32) {
    %c0_i32 = arith.constant 0 : i32
    %c0_i32_0 = arith.constant 0 : i32
    %c0_i32_1 = arith.constant 0 : i32
    return %arg0, %c0_i32, %c0_i32_0 : i32, i32, i32
  }
  func.func @transform_26(%arg0: i32, %arg1: i32) -> (i32, i32, i32) {
    %c0_i32 = arith.constant 0 : i32
    %c0_i32_0 = arith.constant 0 : i32
    %c0_i32_1 = arith.constant 0 : i32
    return %arg0, %c0_i32, %c0_i32_0 : i32, i32, i32
  }
  func.func @transform_27(%arg0: i32, %arg1: i32) -> (i32, i32, i32) {
    %c0_i32 = arith.constant 0 : i32
    %c0_i32_0 = arith.constant 0 : i32
    %c0_i32_1 = arith.constant 0 : i32
    return %arg0, %c0_i32, %c0_i32_0 : i32, i32, i32
  }
  func.func @transform_28(%arg0: i32, %arg1: i32) -> (i32, i32, i32) {
    %c0_i32 = arith.constant 0 : i32
    %c0_i32_0 = arith.constant 0 : i32
    %c0_i32_1 = arith.constant 0 : i32
    return %arg0, %c0_i32, %c0_i32_0 : i32, i32, i32
  }
  func.func @transform_29(%arg0: i32, %arg1: i32) -> (i32, i32, i32) {
    %c0_i32 = arith.constant 0 : i32
    %c0_i32_0 = arith.constant 0 : i32
    %c0_i32_1 = arith.constant 0 : i32
    return %arg0, %c0_i32, %c0_i32_0 : i32, i32, i32
  }
  func.func @transform_30(%arg0: i32, %arg1: i32) -> (i32, i32) {
    %c0_i32 = arith.constant 0 : i32
    %c0_i32_0 = arith.constant 0 : i32
    %c0_i32_1 = arith.constant 0 : i32
    return %c0_i32, %c0_i32_0 : i32, i32
  }
  func.func @transform_31(%arg0: i32, %arg1: i32) -> (i32, i32) {
    %c0_i32 = arith.constant 0 : i32
    %c0_i32_0 = arith.constant 0 : i32
    %c0_i32_1 = arith.constant 0 : i32
    return %c0_i32, %c0_i32_0 : i32, i32
  }
  func.func @transform_32(%arg0: i32, %arg1: i32) -> (i32, i32) {
    %c0_i32 = arith.constant 0 : i32
    %c0_i32_0 = arith.constant 0 : i32
    %c0_i32_1 = arith.constant 0 : i32
    return %c0_i32, %c0_i32_0 : i32, i32
  }
  func.func @transform_33(%arg0: i32, %arg1: i32) -> (i32, i32) {
    %c0_i32 = arith.constant 0 : i32
    %c0_i32_0 = arith.constant 0 : i32
    %c0_i32_1 = arith.constant 0 : i32
    return %c0_i32, %c0_i32_0 : i32, i32
  }
  func.func @transform_34(%arg0: i32, %arg1: i32) -> (i32, i32) {
    %c0_i32 = arith.constant 0 : i32
    %c0_i32_0 = arith.constant 0 : i32
    %c0_i32_1 = arith.constant 0 : i32
    return %c0_i32, %c0_i32_0 : i32, i32
  }
  func.func @transform_35(%arg0: i32, %arg1: i32) -> (i32, i32) {
    %c0_i32 = arith.constant 0 : i32
    %c0_i32_0 = arith.constant 0 : i32
    %c0_i32_1 = arith.constant 0 : i32
    return %c0_i32, %c0_i32_0 : i32, i32
  }
  func.func @transform_36(%arg0: i32, %arg1: i32) -> (i32, i32) {
    %c0_i32 = arith.constant 0 : i32
    %c0_i32_0 = arith.constant 0 : i32
    %c0_i32_1 = arith.constant 0 : i32
    return %c0_i32, %c0_i32_0 : i32, i32
  }
}

</mosaic_0001>

<llo_original>
// kernel: egnn_net_forward.1
$region0: #{egnn_net_forward.1}
  #allocation0 [shape = 'u32[]', space=smem, size = 0x4, offset = 0x4, fixed_abs, tag = 'smem constant byte address 0x4 - core index']
  #allocation1 [shape = 'u32[144,128]{1,0:T(1,128)}', space=vmem, size = 0x12000, scoped, tag = 'internal scratch']
  #allocation2 [shape = 'f32[64,32]{1,0:T(8,128)}', space=vmem, size = 0x8000, scoped, tag = 'scratch operand']
  #allocation3 [shape = 'f32[256,16]{1,0:T(8,128)}', space=vmem, size = 0x20000, scoped, tag = 'scratch operand']
  #allocation4 [shape = 'f32[64,32]{1,0:T(8,128)}', space=vmem, size = 0x8000, scoped, tag = 'scratch operand']
  %s0 = inlined_call_operand.smem [shape: u32[37], index: -1, kind: input, shape index: {}]
  %s1 = sld [smem:[%s0]]
  %s2 = scalar_lea.smem %s0, 1
  %s3 = sld [smem:[%s2]]
  %s4 = scalar_lea.smem %s0, 2
  %s5 = sld [smem:[%s4]]
  %s6 = scalar_lea.smem %s0, 3
  %s7 = sld [smem:[%s6]]
  %s8 = scalar_lea.smem %s0, 4
  %s9 = sld [smem:[%s8]]
  %s10 = scalar_lea.smem %s0, 5
  %s11 = sld [smem:[%s10]]
  %s12 = scalar_lea.smem %s0, 6
  %s13 = sld [smem:[%s12]]
  %s14 = scalar_lea.smem %s0, 7
  %s15 = sld [smem:[%s14]]
  %s16 = scalar_lea.smem %s0, 8
  %s17 = sld [smem:[%s16]]
  %s18 = scalar_lea.smem %s0, 9
  %s19 = sld [smem:[%s18]]
  %s20 = scalar_lea.smem %s0, 10
  %s21 = sld [smem:[%s20]]
  %s22 = scalar_lea.smem %s0, 11
  %s23 = sld [smem:[%s22]]
  %s24 = scalar_lea.smem %s0, 12
  %s25 = sld [smem:[%s24]]
  %s26 = scalar_lea.smem %s0, 13
  %s27 = sld [smem:[%s26]]
  %s28 = scalar_lea.smem %s0, 14
  %s29 = sld [smem:[%s28]]
  %s30 = scalar_lea.smem %s0, 15
  %s31 = sld [smem:[%s30]]
  %s32 = scalar_lea.smem %s0, 16
  %s33 = sld [smem:[%s32]]
  %s34 = scalar_lea.smem %s0, 17
  %s35 = sld [smem:[%s34]]
  %s36 = scalar_lea.smem %s0, 18
  %s37 = sld [smem:[%s36]]
  %s38 = scalar_lea.smem %s0, 19
  %s39 = sld [smem:[%s38]]
  %s40 = scalar_lea.smem %s0, 20
  %s41 = sld [smem:[%s40]]
  %s42 = scalar_lea.smem %s0, 21
  %s43 = sld [smem:[%s42]]
  %s44 = scalar_lea.smem %s0, 22
  %s45 = sld [smem:[%s44]]
  %s46 = scalar_lea.smem %s0, 23
  %s47 = sld [smem:[%s46]]
  %s48 = scalar_lea.smem %s0, 24
  %s49 = sld [smem:[%s48]]
  %s50 = scalar_lea.smem %s0, 25
  %s51 = sld [smem:[%s50]]
  %s52 = scalar_lea.smem %s0, 26
  %s53 = sld [smem:[%s52]]
  %s54 = scalar_lea.smem %s0, 27
  %s55 = sld [smem:[%s54]]
  %s56 = scalar_lea.smem %s0, 28
  %s57 = sld [smem:[%s56]]
  %s58 = scalar_lea.smem %s0, 29
  %s59 = sld [smem:[%s58]]
  %s60 = scalar_lea.smem %s0, 30
  %s61 = sld [smem:[%s60]]
  %s62 = scalar_lea.smem %s0, 31
  %s63 = sld [smem:[%s62]]
  %s64 = scalar_lea.smem %s0, 32
  %s65 = sld [smem:[%s64]]
  %s66 = scalar_lea.smem %s0, 33
  %s67 = sld [smem:[%s66]]
  %s68 = scalar_lea.smem %s0, 34
  %s69 = sld [smem:[%s68]]
  %s70 = scalar_lea.smem %s0, 35
  %s71 = sld [smem:[%s70]]
  %s72 = scalar_lea.smem %s0, 36
  %s73 = sld [smem:[%s72]]
  %s74 = sld [smem:[#allocation0]]
  $region231: #{egnn_net_forward.1} parent=0
    _
  %s76 = ssub.s32 1, %s74
  %s77 = scalar_select 0, %s76, %s74
  $region1: #{egnn_net_forward.1} parent=0
    #allocation5 [shape = 'u8[65536]{0}', space=vmem, size = 0x10000, scoped, tag = 'input window, operand 5']
    loop: start=0, step=1, limit=6
    $region2: #{egnn_net_forward.1} parent=1 // loop_pre_header
      _
    $region3: #{egnn_net_forward.1} parent=1 // loop_header
      %s79 = sphi 0, %s83
      %p80 = scmp.ge.s32.totalorder %s79, 6
      %s86 = sphi 0, %s98
      %s87 = sphi 0, %s94
      %s88 = sphi 0, %s86
      %s89 = sphi 0, %s87
      %s90 = sphi 0, %s88
      %s91 = sphi 0, %s89
      %s99 = sphi 0, %s99
      %s101 = sphi 0, %s99
      %s102 = sphi 0, %s101
      %s116 = sphi 0, %s102
      %s120 = sphi 0, %s120
      %s122 = sphi 0, %s120
      %s123 = sphi 0, %s122
      %s137 = sphi 0, %s123
      %s143 = sphi 0, %s145
      %s146 = sphi 0, %s143
      %s147 = sphi 0, %s146
      %s163 = sphi 0, %s147
      %s169 = sphi 0, %s171
      %s172 = sphi 0, %s169
      %s173 = sphi 0, %s172
      %s189 = sphi 0, %s173
      %s195 = sphi 0, %s197
      %s198 = sphi 0, %s195
      %s199 = sphi 0, %s198
      %s215 = sphi 0, %s199
      %s221 = sphi 0, %s223
      %s224 = sphi 0, %s221
      %s225 = sphi 0, %s224
      %s241 = sphi 0, %s225
      %s245 = sphi 0, %s245
      %s247 = sphi 0, %s245
      %s248 = sphi 0, %s247
      %s262 = sphi 0, %s248
      %s268 = sphi 0, %s270
      %s271 = sphi 0, %s268
      %s272 = sphi 0, %s271
      %s288 = sphi 0, %s272
      %s294 = sphi 0, %s296
      %s297 = sphi 0, %s294
      %s298 = sphi 0, %s297
      %s314 = sphi 0, %s298
      %s318 = sphi 0, %s318
      %s320 = sphi 0, %s318
      %s321 = sphi 0, %s320
      %s335 = sphi 0, %s321
      %s341 = sphi 0, %s343
      %s344 = sphi 0, %s341
      %s345 = sphi 0, %s344
      %s361 = sphi 0, %s345
      %s367 = sphi 0, %s369
      %s370 = sphi 0, %s367
      %s371 = sphi 0, %s370
      %s387 = sphi 0, %s371
      %s393 = sphi 0, %s395
      %s396 = sphi 0, %s393
      %s397 = sphi 0, %s396
      %s413 = sphi 0, %s397
      %s419 = sphi 0, %s421
      %s422 = sphi 0, %s419
      %s423 = sphi 0, %s422
      %s439 = sphi 0, %s423
      %s445 = sphi 0, %s447
      %s448 = sphi 0, %s445
      %s449 = sphi 0, %s448
      %s465 = sphi 0, %s449
      %s471 = sphi 0, %s473
      %s474 = sphi 0, %s471
      %s475 = sphi 0, %s474
      %s491 = sphi 0, %s475
      %s497 = sphi 0, %s499
      %s500 = sphi 0, %s497
      %s501 = sphi 0, %s500
      %s517 = sphi 0, %s501
      %s523 = sphi 0, %s525
      %s526 = sphi 0, %s523
      %s527 = sphi 0, %s526
      %s543 = sphi 0, %s527
      %s549 = sphi 0, %s551
      %s552 = sphi 0, %s549
      %s553 = sphi 0, %s552
      %s569 = sphi 0, %s553
      %s575 = sphi 0, %s577
      %s578 = sphi 0, %s575
      %s579 = sphi 0, %s578
      %s595 = sphi 0, %s579
      %s601 = sphi 0, %s603
      %s604 = sphi 0, %s601
      %s605 = sphi 0, %s604
      %s621 = sphi 0, %s605
      %s627 = sphi 0, %s629
      %s630 = sphi 0, %s627
      %s631 = sphi 0, %s630
      %s647 = sphi 0, %s631
      %s653 = sphi 0, %s655
      %s656 = sphi 0, %s653
      %s657 = sphi 0, %s656
      %s673 = sphi 0, %s657
      %s679 = sphi 0, %s681
      %s682 = sphi 0, %s679
      %s683 = sphi 0, %s682
      %s699 = sphi 0, %s683
      %s705 = sphi 0, %s707
      %s708 = sphi 0, %s705
      %s709 = sphi 0, %s708
      %s725 = sphi 0, %s709
      %s731 = sphi 0, %s733
      %s734 = sphi 0, %s731
      %s735 = sphi 0, %s734
      %s751 = sphi 0, %s735
      %s757 = sphi 0, %s759
      %s760 = sphi 0, %s757
      %s761 = sphi 0, %s760
      %s777 = sphi 0, %s761
      %s783 = sphi 0, %s785
      %s786 = sphi 0, %s783
      %s787 = sphi 0, %s786
      %s803 = sphi 0, %s787
      %s809 = sphi 0, %s811
      %s812 = sphi 0, %s809
      %s813 = sphi 0, %s812
      %s829 = sphi 0, %s813
      %s835 = sphi 0, %s837
      %s838 = sphi 0, %s835
      %s839 = sphi 0, %s838
      %s855 = sphi 0, %s839
      %s859 = sphi 0, %s859
      %s861 = sphi 0, %s859
      %s862 = sphi 0, %s861
      %s876 = sphi 0, %s862
      %s880 = sphi 0, %s880
      %s882 = sphi 0, %s880
      %s883 = sphi 0, %s882
      %s897 = sphi 0, %s883
      %s901 = sphi 0, %s901
      %s903 = sphi 0, %s901
      %s904 = sphi 0, %s903
      %s918 = sphi 0, %s904
      %s922 = sphi 0, %s922
      %s924 = sphi 0, %s922
      %s925 = sphi 0, %s924
      %s939 = sphi 0, %s925
      %s943 = sphi 0, %s943
      %s945 = sphi 0, %s943
      %s946 = sphi 0, %s945
      %s960 = sphi 0, %s946
      %s964 = sphi 0, %s964
      %s966 = sphi 0, %s964
      %s967 = sphi 0, %s966
      %s981 = sphi 0, %s967
      %s985 = sphi 0, %s985
      %s987 = sphi 0, %s985
      %s988 = sphi 0, %s987
      %s1002 = sphi 0, %s988
    $region4: #{egnn_net_forward.1} parent=1 // loop_header_branch
      %82 = sbr.rel (%p80) target = $region8
    $region5: #{egnn_net_forward.1} parent=1 // loop_body
      %s84 = ssub.s32 %s79, 1
      %s85 = ssub.s32 %s79, 2
      %s92 = sadd.s32 1, %s87
      %p93 = scmp.ge.s32.totalorder %s92, 2
      %s94 = scalar_select %p93, 0, %s92
      %s95 = sadd.s32 1, %s86
      %s96 = scalar_select %p93, %s95, %s86
      %p97 = scmp.ge.s32.totalorder %s96, 2
      %s98 = scalar_select %p97, 0, %s96
      %s100 = sadd.s32 %s99, 1
      %p103 = scmp.eq.s32.totalorder %s79, 3
      %p104 = scmp.ne.s32.totalorder %s99, %s101
      %p105 = scmp.eq.s32.totalorder %s79, 0
      %p106 = por %p104, %p105
      %p107 = scmp.ne.s32.totalorder %s99, %s101
      %p108 = scmp.eq.s32.totalorder %s84, 3
      %p109 = por %p107, %p108
      %p110 = scmp.ne.s32.totalorder %s101, %s102
      %p111 = scmp.eq.s32.totalorder %s84, 0
      %p112 = por %p110, %p111
      %p113 = scmp.ne.s32.totalorder %s101, %s102
      %p114 = scmp.eq.s32.totalorder %s85, 3
      %p115 = por %p113, %p114
      %p117 = scmp.ne.s32.totalorder %s102, %s116
      %p118 = scmp.eq.s32.totalorder %s85, 0
      %p119 = por %p117, %p118
      %s121 = sadd.s32 %s120, 1
      %p124 = scmp.eq.s32.totalorder %s79, 3
      %p125 = scmp.ne.s32.totalorder %s120, %s122
      %p126 = scmp.eq.s32.totalorder %s79, 0
      %p127 = por %p125, %p126
      %p128 = scmp.ne.s32.totalorder %s120, %s122
      %p129 = scmp.eq.s32.totalorder %s84, 3
      %p130 = por %p128, %p129
      %p131 = scmp.ne.s32.totalorder %s122, %s123
      %p132 = scmp.eq.s32.totalorder %s84, 0
      %p133 = por %p131, %p132
      %p134 = scmp.ne.s32.totalorder %s122, %s123
      %p135 = scmp.eq.s32.totalorder %s85, 3
      %p136 = por %p134, %p135
      %p138 = scmp.ne.s32.totalorder %s123, %s137
      %p139 = scmp.eq.s32.totalorder %s85, 0
      %p140 = por %p138, %p139
      %s141 = ssub.s32 %s87, %s94
      %p142 = scmp.eq.s32.totalorder %s141, 0
      %s144 = sadd.s32 %s143, 1
      %s145 = scalar_select %p142, %s143, %s144
      %p148 = pneg %p142
      %p149 = scmp.eq.s32.totalorder %s79, 3
      %p150 = por %p148, %p149
      %p151 = scmp.ne.s32.totalorder %s143, %s146
      %p152 = scmp.eq.s32.totalorder %s79, 0
      %p153 = por %p151, %p152
      %p154 = scmp.ne.s32.totalorder %s143, %s146
      %p155 = scmp.eq.s32.totalorder %s84, 3
      %p156 = por %p154, %p155
      %p157 = scmp.ne.s32.totalorder %s146, %s147
      %p158 = scmp.eq.s32.totalorder %s84, 0
      %p159 = por %p157, %p158
      %p160 = scmp.ne.s32.totalorder %s146, %s147
      %p161 = scmp.eq.s32.totalorder %s85, 3
      %p162 = por %p160, %p161
      %p164 = scmp.ne.s32.totalorder %s147, %s163
      %p165 = scmp.eq.s32.totalorder %s85, 0
      %p166 = por %p164, %p165
      %s167 = ssub.s32 %s87, %s94
      %p168 = scmp.eq.s32.totalorder %s167, 0
      %s170 = sadd.s32 %s169, 1
      %s171 = scalar_select %p168, %s169, %s170
      %p174 = pneg %p168
      %p175 = scmp.eq.s32.totalorder %s79, 3
      %p176 = por %p174, %p175
      %p177 = scmp.ne.s32.totalorder %s169, %s172
      %p178 = scmp.eq.s32.totalorder %s79, 0
      %p179 = por %p177, %p178
      %p180 = scmp.ne.s32.totalorder %s169, %s172
      %p181 = scmp.eq.s32.totalorder %s84, 3
      %p182 = por %p180, %p181
      %p183 = scmp.ne.s32.totalorder %s172, %s173
      %p184 = scmp.eq.s32.totalorder %s84, 0
      %p185 = por %p183, %p184
      %p186 = scmp.ne.s32.totalorder %s172, %s173
      %p187 = scmp.eq.s32.totalorder %s85, 3
      %p188 = por %p186, %p187
      %p190 = scmp.ne.s32.totalorder %s173, %s189
      %p191 = scmp.eq.s32.totalorder %s85, 0
      %p192 = por %p190, %p191
      %s193 = ssub.s32 %s87, %s94
      %p194 = scmp.eq.s32.totalorder %s193, 0
      %s196 = sadd.s32 %s195, 1
      %s197 = scalar_select %p194, %s195, %s196
      %p200 = pneg %p194
      %p201 = scmp.eq.s32.totalorder %s79, 3
      %p202 = por %p200, %p201
      %p203 = scmp.ne.s32.totalorder %s195, %s198
      %p204 = scmp.eq.s32.totalorder %s79, 0
      %p205 = por %p203, %p204
      %p206 = scmp.ne.s32.totalorder %s195, %s198
      %p207 = scmp.eq.s32.totalorder %s84, 3
      %p208 = por %p206, %p207
      %p209 = scmp.ne.s32.totalorder %s198, %s199
      %p210 = scmp.eq.s32.totalorder %s84, 0
      %p211 = por %p209, %p210
      %p212 = scmp.ne.s32.totalorder %s198, %s199
      %p213 = scmp.eq.s32.totalorder %s85, 3
      %p214 = por %p212, %p213
      %p216 = scmp.ne.s32.totalorder %s199, %s215
      %p217 = scmp.eq.s32.totalorder %s85, 0
      %p218 = por %p216, %p217
      %s219 = ssub.s32 %s87, %s94
      %p220 = scmp.eq.s32.totalorder %s219, 0
      %s222 = sadd.s32 %s221, 1
      %s223 = scalar_select %p220, %s221, %s222
      %p226 = pneg %p220
      %p227 = scmp.eq.s32.totalorder %s79, 3
      %p228 = por %p226, %p227
      %p229 = scmp.ne.s32.totalorder %s221, %s224
      %p230 = scmp.eq.s32.totalorder %s79, 0
      %p231 = por %p229, %p230
      %p232 = scmp.ne.s32.totalorder %s221, %s224
      %p233 = scmp.eq.s32.totalorder %s84, 3
      %p234 = por %p232, %p233
      %p235 = scmp.ne.s32.totalorder %s224, %s225
      %p236 = scmp.eq.s32.totalorder %s84, 0
      %p237 = por %p235, %p236
      %p238 = scmp.ne.s32.totalorder %s224, %s225
      %p239 = scmp.eq.s32.totalorder %s85, 3
      %p240 = por %p238, %p239
      %p242 = scmp.ne.s32.totalorder %s225, %s241
      %p243 = scmp.eq.s32.totalorder %s85, 0
      %p244 = por %p242, %p243
      %s246 = sadd.s32 %s245, 1
      %p249 = scmp.eq.s32.totalorder %s79, 3
      %p250 = scmp.ne.s32.totalorder %s245, %s247
      %p251 = scmp.eq.s32.totalorder %s79, 0
      %p252 = por %p250, %p251
      %p253 = scmp.ne.s32.totalorder %s245, %s247
      %p254 = scmp.eq.s32.totalorder %s84, 3
      %p255 = por %p253, %p254
      %p256 = scmp.ne.s32.totalorder %s247, %s248
      %p257 = scmp.eq.s32.totalorder %s84, 0
      %p258 = por %p256, %p257
      %p259 = scmp.ne.s32.totalorder %s247, %s248
      %p260 = scmp.eq.s32.totalorder %s85, 3
      %p261 = por %p259, %p260
      %p263 = scmp.ne.s32.totalorder %s248, %s262
      %p264 = scmp.eq.s32.totalorder %s85, 0
      %p265 = por %p263, %p264
      %s266 = ssub.s32 %s86, %s98
      %p267 = scmp.eq.s32.totalorder %s266, 0
      %s269 = sadd.s32 %s268, 1
      %s270 = scalar_select %p267, %s268, %s269
      %p273 = pneg %p267
      %p274 = scmp.eq.s32.totalorder %s79, 3
      %p275 = por %p273, %p274
      %p276 = scmp.ne.s32.totalorder %s268, %s271
      %p277 = scmp.eq.s32.totalorder %s79, 0
      %p278 = por %p276, %p277
      %p279 = scmp.ne.s32.totalorder %s268, %s271
      %p280 = scmp.eq.s32.totalorder %s84, 3
      %p281 = por %p279, %p280
      %p282 = scmp.ne.s32.totalorder %s271, %s272
      %p283 = scmp.eq.s32.totalorder %s84, 0
      %p284 = por %p282, %p283
      %p285 = scmp.ne.s32.totalorder %s271, %s272
      %p286 = scmp.eq.s32.totalorder %s85, 3
      %p287 = por %p285, %p286
      %p289 = scmp.ne.s32.totalorder %s272, %s288
      %p290 = scmp.eq.s32.totalorder %s85, 0
      %p291 = por %p289, %p290
      %s292 = ssub.s32 %s86, %s98
      %p293 = scmp.eq.s32.totalorder %s292, 0
      %s295 = sadd.s32 %s294, 1
      %s296 = scalar_select %p293, %s294, %s295
      %p299 = pneg %p293
      %p300 = scmp.eq.s32.totalorder %s79, 3
      %p301 = por %p299, %p300
      %p302 = scmp.ne.s32.totalorder %s294, %s297
      %p303 = scmp.eq.s32.totalorder %s79, 0
      %p304 = por %p302, %p303
      %p305 = scmp.ne.s32.totalorder %s294, %s297
      %p306 = scmp.eq.s32.totalorder %s84, 3
      %p307 = por %p305, %p306
      %p308 = scmp.ne.s32.totalorder %s297, %s298
      %p309 = scmp.eq.s32.totalorder %s84, 0
      %p310 = por %p308, %p309
      %p311 = scmp.ne.s32.totalorder %s297, %s298
      %p312 = scmp.eq.s32.totalorder %s85, 3
      %p313 = por %p311, %p312
      %p315 = scmp.ne.s32.totalorder %s298, %s314
      %p316 = scmp.eq.s32.totalorder %s85, 0
      %p317 = por %p315, %p316
      %s319 = sadd.s32 %s318, 1
      %p322 = scmp.eq.s32.totalorder %s79, 3
      %p323 = scmp.ne.s32.totalorder %s318, %s320
      %p324 = scmp.eq.s32.totalorder %s79, 0
      %p325 = por %p323, %p324
      %p326 = scmp.ne.s32.totalorder %s318, %s320
      %p327 = scmp.eq.s32.totalorder %s84, 3
      %p328 = por %p326, %p327
      %p329 = scmp.ne.s32.totalorder %s320, %s321
      %p330 = scmp.eq.s32.totalorder %s84, 0
      %p331 = por %p329, %p330
      %p332 = scmp.ne.s32.totalorder %s320, %s321
      %p333 = scmp.eq.s32.totalorder %s85, 3
      %p334 = por %p332, %p333
      %p336 = scmp.ne.s32.totalorder %s321, %s335
      %p337 = scmp.eq.s32.totalorder %s85, 0
      %p338 = por %p336, %p337
      %s339 = ssub.s32 %s86, %s98
      %p340 = scmp.eq.s32.totalorder %s339, 0
      %s342 = sadd.s32 %s341, 1
      %s343 = scalar_select %p340, %s341, %s342
      %p346 = pneg %p340
      %p347 = scmp.eq.s32.totalorder %s79, 3
      %p348 = por %p346, %p347
      %p349 = scmp.ne.s32.totalorder %s341, %s344
      %p350 = scmp.eq.s32.totalorder %s79, 0
      %p351 = por %p349, %p350
      %p352 = scmp.ne.s32.totalorder %s341, %s344
      %p353 = scmp.eq.s32.totalorder %s84, 3
      %p354 = por %p352, %p353
      %p355 = scmp.ne.s32.totalorder %s344, %s345
      %p356 = scmp.eq.s32.totalorder %s84, 0
      %p357 = por %p355, %p356
      %p358 = scmp.ne.s32.totalorder %s344, %s345
      %p359 = scmp.eq.s32.totalorder %s85, 3
      %p360 = por %p358, %p359
      %p362 = scmp.ne.s32.totalorder %s345, %s361
      %p363 = scmp.eq.s32.totalorder %s85, 0
      %p364 = por %p362, %p363
      %s365 = ssub.s32 %s86, %s98
      %p366 = scmp.eq.s32.totalorder %s365, 0
      %s368 = sadd.s32 %s367, 1
      %s369 = scalar_select %p366, %s367, %s368
      %p372 = pneg %p366
      %p373 = scmp.eq.s32.totalorder %s79, 3
      %p374 = por %p372, %p373
      %p375 = scmp.ne.s32.totalorder %s367, %s370
      %p376 = scmp.eq.s32.totalorder %s79, 0
      %p377 = por %p375, %p376
      %p378 = scmp.ne.s32.totalorder %s367, %s370
      %p379 = scmp.eq.s32.totalorder %s84, 3
      %p380 = por %p378, %p379
      %p381 = scmp.ne.s32.totalorder %s370, %s371
      %p382 = scmp.eq.s32.totalorder %s84, 0
      %p383 = por %p381, %p382
      %p384 = scmp.ne.s32.totalorder %s370, %s371
      %p385 = scmp.eq.s32.totalorder %s85, 3
      %p386 = por %p384, %p385
      %p388 = scmp.ne.s32.totalorder %s371, %s387
      %p389 = scmp.eq.s32.totalorder %s85, 0
      %p390 = por %p388, %p389
      %s391 = ssub.s32 %s86, %s98
      %p392 = scmp.eq.s32.totalorder %s391, 0
      %s394 = sadd.s32 %s393, 1
      %s395 = scalar_select %p392, %s393, %s394
      %p398 = pneg %p392
      %p399 = scmp.eq.s32.totalorder %s79, 3
      %p400 = por %p398, %p399
      %p401 = scmp.ne.s32.totalorder %s393, %s396
      %p402 = scmp.eq.s32.totalorder %s79, 0
      %p403 = por %p401, %p402
      %p404 = scmp.ne.s32.totalorder %s393, %s396
      %p405 = scmp.eq.s32.totalorder %s84, 3
      %p406 = por %p404, %p405
      %p407 = scmp.ne.s32.totalorder %s396, %s397
      %p408 = scmp.eq.s32.totalorder %s84, 0
      %p409 = por %p407, %p408
      %p410 = scmp.ne.s32.totalorder %s396, %s397
      %p411 = scmp.eq.s32.totalorder %s85, 3
      %p412 = por %p410, %p411
      %p414 = scmp.ne.s32.totalorder %s397, %s413
      %p415 = scmp.eq.s32.totalorder %s85, 0
      %p416 = por %p414, %p415
      %s417 = ssub.s32 %s86, %s98
      %p418 = scmp.eq.s32.totalorder %s417, 0
      %s420 = sadd.s32 %s419, 1
      %s421 = scalar_select %p418, %s419, %s420
      %p424 = pneg %p418
      %p425 = scmp.eq.s32.totalorder %s79, 3
      %p426 = por %p424, %p425
      %p427 = scmp.ne.s32.totalorder %s419, %s422
      %p428 = scmp.eq.s32.totalorder %s79, 0
      %p429 = por %p427, %p428
      %p430 = scmp.ne.s32.totalorder %s419, %s422
      %p431 = scmp.eq.s32.totalorder %s84, 3
      %p432 = por %p430, %p431
      %p433 = scmp.ne.s32.totalorder %s422, %s423
      %p434 = scmp.eq.s32.totalorder %s84, 0
      %p435 = por %p433, %p434
      %p436 = scmp.ne.s32.totalorder %s422, %s423
      %p437 = scmp.eq.s32.totalorder %s85, 3
      %p438 = por %p436, %p437
      %p440 = scmp.ne.s32.totalorder %s423, %s439
      %p441 = scmp.eq.s32.totalorder %s85, 0
      %p442 = por %p440, %p441
      %s443 = ssub.s32 %s86, %s98
      %p444 = scmp.eq.s32.totalorder %s443, 0
      %s446 = sadd.s32 %s445, 1
      %s447 = scalar_select %p444, %s445, %s446
      %p450 = pneg %p444
      %p451 = scmp.eq.s32.totalorder %s79, 3
      %p452 = por %p450, %p451
      %p453 = scmp.ne.s32.totalorder %s445, %s448
      %p454 = scmp.eq.s32.totalorder %s79, 0
      %p455 = por %p453, %p454
      %p456 = scmp.ne.s32.totalorder %s445, %s448
      %p457 = scmp.eq.s32.totalorder %s84, 3
      %p458 = por %p456, %p457
      %p459 = scmp.ne.s32.totalorder %s448, %s449
      %p460 = scmp.eq.s32.totalorder %s84, 0
      %p461 = por %p459, %p460
      %p462 = scmp.ne.s32.totalorder %s448, %s449
      %p463 = scmp.eq.s32.totalorder %s85, 3
      %p464 = por %p462, %p463
      %p466 = scmp.ne.s32.totalorder %s449, %s465
      %p467 = scmp.eq.s32.totalorder %s85, 0
      %p468 = por %p466, %p467
      %s469 = ssub.s32 %s86, %s98
      %p470 = scmp.eq.s32.totalorder %s469, 0
      %s472 = sadd.s32 %s471, 1
      %s473 = scalar_select %p470, %s471, %s472
      %p476 = pneg %p470
      %p477 = scmp.eq.s32.totalorder %s79, 3
      %p478 = por %p476, %p477
      %p479 = scmp.ne.s32.totalorder %s471, %s474
      %p480 = scmp.eq.s32.totalorder %s79, 0
      %p481 = por %p479, %p480
      %p482 = scmp.ne.s32.totalorder %s471, %s474
      %p483 = scmp.eq.s32.totalorder %s84, 3
      %p484 = por %p482, %p483
      %p485 = scmp.ne.s32.totalorder %s474, %s475
      %p486 = scmp.eq.s32.totalorder %s84, 0
      %p487 = por %p485, %p486
      %p488 = scmp.ne.s32.totalorder %s474, %s475
      %p489 = scmp.eq.s32.totalorder %s85, 3
      %p490 = por %p488, %p489
      %p492 = scmp.ne.s32.totalorder %s475, %s491
      %p493 = scmp.eq.s32.totalorder %s85, 0
      %p494 = por %p492, %p493
      %s495 = ssub.s32 %s86, %s98
      %p496 = scmp.eq.s32.totalorder %s495, 0
      %s498 = sadd.s32 %s497, 1
      %s499 = scalar_select %p496, %s497, %s498
      %p502 = pneg %p496
      %p503 = scmp.eq.s32.totalorder %s79, 3
      %p504 = por %p502, %p503
      %p505 = scmp.ne.s32.totalorder %s497, %s500
      %p506 = scmp.eq.s32.totalorder %s79, 0
      %p507 = por %p505, %p506
      %p508 = scmp.ne.s32.totalorder %s497, %s500
      %p509 = scmp.eq.s32.totalorder %s84, 3
      %p510 = por %p508, %p509
      %p511 = scmp.ne.s32.totalorder %s500, %s501
      %p512 = scmp.eq.s32.totalorder %s84, 0
      %p513 = por %p511, %p512
      %p514 = scmp.ne.s32.totalorder %s500, %s501
      %p515 = scmp.eq.s32.totalorder %s85, 3
      %p516 = por %p514, %p515
      %p518 = scmp.ne.s32.totalorder %s501, %s517
      %p519 = scmp.eq.s32.totalorder %s85, 0
      %p520 = por %p518, %p519
      %s521 = ssub.s32 %s86, %s98
      %p522 = scmp.eq.s32.totalorder %s521, 0
      %s524 = sadd.s32 %s523, 1
      %s525 = scalar_select %p522, %s523, %s524
      %p528 = pneg %p522
      %p529 = scmp.eq.s32.totalorder %s79, 3
      %p530 = por %p528, %p529
      %p531 = scmp.ne.s32.totalorder %s523, %s526
      %p532 = scmp.eq.s32.totalorder %s79, 0
      %p533 = por %p531, %p532
      %p534 = scmp.ne.s32.totalorder %s523, %s526
      %p535 = scmp.eq.s32.totalorder %s84, 3
      %p536 = por %p534, %p535
      %p537 = scmp.ne.s32.totalorder %s526, %s527
      %p538 = scmp.eq.s32.totalorder %s84, 0
      %p539 = por %p537, %p538
      %p540 = scmp.ne.s32.totalorder %s526, %s527
      %p541 = scmp.eq.s32.totalorder %s85, 3
      %p542 = por %p540, %p541
      %p544 = scmp.ne.s32.totalorder %s527, %s543
      %p545 = scmp.eq.s32.totalorder %s85, 0
      %p546 = por %p544, %p545
      %s547 = ssub.s32 %s86, %s98
      %p548 = scmp.eq.s32.totalorder %s547, 0
      %s550 = sadd.s32 %s549, 1
      %s551 = scalar_select %p548, %s549, %s550
      %p554 = pneg %p548
      %p555 = scmp.eq.s32.totalorder %s79, 3
      %p556 = por %p554, %p555
      %p557 = scmp.ne.s32.totalorder %s549, %s552
      %p558 = scmp.eq.s32.totalorder %s79, 0
      %p559 = por %p557, %p558
      %p560 = scmp.ne.s32.totalorder %s549, %s552
      %p561 = scmp.eq.s32.totalorder %s84, 3
      %p562 = por %p560, %p561
      %p563 = scmp.ne.s32.totalorder %s552, %s553
      %p564 = scmp.eq.s32.totalorder %s84, 0
      %p565 = por %p563, %p564
      %p566 = scmp.ne.s32.totalorder %s552, %s553
      %p567 = scmp.eq.s32.totalorder %s85, 3
      %p568 = por %p566, %p567
      %p570 = scmp.ne.s32.totalorder %s553, %s569
      %p571 = scmp.eq.s32.totalorder %s85, 0
      %p572 = por %p570, %p571
      %s573 = ssub.s32 %s86, %s98
      %p574 = scmp.eq.s32.totalorder %s573, 0
      %s576 = sadd.s32 %s575, 1
      %s577 = scalar_select %p574, %s575, %s576
      %p580 = pneg %p574
      %p581 = scmp.eq.s32.totalorder %s79, 3
      %p582 = por %p580, %p581
      %p583 = scmp.ne.s32.totalorder %s575, %s578
      %p584 = scmp.eq.s32.totalorder %s79, 0
      %p585 = por %p583, %p584
      %p586 = scmp.ne.s32.totalorder %s575, %s578
      %p587 = scmp.eq.s32.totalorder %s84, 3
      %p588 = por %p586, %p587
      %p589 = scmp.ne.s32.totalorder %s578, %s579
      %p590 = scmp.eq.s32.totalorder %s84, 0
      %p591 = por %p589, %p590
      %p592 = scmp.ne.s32.totalorder %s578, %s579
      %p593 = scmp.eq.s32.totalorder %s85, 3
      %p594 = por %p592, %p593
      %p596 = scmp.ne.s32.totalorder %s579, %s595
      %p597 = scmp.eq.s32.totalorder %s85, 0
      %p598 = por %p596, %p597
      %s599 = ssub.s32 %s86, %s98
      %p600 = scmp.eq.s32.totalorder %s599, 0
      %s602 = sadd.s32 %s601, 1
      %s603 = scalar_select %p600, %s601, %s602
      %p606 = pneg %p600
      %p607 = scmp.eq.s32.totalorder %s79, 3
      %p608 = por %p606, %p607
      %p609 = scmp.ne.s32.totalorder %s601, %s604
      %p610 = scmp.eq.s32.totalorder %s79, 0
      %p611 = por %p609, %p610
      %p612 = scmp.ne.s32.totalorder %s601, %s604
      %p613 = scmp.eq.s32.totalorder %s84, 3
      %p614 = por %p612, %p613
      %p615 = scmp.ne.s32.totalorder %s604, %s605
      %p616 = scmp.eq.s32.totalorder %s84, 0
      %p617 = por %p615, %p616
      %p618 = scmp.ne.s32.totalorder %s604, %s605
      %p619 = scmp.eq.s32.totalorder %s85, 3
      %p620 = por %p618, %p619
      %p622 = scmp.ne.s32.totalorder %s605, %s621
      %p623 = scmp.eq.s32.totalorder %s85, 0
      %p624 = por %p622, %p623
      %s625 = ssub.s32 %s86, %s98
      %p626 = scmp.eq.s32.totalorder %s625, 0
      %s628 = sadd.s32 %s627, 1
      %s629 = scalar_select %p626, %s627, %s628
      %p632 = pneg %p626
      %p633 = scmp.eq.s32.totalorder %s79, 3
      %p634 = por %p632, %p633
      %p635 = scmp.ne.s32.totalorder %s627, %s630
      %p636 = scmp.eq.s32.totalorder %s79, 0
      %p637 = por %p635, %p636
      %p638 = scmp.ne.s32.totalorder %s627, %s630
      %p639 = scmp.eq.s32.totalorder %s84, 3
      %p640 = por %p638, %p639
      %p641 = scmp.ne.s32.totalorder %s630, %s631
      %p642 = scmp.eq.s32.totalorder %s84, 0
      %p643 = por %p641, %p642
      %p644 = scmp.ne.s32.totalorder %s630, %s631
      %p645 = scmp.eq.s32.totalorder %s85, 3
      %p646 = por %p644, %p645
      %p648 = scmp.ne.s32.totalorder %s631, %s647
      %p649 = scmp.eq.s32.totalorder %s85, 0
      %p650 = por %p648, %p649
      %s651 = ssub.s32 %s86, %s98
      %p652 = scmp.eq.s32.totalorder %s651, 0
      %s654 = sadd.s32 %s653, 1
      %s655 = scalar_select %p652, %s653, %s654
      %p658 = pneg %p652
      %p659 = scmp.eq.s32.totalorder %s79, 3
      %p660 = por %p658, %p659
      %p661 = scmp.ne.s32.totalorder %s653, %s656
      %p662 = scmp.eq.s32.totalorder %s79, 0
      %p663 = por %p661, %p662
      %p664 = scmp.ne.s32.totalorder %s653, %s656
      %p665 = scmp.eq.s32.totalorder %s84, 3
      %p666 = por %p664, %p665
      %p667 = scmp.ne.s32.totalorder %s656, %s657
      %p668 = scmp.eq.s32.totalorder %s84, 0
      %p669 = por %p667, %p668
      %p670 = scmp.ne.s32.totalorder %s656, %s657
      %p671 = scmp.eq.s32.totalorder %s85, 3
      %p672 = por %p670, %p671
      %p674 = scmp.ne.s32.totalorder %s657, %s673
      %p675 = scmp.eq.s32.totalorder %s85, 0
      %p676 = por %p674, %p675
      %s677 = ssub.s32 %s86, %s98
      %p678 = scmp.eq.s32.totalorder %s677, 0
      %s680 = sadd.s32 %s679, 1
      %s681 = scalar_select %p678, %s679, %s680
      %p684 = pneg %p678
      %p685 = scmp.eq.s32.totalorder %s79, 3
      %p686 = por %p684, %p685
      %p687 = scmp.ne.s32.totalorder %s679, %s682
      %p688 = scmp.eq.s32.totalorder %s79, 0
      %p689 = por %p687, %p688
      %p690 = scmp.ne.s32.totalorder %s679, %s682
      %p691 = scmp.eq.s32.totalorder %s84, 3
      %p692 = por %p690, %p691
      %p693 = scmp.ne.s32.totalorder %s682, %s683
      %p694 = scmp.eq.s32.totalorder %s84, 0
      %p695 = por %p693, %p694
      %p696 = scmp.ne.s32.totalorder %s682, %s683
      %p697 = scmp.eq.s32.totalorder %s85, 3
      %p698 = por %p696, %p697
      %p700 = scmp.ne.s32.totalorder %s683, %s699
      %p701 = scmp.eq.s32.totalorder %s85, 0
      %p702 = por %p700, %p701
      %s703 = ssub.s32 %s86, %s98
      %p704 = scmp.eq.s32.totalorder %s703, 0
      %s706 = sadd.s32 %s705, 1
      %s707 = scalar_select %p704, %s705, %s706
      %p710 = pneg %p704
      %p711 = scmp.eq.s32.totalorder %s79, 3
      %p712 = por %p710, %p711
      %p713 = scmp.ne.s32.totalorder %s705, %s708
      %p714 = scmp.eq.s32.totalorder %s79, 0
      %p715 = por %p713, %p714
      %p716 = scmp.ne.s32.totalorder %s705, %s708
      %p717 = scmp.eq.s32.totalorder %s84, 3
      %p718 = por %p716, %p717
      %p719 = scmp.ne.s32.totalorder %s708, %s709
      %p720 = scmp.eq.s32.totalorder %s84, 0
      %p721 = por %p719, %p720
      %p722 = scmp.ne.s32.totalorder %s708, %s709
      %p723 = scmp.eq.s32.totalorder %s85, 3
      %p724 = por %p722, %p723
      %p726 = scmp.ne.s32.totalorder %s709, %s725
      %p727 = scmp.eq.s32.totalorder %s85, 0
      %p728 = por %p726, %p727
      %s729 = ssub.s32 %s86, %s98
      %p730 = scmp.eq.s32.totalorder %s729, 0
      %s732 = sadd.s32 %s731, 1
      %s733 = scalar_select %p730, %s731, %s732
      %p736 = pneg %p730
      %p737 = scmp.eq.s32.totalorder %s79, 3
      %p738 = por %p736, %p737
      %p739 = scmp.ne.s32.totalorder %s731, %s734
      %p740 = scmp.eq.s32.totalorder %s79, 0
      %p741 = por %p739, %p740
      %p742 = scmp.ne.s32.totalorder %s731, %s734
      %p743 = scmp.eq.s32.totalorder %s84, 3
      %p744 = por %p742, %p743
      %p745 = scmp.ne.s32.totalorder %s734, %s735
      %p746 = scmp.eq.s32.totalorder %s84, 0
      %p747 = por %p745, %p746
      %p748 = scmp.ne.s32.totalorder %s734, %s735
      %p749 = scmp.eq.s32.totalorder %s85, 3
      %p750 = por %p748, %p749
      %p752 = scmp.ne.s32.totalorder %s735, %s751
      %p753 = scmp.eq.s32.totalorder %s85, 0
      %p754 = por %p752, %p753
      %s755 = ssub.s32 %s86, %s98
      %p756 = scmp.eq.s32.totalorder %s755, 0
      %s758 = sadd.s32 %s757, 1
      %s759 = scalar_select %p756, %s757, %s758
      %p762 = pneg %p756
      %p763 = scmp.eq.s32.totalorder %s79, 3
      %p764 = por %p762, %p763
      %p765 = scmp.ne.s32.totalorder %s757, %s760
      %p766 = scmp.eq.s32.totalorder %s79, 0
      %p767 = por %p765, %p766
      %p768 = scmp.ne.s32.totalorder %s757, %s760
      %p769 = scmp.eq.s32.totalorder %s84, 3
      %p770 = por %p768, %p769
      %p771 = scmp.ne.s32.totalorder %s760, %s761
      %p772 = scmp.eq.s32.totalorder %s84, 0
      %p773 = por %p771, %p772
      %p774 = scmp.ne.s32.totalorder %s760, %s761
      %p775 = scmp.eq.s32.totalorder %s85, 3
      %p776 = por %p774, %p775
      %p778 = scmp.ne.s32.totalorder %s761, %s777
      %p779 = scmp.eq.s32.totalorder %s85, 0
      %p780 = por %p778, %p779
      %s781 = ssub.s32 %s86, %s98
      %p782 = scmp.eq.s32.totalorder %s781, 0
      %s784 = sadd.s32 %s783, 1
      %s785 = scalar_select %p782, %s783, %s784
      %p788 = pneg %p782
      %p789 = scmp.eq.s32.totalorder %s79, 3
      %p790 = por %p788, %p789
      %p791 = scmp.ne.s32.totalorder %s783, %s786
      %p792 = scmp.eq.s32.totalorder %s79, 0
      %p793 = por %p791, %p792
      %p794 = scmp.ne.s32.totalorder %s783, %s786
      %p795 = scmp.eq.s32.totalorder %s84, 3
      %p796 = por %p794, %p795
      %p797 = scmp.ne.s32.totalorder %s786, %s787
      %p798 = scmp.eq.s32.totalorder %s84, 0
      %p799 = por %p797, %p798
      %p800 = scmp.ne.s32.totalorder %s786, %s787
      %p801 = scmp.eq.s32.totalorder %s85, 3
      %p802 = por %p800, %p801
      %p804 = scmp.ne.s32.totalorder %s787, %s803
      %p805 = scmp.eq.s32.totalorder %s85, 0
      %p806 = por %p804, %p805
      %s807 = ssub.s32 %s86, %s98
      %p808 = scmp.eq.s32.totalorder %s807, 0
      %s810 = sadd.s32 %s809, 1
      %s811 = scalar_select %p808, %s809, %s810
      %p814 = pneg %p808
      %p815 = scmp.eq.s32.totalorder %s79, 3
      %p816 = por %p814, %p815
      %p817 = scmp.ne.s32.totalorder %s809, %s812
      %p818 = scmp.eq.s32.totalorder %s79, 0
      %p819 = por %p817, %p818
      %p820 = scmp.ne.s32.totalorder %s809, %s812
      %p821 = scmp.eq.s32.totalorder %s84, 3
      %p822 = por %p820, %p821
      %p823 = scmp.ne.s32.totalorder %s812, %s813
      %p824 = scmp.eq.s32.totalorder %s84, 0
      %p825 = por %p823, %p824
      %p826 = scmp.ne.s32.totalorder %s812, %s813
      %p827 = scmp.eq.s32.totalorder %s85, 3
      %p828 = por %p826, %p827
      %p830 = scmp.ne.s32.totalorder %s813, %s829
      %p831 = scmp.eq.s32.totalorder %s85, 0
      %p832 = por %p830, %p831
      %s833 = ssub.s32 %s86, %s98
      %p834 = scmp.eq.s32.totalorder %s833, 0
      %s836 = sadd.s32 %s835, 1
      %s837 = scalar_select %p834, %s835, %s836
      %p840 = pneg %p834
      %p841 = scmp.eq.s32.totalorder %s79, 3
      %p842 = por %p840, %p841
      %p843 = scmp.ne.s32.totalorder %s835, %s838
      %p844 = scmp.eq.s32.totalorder %s79, 0
      %p845 = por %p843, %p844
      %p846 = scmp.ne.s32.totalorder %s835, %s838
      %p847 = scmp.eq.s32.totalorder %s84, 3
      %p848 = por %p846, %p847
      %p849 = scmp.ne.s32.totalorder %s838, %s839
      %p850 = scmp.eq.s32.totalorder %s84, 0
      %p851 = por %p849, %p850
      %p852 = scmp.ne.s32.totalorder %s838, %s839
      %p853 = scmp.eq.s32.totalorder %s85, 3
      %p854 = por %p852, %p853
      %p856 = scmp.ne.s32.totalorder %s839, %s855
      %p857 = scmp.eq.s32.totalorder %s85, 0
      %p858 = por %p856, %p857
      %s860 = sadd.s32 %s859, 1
      %p863 = scmp.eq.s32.totalorder %s79, 3
      %p864 = scmp.ne.s32.totalorder %s859, %s861
      %p865 = scmp.eq.s32.totalorder %s79, 0
      %p866 = por %p864, %p865
      %p867 = scmp.ne.s32.totalorder %s859, %s861
      %p868 = scmp.eq.s32.totalorder %s84, 3
      %p869 = por %p867, %p868
      %p870 = scmp.ne.s32.totalorder %s861, %s862
      %p871 = scmp.eq.s32.totalorder %s84, 0
      %p872 = por %p870, %p871
      %p873 = scmp.ne.s32.totalorder %s861, %s862
      %p874 = scmp.eq.s32.totalorder %s85, 3
      %p875 = por %p873, %p874
      %p877 = scmp.ne.s32.totalorder %s862, %s876
      %p878 = scmp.eq.s32.totalorder %s85, 0
      %p879 = por %p877, %p878
      %s881 = sadd.s32 %s880, 1
      %p884 = scmp.eq.s32.totalorder %s79, 3
      %p885 = scmp.ne.s32.totalorder %s880, %s882
      %p886 = scmp.eq.s32.totalorder %s79, 0
      %p887 = por %p885, %p886
      %p888 = scmp.ne.s32.totalorder %s880, %s882
      %p889 = scmp.eq.s32.totalorder %s84, 3
      %p890 = por %p888, %p889
      %p891 = scmp.ne.s32.totalorder %s882, %s883
      %p892 = scmp.eq.s32.totalorder %s84, 0
      %p893 = por %p891, %p892
      %p894 = scmp.ne.s32.totalorder %s882, %s883
      %p895 = scmp.eq.s32.totalorder %s85, 3
      %p896 = por %p894, %p895
      %p898 = scmp.ne.s32.totalorder %s883, %s897
      %p899 = scmp.eq.s32.totalorder %s85, 0
      %p900 = por %p898, %p899
      %s902 = sadd.s32 %s901, 1
      %p905 = scmp.eq.s32.totalorder %s79, 3
      %p906 = scmp.ne.s32.totalorder %s901, %s903
      %p907 = scmp.eq.s32.totalorder %s79, 0
      %p908 = por %p906, %p907
      %p909 = scmp.ne.s32.totalorder %s901, %s903
      %p910 = scmp.eq.s32.totalorder %s84, 3
      %p911 = por %p909, %p910
      %p912 = scmp.ne.s32.totalorder %s903, %s904
      %p913 = scmp.eq.s32.totalorder %s84, 0
      %p914 = por %p912, %p913
      %p915 = scmp.ne.s32.totalorder %s903, %s904
      %p916 = scmp.eq.s32.totalorder %s85, 3
      %p917 = por %p915, %p916
      %p919 = scmp.ne.s32.totalorder %s904, %s918
      %p920 = scmp.eq.s32.totalorder %s85, 0
      %p921 = por %p919, %p920
      %s923 = sadd.s32 %s922, 1
      %p926 = scmp.eq.s32.totalorder %s79, 3
      %p927 = scmp.ne.s32.totalorder %s922, %s924
      %p928 = scmp.eq.s32.totalorder %s79, 0
      %p929 = por %p927, %p928
      %p930 = scmp.ne.s32.totalorder %s922, %s924
      %p931 = scmp.eq.s32.totalorder %s84, 3
      %p932 = por %p930, %p931
      %p933 = scmp.ne.s32.totalorder %s924, %s925
      %p934 = scmp.eq.s32.totalorder %s84, 0
      %p935 = por %p933, %p934
      %p936 = scmp.ne.s32.totalorder %s924, %s925
      %p937 = scmp.eq.s32.totalorder %s85, 3
      %p938 = por %p936, %p937
      %p940 = scmp.ne.s32.totalorder %s925, %s939
      %p941 = scmp.eq.s32.totalorder %s85, 0
      %p942 = por %p940, %p941
      %s944 = sadd.s32 %s943, 1
      %p947 = scmp.eq.s32.totalorder %s79, 3
      %p948 = scmp.ne.s32.totalorder %s943, %s945
      %p949 = scmp.eq.s32.totalorder %s79, 0
      %p950 = por %p948, %p949
      %p951 = scmp.ne.s32.totalorder %s943, %s945
      %p952 = scmp.eq.s32.totalorder %s84, 3
      %p953 = por %p951, %p952
      %p954 = scmp.ne.s32.totalorder %s945, %s946
      %p955 = scmp.eq.s32.totalorder %s84, 0
      %p956 = por %p954, %p955
      %p957 = scmp.ne.s32.totalorder %s945, %s946
      %p958 = scmp.eq.s32.totalorder %s85, 3
      %p959 = por %p957, %p958
      %p961 = scmp.ne.s32.totalorder %s946, %s960
      %p962 = scmp.eq.s32.totalorder %s85, 0
      %p963 = por %p961, %p962
      %s965 = sadd.s32 %s964, 1
      %p968 = scmp.eq.s32.totalorder %s79, 3
      %p969 = scmp.ne.s32.totalorder %s964, %s966
      %p970 = scmp.eq.s32.totalorder %s79, 0
      %p971 = por %p969, %p970
      %p972 = scmp.ne.s32.totalorder %s964, %s966
      %p973 = scmp.eq.s32.totalorder %s84, 3
      %p974 = por %p972, %p973
      %p975 = scmp.ne.s32.totalorder %s966, %s967
      %p976 = scmp.eq.s32.totalorder %s84, 0
      %p977 = por %p975, %p976
      %p978 = scmp.ne.s32.totalorder %s966, %s967
      %p979 = scmp.eq.s32.totalorder %s85, 3
      %p980 = por %p978, %p979
      %p982 = scmp.ne.s32.totalorder %s967, %s981
      %p983 = scmp.eq.s32.totalorder %s85, 0
      %p984 = por %p982, %p983
      %s986 = sadd.s32 %s985, 1
      %p989 = scmp.eq.s32.totalorder %s79, 3
      %p990 = scmp.ne.s32.totalorder %s985, %s987
      %p991 = scmp.eq.s32.totalorder %s79, 0
      %p992 = por %p990, %p991
      %p993 = scmp.ne.s32.totalorder %s985, %s987
      %p994 = scmp.eq.s32.totalorder %s84, 3
      %p995 = por %p993, %p994
      %p996 = scmp.ne.s32.totalorder %s987, %s988
      %p997 = scmp.eq.s32.totalorder %s84, 0
      %p998 = por %p996, %p997
      %p999 = scmp.ne.s32.totalorder %s987, %s988
      %p1000 = scmp.eq.s32.totalorder %s85, 3
      %p1001 = por %p999, %p1000
      %p1003 = scmp.ne.s32.totalorder %s988, %s1002
      %p1004 = scmp.eq.s32.totalorder %s85, 0
      %p1005 = por %p1003, %p1004
      %p1006 = scmp.le.s32.totalorder 1, %s79
      %p1007 = scmp.lt.s32.totalorder %s79, 5
      %p1008 = pnand %p1006, %p1007
      %p1009 = pneg %p1008
      // Predicated region
      $region9: #{egnn_net_forward.1} parent=5 // pred_check
        _
      $region10: #{egnn_net_forward.1} parent=5 // pred_check_branch
        %1011 = sbr.rel (%p1008) target = $region12
      $region11: #{egnn_net_forward.1} parent=5 // pred_region
        %s1012 = ssub.s32 %s79, 1
        // Predicated region
        $region13: #{egnn_net_forward.1} parent=11 // pred_check
          %p1013 = pneg %p112
        $region14: #{egnn_net_forward.1} parent=11 // pred_check_branch
          %1015 = sbr.rel (%p1013) target = $region16
        $region15: #{egnn_net_forward.1} parent=11 // pred_region
          _
        $region16: #{egnn_net_forward.1} parent=11 // pred_fallthru
          _
        // Predicated region
        $region17: #{egnn_net_forward.1} parent=11 // pred_check
          %p1016 = pneg %p133
        $region18: #{egnn_net_forward.1} parent=11 // pred_check_branch
          %1018 = sbr.rel (%p1016) target = $region20
        $region19: #{egnn_net_forward.1} parent=11 // pred_region
          _
        $region20: #{egnn_net_forward.1} parent=11 // pred_fallthru
          _
        // Predicated region
        $region21: #{egnn_net_forward.1} parent=11 // pred_check
          %p1019 = pneg %p258
        $region22: #{egnn_net_forward.1} parent=11 // pred_check_branch
          %1021 = sbr.rel (%p1019) target = $region24
        $region23: #{egnn_net_forward.1} parent=11 // pred_region
          _
        $region24: #{egnn_net_forward.1} parent=11 // pred_fallthru
          _
        // Predicated region
        $region25: #{egnn_net_forward.1} parent=11 // pred_check
          %p1022 = pneg %p331
        $region26: #{egnn_net_forward.1} parent=11 // pred_check_branch
          %1024 = sbr.rel (%p1022) target = $region28
        $region27: #{egnn_net_forward.1} parent=11 // pred_region
          _
        $region28: #{egnn_net_forward.1} parent=11 // pred_fallthru
          _
        // Predicated region
        $region29: #{egnn_net_forward.1} parent=11 // pred_check
          %p1025 = pneg %p872
        $region30: #{egnn_net_forward.1} parent=11 // pred_check_branch
          %1027 = sbr.rel (%p1025) target = $region32
        $region31: #{egnn_net_forward.1} parent=11 // pred_region
          _
        $region32: #{egnn_net_forward.1} parent=11 // pred_fallthru
          _
        // Predicated region
        $region33: #{egnn_net_forward.1} parent=11 // pred_check
          %p1028 = pneg %p893
        $region34: #{egnn_net_forward.1} parent=11 // pred_check_branch
          %1030 = sbr.rel (%p1028) target = $region36
        $region35: #{egnn_net_forward.1} parent=11 // pred_region
          _
        $region36: #{egnn_net_forward.1} parent=11 // pred_fallthru
          _
        // Predicated region
        $region37: #{egnn_net_forward.1} parent=11 // pred_check
          %p1031 = pneg %p914
        $region38: #{egnn_net_forward.1} parent=11 // pred_check_branch
          %1033 = sbr.rel (%p1031) target = $region40
        $region39: #{egnn_net_forward.1} parent=11 // pred_region
          _
        $region40: #{egnn_net_forward.1} parent=11 // pred_fallthru
          _
        // Predicated region
        $region41: #{egnn_net_forward.1} parent=11 // pred_check
          %p1034 = pneg %p935
        $region42: #{egnn_net_forward.1} parent=11 // pred_check_branch
          %1036 = sbr.rel (%p1034) target = $region44
        $region43: #{egnn_net_forward.1} parent=11 // pred_region
          _
        $region44: #{egnn_net_forward.1} parent=11 // pred_fallthru
          _
        // Predicated region
        $region45: #{egnn_net_forward.1} parent=11 // pred_check
          %p1037 = pneg %p956
        $region46: #{egnn_net_forward.1} parent=11 // pred_check_branch
          %1039 = sbr.rel (%p1037) target = $region48
        $region47: #{egnn_net_forward.1} parent=11 // pred_region
          _
        $region48: #{egnn_net_forward.1} parent=11 // pred_fallthru
          _
        // Predicated region
        $region49: #{egnn_net_forward.1} parent=11 // pred_check
          %p1040 = pneg %p977
        $region50: #{egnn_net_forward.1} parent=11 // pred_check_branch
          %1042 = sbr.rel (%p1040) target = $region52
        $region51: #{egnn_net_forward.1} parent=11 // pred_region
          _
        $region52: #{egnn_net_forward.1} parent=11 // pred_fallthru
          _
      $region12: #{egnn_net_forward.1} parent=5 // pred_fallthru
        _
      %p1043 = scmp.lt.s32.totalorder %s79, 4
      // Predicated region
      $region53: #{egnn_net_forward.1} parent=5 // pred_check
        %p1044 = pneg %p1043
      $region54: #{egnn_net_forward.1} parent=5 // pred_check_branch
        %1046 = sbr.rel (%p1044) target = $region56
      $region55: #{egnn_net_forward.1} parent=5 // pred_region
        // Predicated region
        $region57: #{egnn_net_forward.1} parent=55 // pred_check
          %p1047 = pneg %p153
        $region58: #{egnn_net_forward.1} parent=55 // pred_check_branch
          %1049 = sbr.rel (%p1047) target = $region60
        $region59: #{egnn_net_forward.1} parent=55 // pred_region
          %s1050 = smul.u32 16, %s87
          %p1051 = scmp.lt.s32.totalorder %s1050, 31
          %s1052 = scalar_select %p1051, %s1050, 31
          %s1053 = smul.addr %s1052, 8
          %s1054 = scalar_lea.vmem %s5, %s1053
          %s1055 = smul.u32 16, %s87
        $region60: #{egnn_net_forward.1} parent=55 // pred_fallthru
          _
        // Predicated region
        $region61: #{egnn_net_forward.1} parent=55 // pred_check
          %p1056 = pneg %p179
        $region62: #{egnn_net_forward.1} parent=55 // pred_check_branch
          %1058 = sbr.rel (%p1056) target = $region64
        $region63: #{egnn_net_forward.1} parent=55 // pred_region
          %s1059 = smul.u32 16, %s87
          %p1060 = scmp.lt.s32.totalorder %s1059, 31
          %s1061 = scalar_select %p1060, %s1059, 31
          %s1062 = smul.addr %s1061, 8
          %s1063 = scalar_lea.vmem %s7, %s1062
          %s1064 = smul.u32 16, %s87
        $region64: #{egnn_net_forward.1} parent=55 // pred_fallthru
          _
        // Predicated region
        $region65: #{egnn_net_forward.1} parent=55 // pred_check
          %p1065 = pneg %p205
        $region66: #{egnn_net_forward.1} parent=55 // pred_check_branch
          %1067 = sbr.rel (%p1065) target = $region68
        $region67: #{egnn_net_forward.1} parent=55 // pred_region
          %s1068 = smul.u32 16, %s87
          %p1069 = scmp.lt.s32.totalorder %s1068, 31
          %s1070 = scalar_select %p1069, %s1068, 31
          %s1071 = smul.addr %s1070, 8
          %s1072 = scalar_lea.vmem %s9, %s1071
          %s1073 = smul.u32 16, %s87
        $region68: #{egnn_net_forward.1} parent=55 // pred_fallthru
          _
        // Predicated region
        $region69: #{egnn_net_forward.1} parent=55 // pred_check
          %p1074 = pneg %p231
        $region70: #{egnn_net_forward.1} parent=55 // pred_check_branch
          %1076 = sbr.rel (%p1074) target = $region72
        $region71: #{egnn_net_forward.1} parent=55 // pred_region
          %s1077 = sand.u32 %s221, 1
          %s1078 = sand.u32 %s221, 1
          %s1079 = smul.addr %s1078, 64
          %s1080 = scalar_lea.vmem [#allocation5], %s1079
          %s1081 = smul.addr %s87, 8
          %s1082 = scalar_lea.vmem %s11, %s1081
          // Predicated region
          $region73: #{egnn_net_forward.1} parent=71 // pred_check
            _
          $region74: #{egnn_net_forward.1} parent=71 // pred_check_branch
            %1084 = sbr.rel (0) target = $region76
          $region75: #{egnn_net_forward.1} parent=71 // pred_region
            // Predicated region
            $region77: #{egnn_net_forward.1} parent=75 // pred_check
              _
            $region78: #{egnn_net_forward.1} parent=75 // pred_check_branch
              %1086 = sbr.rel (0) target = $region80
            $region79: #{egnn_net_forward.1} parent=75 // pred_region
              // Predicated region
              $region92: #{egnn_net_forward.1} parent=79 // pred_check
                _
              $region93: #{egnn_net_forward.1} parent=79 // pred_check_branch
                %1116 = sbr.rel (0) target = $region95
              $region94: #{egnn_net_forward.1} parent=79 // pred_region
                loop: start=0, step=1, limit=1
                $region96: #{egnn_net_forward.1} parent=94 // loop_pre_header
                  _
                $region97: #{egnn_net_forward.1} parent=94 // loop_header
                  %s1118 = sphi 0, %s1122
                  %p1119 = scmp.ge.s32.totalorder %s1118, 1
                  %s1123 = sphi %s1082, %s1082
                  %s1124 = sphi %s1080, %s1080
                $region98: #{egnn_net_forward.1} parent=94 // loop_header_branch
                  %1121 = sbr.rel (%p1119) target = $region102
                $region99: #{egnn_net_forward.1} parent=94 // loop_body
                  %v1125 = vld [vmem:[%s1123] sm:$0xff]
                  %1126 = vst [vmem:[%s1124] sm:$0xff] %v1125
                  %v1127 = vld [vmem:[%s1123 + $0x10] sm:$0xff]
                  %1128 = vst [vmem:[%s1124 + $0x8] sm:$0xff] %v1127
                  %v1129 = vld [vmem:[%s1123 + $0x20] sm:$0xff]
                  %1130 = vst [vmem:[%s1124 + $0x10] sm:$0xff] %v1129
                  %v1131 = vld [vmem:[%s1123 + $0x30] sm:$0xff]
                  %1132 = vst [vmem:[%s1124 + $0x18] sm:$0xff] %v1131
                  %v1133 = vld [vmem:[%s1123 + $0x40] sm:$0xff]
                  %1134 = vst [vmem:[%s1124 + $0x20] sm:$0xff] %v1133
                  %v1135 = vld [vmem:[%s1123 + $0x50] sm:$0xff]
                  %1136 = vst [vmem:[%s1124 + $0x28] sm:$0xff] %v1135
                  %v1137 = vld [vmem:[%s1123 + $0x60] sm:$0xff]
                  %1138 = vst [vmem:[%s1124 + $0x30] sm:$0xff] %v1137
                  %v1139 = vld [vmem:[%s1123 + $0x70] sm:$0xff]
                  %1140 = vst [vmem:[%s1124 + $0x38] sm:$0xff] %v1139
                $region100: #{egnn_net_forward.1} parent=94 // loop_footer
                  %s1122 = sadd.s32 1, %s1118
                $region101: #{egnn_net_forward.1} parent=94 // loop_footer_branch
                  %1117 = sbr.rel target = $region97
                $region102: #{egnn_net_forward.1} parent=94 // loop_exit
                  _
              $region95: #{egnn_net_forward.1} parent=79 // pred_fallthru
                _
              // Predicated region
              $region103: #{egnn_net_forward.1} parent=79 // pred_check
                _
              $region104: #{egnn_net_forward.1} parent=79 // pred_check_branch
                %1142 = sbr.rel target = $region106
              $region105: #{egnn_net_forward.1} parent=79 // pred_region
                _
              $region106: #{egnn_net_forward.1} parent=79 // pred_fallthru
                _
            $region80: #{egnn_net_forward.1} parent=75 // pred_fallthru
              _
            // Predicated region
            $region81: #{egnn_net_forward.1} parent=75 // pred_check
              _
            $region82: #{egnn_net_forward.1} parent=75 // pred_check_branch
              %1088 = sbr.rel target = $region84
            $region83: #{egnn_net_forward.1} parent=75 // pred_region
              %s1090 = ssub.s32 256, 1
              loop: start=0, step=1, limit=1
              $region85: #{egnn_net_forward.1} parent=83 // loop_pre_header
                _
              $region86: #{egnn_net_forward.1} parent=83 // loop_header
                %s1092 = sphi 0, %s1096
                %p1093 = scmp.ge.s32.totalorder %s1092, 1
                %s1097 = sphi %s1082, %s1082
                %s1098 = sphi %s1080, %s1080
              $region87: #{egnn_net_forward.1} parent=83 // loop_header_branch
                %1095 = sbr.rel (%p1093) target = $region91
              $region88: #{egnn_net_forward.1} parent=83 // loop_body
                %v1099 = vld [vmem:[%s1097] sm:%s1090]
                %1100 = vst [vmem:[%s1098] sm:%s1090] %v1099
                %v1101 = vld [vmem:[%s1097 + $0x10] sm:%s1090]
                %1102 = vst [vmem:[%s1098 + $0x8] sm:%s1090] %v1101
                %v1103 = vld [vmem:[%s1097 + $0x20] sm:%s1090]
                %1104 = vst [vmem:[%s1098 + $0x10] sm:%s1090] %v1103
                %v1105 = vld [vmem:[%s1097 + $0x30] sm:%s1090]
                %1106 = vst [vmem:[%s1098 + $0x18] sm:%s1090] %v1105
                %v1107 = vld [vmem:[%s1097 + $0x40] sm:%s1090]
                %1108 = vst [vmem:[%s1098 + $0x20] sm:%s1090] %v1107
                %v1109 = vld [vmem:[%s1097 + $0x50] sm:%s1090]
                %1110 = vst [vmem:[%s1098 + $0x28] sm:%s1090] %v1109
                %v1111 = vld [vmem:[%s1097 + $0x60] sm:%s1090]
                %1112 = vst [vmem:[%s1098 + $0x30] sm:%s1090] %v1111
                %v1113 = vld [vmem:[%s1097 + $0x70] sm:%s1090]
                %1114 = vst [vmem:[%s1098 + $0x38] sm:%s1090] %v1113
              $region89: #{egnn_net_forward.1} parent=83 // loop_footer
                %s1096 = sadd.s32 1, %s1092
              $region90: #{egnn_net_forward.1} parent=83 // loop_footer_branch
                %1091 = sbr.rel target = $region86
              $region91: #{egnn_net_forward.1} parent=83 // loop_exit
                _
            $region84: #{egnn_net_forward.1} parent=75 // pred_fallthru
              _
          $region76: #{egnn_net_forward.1} parent=71 // pred_fallthru
            _
          %1143 = vnop
        $region72: #{egnn_net_forward.1} parent=55 // pred_fallthru
          _
        // Predicated region
        $region107: #{egnn_net_forward.1} parent=55 // pred_check
          %p1144 = pneg %p278
        $region108: #{egnn_net_forward.1} parent=55 // pred_check_branch
          %1146 = sbr.rel (%p1144) target = $region110
        $region109: #{egnn_net_forward.1} parent=55 // pred_region
          %p1147 = scmp.lt.s32.totalorder %s86, 1
          %s1148 = scalar_select %p1147, %s86, 1
          %s1149 = smul.addr %s1148, 2
          %s1150 = scalar_lea.vmem %s15, %s1149
        $region110: #{egnn_net_forward.1} parent=55 // pred_fallthru
          _
        // Predicated region
        $region111: #{egnn_net_forward.1} parent=55 // pred_check
          %p1151 = pneg %p304
        $region112: #{egnn_net_forward.1} parent=55 // pred_check_branch
          %1153 = sbr.rel (%p1151) target = $region114
        $region113: #{egnn_net_forward.1} parent=55 // pred_region
          %p1154 = scmp.lt.s32.totalorder %s86, 1
          %s1155 = scalar_select %p1154, %s86, 1
          %s1156 = smul.addr %s1155, 2
          %s1157 = scalar_lea.vmem %s17, %s1156
        $region114: #{egnn_net_forward.1} parent=55 // pred_fallthru
          _
        // Predicated region
        $region115: #{egnn_net_forward.1} parent=55 // pred_check
          %p1158 = pneg %p351
        $region116: #{egnn_net_forward.1} parent=55 // pred_check_branch
          %1160 = sbr.rel (%p1158) target = $region118
        $region117: #{egnn_net_forward.1} parent=55 // pred_region
          %p1161 = scmp.lt.s32.totalorder %s86, 1
          %s1162 = scalar_select %p1161, %s86, 1
          %s1163 = smul.addr %s1162, 8
          %s1164 = smul.addr %s1163, 8
          %s1165 = scalar_lea.vmem %s21, %s1164
        $region118: #{egnn_net_forward.1} parent=55 // pred_fallthru
          _
        // Predicated region
        $region119: #{egnn_net_forward.1} parent=55 // pred_check
          %p1166 = pneg %p377
        $region120: #{egnn_net_forward.1} parent=55 // pred_check_branch
          %1168 = sbr.rel (%p1166) target = $region122
        $region121: #{egnn_net_forward.1} parent=55 // pred_region
          %p1169 = scmp.lt.s32.totalorder %s86, 1
          %s1170 = scalar_select %p1169, %s86, 1
          %s1171 = smul.addr %s1170, 8
          %s1172 = smul.addr %s1171, 8
          %s1173 = scalar_lea.vmem %s23, %s1172
        $region122: #{egnn_net_forward.1} parent=55 // pred_fallthru
          _
        // Predicated region
        $region123: #{egnn_net_forward.1} parent=55 // pred_check
          %p1174 = pneg %p403
        $region124: #{egnn_net_forward.1} parent=55 // pred_check_branch
          %1176 = sbr.rel (%p1174) target = $region126
        $region125: #{egnn_net_forward.1} parent=55 // pred_region
          %p1177 = scmp.lt.s32.totalorder %s86, 1
          %s1178 = scalar_select %p1177, %s86, 1
          %s1179 = smul.addr %s1178, 4
          %s1180 = smul.addr %s1179, 8
          %s1181 = scalar_lea.vmem %s25, %s1180
        $region126: #{egnn_net_forward.1} parent=55 // pred_fallthru
          _
        // Predicated region
        $region127: #{egnn_net_forward.1} parent=55 // pred_check
          %p1182 = pneg %p429
        $region128: #{egnn_net_forward.1} parent=55 // pred_check_branch
          %1184 = sbr.rel (%p1182) target = $region130
        $region129: #{egnn_net_forward.1} parent=55 // pred_region
          %p1185 = scmp.lt.s32.totalorder %s86, 1
          %s1186 = scalar_select %p1185, %s86, 1
          %s1187 = smul.addr %s1186, 2
          %s1188 = scalar_lea.vmem %s27, %s1187
        $region130: #{egnn_net_forward.1} parent=55 // pred_fallthru
          _
        // Predicated region
        $region131: #{egnn_net_forward.1} parent=55 // pred_check
          %p1189 = pneg %p455
        $region132: #{egnn_net_forward.1} parent=55 // pred_check_branch
          %1191 = sbr.rel (%p1189) target = $region134
        $region133: #{egnn_net_forward.1} parent=55 // pred_region
          %p1192 = scmp.lt.s32.totalorder %s86, 1
          %s1193 = scalar_select %p1192, %s86, 1
          %s1194 = smul.addr %s1193, 2
          %s1195 = scalar_lea.vmem %s29, %s1194
        $region134: #{egnn_net_forward.1} parent=55 // pred_fallthru
          _
        // Predicated region
        $region135: #{egnn_net_forward.1} parent=55 // pred_check
          %p1196 = pneg %p481
        $region136: #{egnn_net_forward.1} parent=55 // pred_check_branch
          %1198 = sbr.rel (%p1196) target = $region138
        $region137: #{egnn_net_forward.1} parent=55 // pred_region
          %p1199 = scmp.lt.s32.totalorder %s86, 1
          %s1200 = scalar_select %p1199, %s86, 1
          %s1201 = smul.addr %s1200, 21
          %s1202 = smul.addr %s1201, 8
          %s1203 = scalar_lea.vmem %s31, %s1202
        $region138: #{egnn_net_forward.1} parent=55 // pred_fallthru
          _
        // Predicated region
        $region139: #{egnn_net_forward.1} parent=55 // pred_check
          %p1204 = pneg %p507
        $region140: #{egnn_net_forward.1} parent=55 // pred_check_branch
          %1206 = sbr.rel (%p1204) target = $region142
        $region141: #{egnn_net_forward.1} parent=55 // pred_region
          %p1207 = scmp.lt.s32.totalorder %s86, 1
          %s1208 = scalar_select %p1207, %s86, 1
          %s1209 = scalar_lea.vmem %s33, %s1208
        $region142: #{egnn_net_forward.1} parent=55 // pred_fallthru
          _
        // Predicated region
        $region143: #{egnn_net_forward.1} parent=55 // pred_check
          %p1210 = pneg %p533
        $region144: #{egnn_net_forward.1} parent=55 // pred_check_branch
          %1212 = sbr.rel (%p1210) target = $region146
        $region145: #{egnn_net_forward.1} parent=55 // pred_region
          %p1213 = scmp.lt.s32.totalorder %s86, 1
          %s1214 = scalar_select %p1213, %s86, 1
          %s1215 = smul.addr %s1214, 4
          %s1216 = smul.addr %s1215, 8
          %s1217 = scalar_lea.vmem %s35, %s1216
        $region146: #{egnn_net_forward.1} parent=55 // pred_fallthru
          _
        // Predicated region
        $region147: #{egnn_net_forward.1} parent=55 // pred_check
          %p1218 = pneg %p559
        $region148: #{egnn_net_forward.1} parent=55 // pred_check_branch
          %1220 = sbr.rel (%p1218) target = $region150
        $region149: #{egnn_net_forward.1} parent=55 // pred_region
          %p1221 = scmp.lt.s32.totalorder %s86, 1
          %s1222 = scalar_select %p1221, %s86, 1
          %s1223 = scalar_lea.vmem %s37, %s1222
        $region150: #{egnn_net_forward.1} parent=55 // pred_fallthru
          _
        // Predicated region
        $region151: #{egnn_net_forward.1} parent=55 // pred_check
          %p1224 = pneg %p585
        $region152: #{egnn_net_forward.1} parent=55 // pred_check_branch
          %1226 = sbr.rel (%p1224) target = $region154
        $region153: #{egnn_net_forward.1} parent=55 // pred_region
          %p1227 = scmp.lt.s32.totalorder %s86, 1
          %s1228 = scalar_select %p1227, %s86, 1
          %s1229 = smul.addr %s1228, 4
          %s1230 = smul.addr %s1229, 8
          %s1231 = scalar_lea.vmem %s39, %s1230
        $region154: #{egnn_net_forward.1} parent=55 // pred_fallthru
          _
        // Predicated region
        $region155: #{egnn_net_forward.1} parent=55 // pred_check
          %p1232 = pneg %p611
        $region156: #{egnn_net_forward.1} parent=55 // pred_check_branch
          %1234 = sbr.rel (%p1232) target = $region158
        $region157: #{egnn_net_forward.1} parent=55 // pred_region
          %p1235 = scmp.lt.s32.totalorder %s86, 1
          %s1236 = scalar_select %p1235, %s86, 1
          %s1237 = smul.addr %s1236, 4
          %s1238 = smul.addr %s1237, 8
          %s1239 = scalar_lea.vmem %s41, %s1238
        $region158: #{egnn_net_forward.1} parent=55 // pred_fallthru
          _
        // Predicated region
        $region159: #{egnn_net_forward.1} parent=55 // pred_check
          %p1240 = pneg %p637
        $region160: #{egnn_net_forward.1} parent=55 // pred_check_branch
          %1242 = sbr.rel (%p1240) target = $region162
        $region161: #{egnn_net_forward.1} parent=55 // pred_region
          %p1243 = scmp.lt.s32.totalorder %s86, 1
          %s1244 = scalar_select %p1243, %s86, 1
          %s1245 = scalar_lea.vmem %s43, %s1244
        $region162: #{egnn_net_forward.1} parent=55 // pred_fallthru
          _
        // Predicated region
        $region163: #{egnn_net_forward.1} parent=55 // pred_check
          %p1246 = pneg %p663
        $region164: #{egnn_net_forward.1} parent=55 // pred_check_branch
          %1248 = sbr.rel (%p1246) target = $region166
        $region165: #{egnn_net_forward.1} parent=55 // pred_region
          %p1249 = scmp.lt.s32.totalorder %s86, 1
          %s1250 = scalar_select %p1249, %s86, 1
          %s1251 = smul.addr %s1250, 8
          %s1252 = smul.addr %s1251, 8
          %s1253 = scalar_lea.vmem %s45, %s1252
        $region166: #{egnn_net_forward.1} parent=55 // pred_fallthru
          _
        // Predicated region
        $region167: #{egnn_net_forward.1} parent=55 // pred_check
          %p1254 = pneg %p689
        $region168: #{egnn_net_forward.1} parent=55 // pred_check_branch
          %1256 = sbr.rel (%p1254) target = $region170
        $region169: #{egnn_net_forward.1} parent=55 // pred_region
          %p1257 = scmp.lt.s32.totalorder %s86, 1
          %s1258 = scalar_select %p1257, %s86, 1
          %s1259 = scalar_lea.vmem %s47, %s1258
        $region170: #{egnn_net_forward.1} parent=55 // pred_fallthru
          _
        // Predicated region
        $region171: #{egnn_net_forward.1} parent=55 // pred_check
          %p1260 = pneg %p715
        $region172: #{egnn_net_forward.1} parent=55 // pred_check_branch
          %1262 = sbr.rel (%p1260) target = $region174
        $region173: #{egnn_net_forward.1} parent=55 // pred_region
          %p1263 = scmp.lt.s32.totalorder %s86, 1
          %s1264 = scalar_select %p1263, %s86, 1
          %s1265 = smul.addr %s1264, 4
          %s1266 = smul.addr %s1265, 8
          %s1267 = scalar_lea.vmem %s49, %s1266
        $region174: #{egnn_net_forward.1} parent=55 // pred_fallthru
          _
        // Predicated region
        $region175: #{egnn_net_forward.1} parent=55 // pred_check
          %p1268 = pneg %p741
        $region176: #{egnn_net_forward.1} parent=55 // pred_check_branch
          %1270 = sbr.rel (%p1268) target = $region178
        $region177: #{egnn_net_forward.1} parent=55 // pred_region
          %p1271 = scmp.lt.s32.totalorder %s86, 1
          %s1272 = scalar_select %p1271, %s86, 1
          %s1273 = scalar_lea.vmem %s51, %s1272
        $region178: #{egnn_net_forward.1} parent=55 // pred_fallthru
          _
        // Predicated region
        $region179: #{egnn_net_forward.1} parent=55 // pred_check
          %p1274 = pneg %p767
        $region180: #{egnn_net_forward.1} parent=55 // pred_check_branch
          %1276 = sbr.rel (%p1274) target = $region182
        $region181: #{egnn_net_forward.1} parent=55 // pred_region
          %p1277 = scmp.lt.s32.totalorder %s86, 1
          %s1278 = scalar_select %p1277, %s86, 1
          %s1279 = scalar_lea.vmem %s53, %s1278
        $region182: #{egnn_net_forward.1} parent=55 // pred_fallthru
          _
        // Predicated region
        $region183: #{egnn_net_forward.1} parent=55 // pred_check
          %p1280 = pneg %p793
        $region184: #{egnn_net_forward.1} parent=55 // pred_check_branch
          %1282 = sbr.rel (%p1280) target = $region186
        $region185: #{egnn_net_forward.1} parent=55 // pred_region
          %p1283 = scmp.lt.s32.totalorder %s86, 1
          %s1284 = scalar_select %p1283, %s86, 1
          %s1285 = scalar_lea.vmem %s55, %s1284
        $region186: #{egnn_net_forward.1} parent=55 // pred_fallthru
          _
        // Predicated region
        $region187: #{egnn_net_forward.1} parent=55 // pred_check
          %p1286 = pneg %p819
        $region188: #{egnn_net_forward.1} parent=55 // pred_check_branch
          %1288 = sbr.rel (%p1286) target = $region190
        $region189: #{egnn_net_forward.1} parent=55 // pred_region
          %p1289 = scmp.lt.s32.totalorder %s86, 1
          %s1290 = scalar_select %p1289, %s86, 1
          %s1291 = smul.addr %s1290, 4
          %s1292 = smul.addr %s1291, 8
          %s1293 = scalar_lea.vmem %s57, %s1292
        $region190: #{egnn_net_forward.1} parent=55 // pred_fallthru
          _
        // Predicated region
        $region191: #{egnn_net_forward.1} parent=55 // pred_check
          %p1294 = pneg %p845
        $region192: #{egnn_net_forward.1} parent=55 // pred_check_branch
          %1296 = sbr.rel (%p1294) target = $region194
        $region193: #{egnn_net_forward.1} parent=55 // pred_region
          %p1297 = scmp.lt.s32.totalorder %s86, 1
          %s1298 = scalar_select %p1297, %s86, 1
          %s1299 = scalar_lea.vmem %s59, %s1298
        $region194: #{egnn_net_forward.1} parent=55 // pred_fallthru
          _
      $region56: #{egnn_net_forward.1} parent=5 // pred_fallthru
        _
      %p1300 = scmp.le.s32.totalorder 1, %s79
      %p1301 = scmp.lt.s32.totalorder %s79, 5
      %p1302 = pnand %p1300, %p1301
      %p1303 = pneg %p1302
      // Predicated region
      $region195: #{egnn_net_forward.1} parent=5 // pred_check
        _
      $region196: #{egnn_net_forward.1} parent=5 // pred_check_branch
        %1305 = sbr.rel (%p1302) target = $region198
      $region197: #{egnn_net_forward.1} parent=5 // pred_region
        %s1306 = ssub.s32 %s79, 1
        %s1307 = sand.u32 %s224, 1
        %s1308 = sand.u32 %s224, 1
        %s1309 = smul.addr %s1308, 64
        %s1310 = scalar_lea.vmem [#allocation5], %s1309
        // Predicated region
        $region199: #{egnn_net_forward.1} parent=197 // pred_check
          %p1311 = pneg %p237
        $region200: #{egnn_net_forward.1} parent=197 // pred_check_branch
          %1313 = sbr.rel (%p1311) target = $region202
        $region201: #{egnn_net_forward.1} parent=197 // pred_region
          _
        $region202: #{egnn_net_forward.1} parent=197 // pred_fallthru
          _
        %p1314 = pneg %p112
        %p1315 = pneg %p109
        %p1316 = pneg %p133
        %p1317 = pneg %p130
        %s1318 = smul.u32 16, %s89
        %p1319 = scmp.lt.s32.totalorder %s1318, 31
        %s1320 = scalar_select %p1319, %s1318, 31
        %s1321 = smul.addr %s1320, 8
        %s1322 = scalar_lea.vmem %s5, %s1321
        %p1323 = pneg %p159
        %p1324 = pneg %p156
        %s1325 = smul.u32 16, %s89
        %p1326 = scmp.lt.s32.totalorder %s1325, 31
        %s1327 = scalar_select %p1326, %s1325, 31
        %s1328 = smul.addr %s1327, 8
        %s1329 = scalar_lea.vmem %s7, %s1328
        %p1330 = pneg %p185
        %p1331 = pneg %p182
        %s1332 = smul.u32 16, %s89
        %p1333 = scmp.lt.s32.totalorder %s1332, 31
        %s1334 = scalar_select %p1333, %s1332, 31
        %s1335 = smul.addr %s1334, 8
        %s1336 = scalar_lea.vmem %s9, %s1335
        %p1337 = pneg %p211
        %p1338 = pneg %p208
        %s1339 = sand.u32 %s224, 1
        %s1340 = sand.u32 %s224, 1
        %s1341 = smul.addr %s1340, 64
        %s1342 = scalar_lea.vmem [#allocation5], %s1341
        %p1343 = pneg %p237
        %p1344 = pneg %p234
        %p1345 = pneg %p258
        %p1346 = pneg %p255
        %p1347 = scmp.lt.s32.totalorder %s88, 1
        %s1348 = scalar_select %p1347, %s88, 1
        %s1349 = smul.addr %s1348, 2
        %s1350 = scalar_lea.vmem %s15, %s1349
        %p1351 = pneg %p284
        %p1352 = pneg %p281
        %p1353 = scmp.lt.s32.totalorder %s88, 1
        %s1354 = scalar_select %p1353, %s88, 1
        %s1355 = smul.addr %s1354, 2
        %s1356 = scalar_lea.vmem %s17, %s1355
        %p1357 = pneg %p310
        %p1358 = pneg %p307
        %p1359 = pneg %p331
        %p1360 = pneg %p328
        %p1361 = scmp.lt.s32.totalorder %s88, 1
        %s1362 = scalar_select %p1361, %s88, 1
        %s1363 = smul.addr %s1362, 8
        %s1364 = smul.addr %s1363, 8
        %s1365 = scalar_lea.vmem %s21, %s1364
        %p1366 = pneg %p357
        %p1367 = pneg %p354
        %p1368 = scmp.lt.s32.totalorder %s88, 1
        %s1369 = scalar_select %p1368, %s88, 1
        %s1370 = smul.addr %s1369, 8
        %s1371 = smul.addr %s1370, 8
        %s1372 = scalar_lea.vmem %s23, %s1371
        %p1373 = pneg %p383
        %p1374 = pneg %p380
        %p1375 = scmp.lt.s32.totalorder %s88, 1
        %s1376 = scalar_select %p1375, %s88, 1
        %s1377 = smul.addr %s1376, 4
        %s1378 = smul.addr %s1377, 8
        %s1379 = scalar_lea.vmem %s25, %s1378
        %p1380 = pneg %p409
        %p1381 = pneg %p406
        %p1382 = scmp.lt.s32.totalorder %s88, 1
        %s1383 = scalar_select %p1382, %s88, 1
        %s1384 = smul.addr %s1383, 2
        %s1385 = scalar_lea.vmem %s27, %s1384
        %p1386 = pneg %p435
        %p1387 = pneg %p432
        %p1388 = scmp.lt.s32.totalorder %s88, 1
        %s1389 = scalar_select %p1388, %s88, 1
        %s1390 = smul.addr %s1389, 2
        %s1391 = scalar_lea.vmem %s29, %s1390
        %p1392 = pneg %p461
        %p1393 = pneg %p458
        %p1394 = scmp.lt.s32.totalorder %s88, 1
        %s1395 = scalar_select %p1394, %s88, 1
        %s1396 = smul.addr %s1395, 21
        %s1397 = smul.addr %s1396, 8
        %s1398 = scalar_lea.vmem %s31, %s1397
        %p1399 = pneg %p487
        %p1400 = pneg %p484
        %p1401 = scmp.lt.s32.totalorder %s88, 1
        %s1402 = scalar_select %p1401, %s88, 1
        %s1403 = scalar_lea.vmem %s33, %s1402
        %p1404 = pneg %p513
        %p1405 = pneg %p510
        %p1406 = scmp.lt.s32.totalorder %s88, 1
        %s1407 = scalar_select %p1406, %s88, 1
        %s1408 = smul.addr %s1407, 4
        %s1409 = smul.addr %s1408, 8
        %s1410 = scalar_lea.vmem %s35, %s1409
        %p1411 = pneg %p539
        %p1412 = pneg %p536
        %p1413 = scmp.lt.s32.totalorder %s88, 1
        %s1414 = scalar_select %p1413, %s88, 1
        %s1415 = scalar_lea.vmem %s37, %s1414
        %p1416 = pneg %p565
        %p1417 = pneg %p562
        %p1418 = scmp.lt.s32.totalorder %s88, 1
        %s1419 = scalar_select %p1418, %s88, 1
        %s1420 = smul.addr %s1419, 4
        %s1421 = smul.addr %s1420, 8
        %s1422 = scalar_lea.vmem %s39, %s1421
        %p1423 = pneg %p591
        %p1424 = pneg %p588
        %p1425 = scmp.lt.s32.totalorder %s88, 1
        %s1426 = scalar_select %p1425, %s88, 1
        %s1427 = smul.addr %s1426, 4
        %s1428 = smul.addr %s1427, 8
        %s1429 = scalar_lea.vmem %s41, %s1428
        %p1430 = pneg %p617
        %p1431 = pneg %p614
        %p1432 = scmp.lt.s32.totalorder %s88, 1
        %s1433 = scalar_select %p1432, %s88, 1
        %s1434 = scalar_lea.vmem %s43, %s1433
        %p1435 = pneg %p643
        %p1436 = pneg %p640
        %p1437 = scmp.lt.s32.totalorder %s88, 1
        %s1438 = scalar_select %p1437, %s88, 1
        %s1439 = smul.addr %s1438, 8
        %s1440 = smul.addr %s1439, 8
        %s1441 = scalar_lea.vmem %s45, %s1440
        %p1442 = pneg %p669
        %p1443 = pneg %p666
        %p1444 = scmp.lt.s32.totalorder %s88, 1
        %s1445 = scalar_select %p1444, %s88, 1
        %s1446 = scalar_lea.vmem %s47, %s1445
        %p1447 = pneg %p695
        %p1448 = pneg %p692
        %p1449 = scmp.lt.s32.totalorder %s88, 1
        %s1450 = scalar_select %p1449, %s88, 1
        %s1451 = smul.addr %s1450, 4
        %s1452 = smul.addr %s1451, 8
        %s1453 = scalar_lea.vmem %s49, %s1452
        %p1454 = pneg %p721
        %p1455 = pneg %p718
        %p1456 = scmp.lt.s32.totalorder %s88, 1
        %s1457 = scalar_select %p1456, %s88, 1
        %s1458 = scalar_lea.vmem %s51, %s1457
        %p1459 = pneg %p747
        %p1460 = pneg %p744
        %p1461 = scmp.lt.s32.totalorder %s88, 1
        %s1462 = scalar_select %p1461, %s88, 1
        %s1463 = scalar_lea.vmem %s53, %s1462
        %p1464 = pneg %p773
        %p1465 = pneg %p770
        %p1466 = scmp.lt.s32.totalorder %s88, 1
        %s1467 = scalar_select %p1466, %s88, 1
        %s1468 = scalar_lea.vmem %s55, %s1467
        %p1469 = pneg %p799
        %p1470 = pneg %p796
        %p1471 = scmp.lt.s32.totalorder %s88, 1
        %s1472 = scalar_select %p1471, %s88, 1
        %s1473 = smul.addr %s1472, 4
        %s1474 = smul.addr %s1473, 8
        %s1475 = scalar_lea.vmem %s57, %s1474
        %p1476 = pneg %p825
        %p1477 = pneg %p822
        %p1478 = scmp.lt.s32.totalorder %s88, 1
        %s1479 = scalar_select %p1478, %s88, 1
        %s1480 = scalar_lea.vmem %s59, %s1479
        %p1481 = pneg %p851
        %p1482 = pneg %p848
        %p1483 = pneg %p872
        %p1484 = pneg %p869
        %p1485 = pneg %p893
        %p1486 = pneg %p890
        %p1487 = pneg %p914
        %p1488 = pneg %p911
        %p1489 = pneg %p935
        %p1490 = pneg %p932
        %p1491 = pneg %p956
        %p1492 = pneg %p953
        %p1493 = pneg %p977
        %p1494 = pneg %p974
        %p1495 = pneg %p998
        %p1496 = pneg %p995
        %s1497 = smul.u32 16, %s89
        %p1498 = scmp.lt.s32.totalorder %s1497, 31
        %s1499 = scalar_select %p1498, %s1497, 31
        %s1500 = smul.addr %s1499, 8
        %s1501 = scalar_lea.vmem %s5, %s1500
        %s1502 = smul.u32 16, %s89
        %s1503 = smul.u32 16, %s89
        %p1504 = scmp.lt.s32.totalorder %s1503, 31
        %s1505 = scalar_select %p1504, %s1503, 31
        %s1506 = smul.addr %s1505, 8
        %s1507 = scalar_lea.vmem %s7, %s1506
        %s1508 = smul.u32 16, %s89
        %s1509 = smul.u32 16, %s89
        %p1510 = scmp.lt.s32.totalorder %s1509, 31
        %s1511 = scalar_select %p1510, %s1509, 31
        %s1512 = smul.addr %s1511, 8
        %s1513 = scalar_lea.vmem %s9, %s1512
        %s1514 = smul.u32 16, %s89
        %p1515 = scmp.lt.s32.totalorder %s88, 1
        %s1516 = scalar_select %p1515, %s88, 1
        %s1517 = smul.addr %s1516, 2
        %s1518 = scalar_lea.vmem %s15, %s1517
        %p1519 = scmp.lt.s32.totalorder %s88, 1
        %s1520 = scalar_select %p1519, %s88, 1
        %s1521 = smul.addr %s1520, 2
        %s1522 = scalar_lea.vmem %s17, %s1521
        %p1523 = scmp.lt.s32.totalorder %s88, 1
        %s1524 = scalar_select %p1523, %s88, 1
        %s1525 = smul.addr %s1524, 8
        %s1526 = smul.addr %s1525, 8
        %s1527 = scalar_lea.vmem %s21, %s1526
        %p1528 = scmp.lt.s32.totalorder %s88, 1
        %s1529 = scalar_select %p1528, %s88, 1
        %s1530 = smul.addr %s1529, 8
        %s1531 = smul.addr %s1530, 8
        %s1532 = scalar_lea.vmem %s23, %s1531
        %p1533 = scmp.lt.s32.totalorder %s88, 1
        %s1534 = scalar_select %p1533, %s88, 1
        %s1535 = smul.addr %s1534, 4
        %s1536 = smul.addr %s1535, 8
        %s1537 = scalar_lea.vmem %s25, %s1536
        %p1538 = scmp.lt.s32.totalorder %s88, 1
        %s1539 = scalar_select %p1538, %s88, 1
        %s1540 = smul.addr %s1539, 2
        %s1541 = scalar_lea.vmem %s27, %s1540
        %p1542 = scmp.lt.s32.totalorder %s88, 1
        %s1543 = scalar_select %p1542, %s88, 1
        %s1544 = smul.addr %s1543, 2
        %s1545 = scalar_lea.vmem %s29, %s1544
        %p1546 = scmp.lt.s32.totalorder %s88, 1
        %s1547 = scalar_select %p1546, %s88, 1
        %s1548 = smul.addr %s1547, 21
        %s1549 = smul.addr %s1548, 8
        %s1550 = scalar_lea.vmem %s31, %s1549
        %p1551 = scmp.lt.s32.totalorder %s88, 1
        %s1552 = scalar_select %p1551, %s88, 1
        %s1553 = scalar_lea.vmem %s33, %s1552
        %p1554 = scmp.lt.s32.totalorder %s88, 1
        %s1555 = scalar_select %p1554, %s88, 1
        %s1556 = smul.addr %s1555, 4
        %s1557 = smul.addr %s1556, 8
        %s1558 = scalar_lea.vmem %s35, %s1557
        %p1559 = scmp.lt.s32.totalorder %s88, 1
        %s1560 = scalar_select %p1559, %s88, 1
        %s1561 = scalar_lea.vmem %s37, %s1560
        %p1562 = scmp.lt.s32.totalorder %s88, 1
        %s1563 = scalar_select %p1562, %s88, 1
        %s1564 = smul.addr %s1563, 4
        %s1565 = smul.addr %s1564, 8
        %s1566 = scalar_lea.vmem %s39, %s1565
        %p1567 = scmp.lt.s32.totalorder %s88, 1
        %s1568 = scalar_select %p1567, %s88, 1
        %s1569 = smul.addr %s1568, 4
        %s1570 = smul.addr %s1569, 8
        %s1571 = scalar_lea.vmem %s41, %s1570
        %p1572 = scmp.lt.s32.totalorder %s88, 1
        %s1573 = scalar_select %p1572, %s88, 1
        %s1574 = scalar_lea.vmem %s43, %s1573
        %p1575 = scmp.lt.s32.totalorder %s88, 1
        %s1576 = scalar_select %p1575, %s88, 1
        %s1577 = smul.addr %s1576, 8
        %s1578 = smul.addr %s1577, 8
        %s1579 = scalar_lea.vmem %s45, %s1578
        %p1580 = scmp.lt.s32.totalorder %s88, 1
        %s1581 = scalar_select %p1580, %s88, 1
        %s1582 = scalar_lea.vmem %s47, %s1581
        %p1583 = scmp.lt.s32.totalorder %s88, 1
        %s1584 = scalar_select %p1583, %s88, 1
        %s1585 = smul.addr %s1584, 4
        %s1586 = smul.addr %s1585, 8
        %s1587 = scalar_lea.vmem %s49, %s1586
        %p1588 = scmp.lt.s32.totalorder %s88, 1
        %s1589 = scalar_select %p1588, %s88, 1
        %s1590 = scalar_lea.vmem %s51, %s1589
        %p1591 = scmp.lt.s32.totalorder %s88, 1
        %s1592 = scalar_select %p1591, %s88, 1
        %s1593 = scalar_lea.vmem %s53, %s1592
        %p1594 = scmp.lt.s32.totalorder %s88, 1
        %s1595 = scalar_select %p1594, %s88, 1
        %s1596 = scalar_lea.vmem %s55, %s1595
        %p1597 = scmp.lt.s32.totalorder %s88, 1
        %s1598 = scalar_select %p1597, %s88, 1
        %s1599 = smul.addr %s1598, 4
        %s1600 = smul.addr %s1599, 8
        %s1601 = scalar_lea.vmem %s57, %s1600
        %p1602 = scmp.lt.s32.totalorder %s88, 1
        %s1603 = scalar_select %p1602, %s88, 1
        %s1604 = scalar_lea.vmem %s59, %s1603
        %s1605 = smul.u32 %s89, 128
        %p1606 = scmp.eq.s32.totalorder %s88, 0
        %p1607 = scmp.eq.s32.totalorder %s89, 0
        %p1608 = pnand %p1606, %p1607
        %p1609 = pneg %p1608
        // Predicated region
        $region203: #{egnn_net_forward.1} parent=197 // pred_check
          _
        $region204: #{egnn_net_forward.1} parent=197 // pred_check_branch
          %1611 = sbr.rel (%p1608) target = $region206
        $region205: #{egnn_net_forward.1} parent=197 // pred_region
          %v1612 = vld [vmem:[%s1] sm:$0xff]
          %v1613 = vld [vmem:[%s1 + $0x8] sm:$0xff]
          %v1614 = vld [vmem:[%s1 + $0x10] sm:$0xff]
          %v1615 = vld [vmem:[%s1 + $0x18] sm:$0xff]
          %v1616 = vld [vmem:[%s1 + $0x20] sm:$0xff]
          %v1617 = vld [vmem:[%s1 + $0x28] sm:$0xff]
          %v1618 = vld [vmem:[%s1 + $0x30] sm:$0xff]
          %v1619 = vld [vmem:[%s1 + $0x38] sm:$0xff]
          %vm1620 = vcmask 261120
          %1621 = vst.msk [vmem:[#allocation2] sm:$0xff] %vm1620, %v1612
          %1622 = vst.msk [vmem:[#allocation2 + $0x8] sm:$0xff] %vm1620, %v1613
          %1623 = vst.msk [vmem:[#allocation2 + $0x10] sm:$0xff] %vm1620, %v1614
          %1624 = vst.msk [vmem:[#allocation2 + $0x18] sm:$0xff] %vm1620, %v1615
          %1625 = vst.msk [vmem:[#allocation2 + $0x20] sm:$0xff] %vm1620, %v1616
          %1626 = vst.msk [vmem:[#allocation2 + $0x28] sm:$0xff] %vm1620, %v1617
          %1627 = vst.msk [vmem:[#allocation2 + $0x30] sm:$0xff] %vm1620, %v1618
          %1628 = vst.msk [vmem:[#allocation2 + $0x38] sm:$0xff] %vm1620, %v1619
          %v1629 = vld [vmem:[%s3] sm:$0xff]
          %v1630 = vld [vmem:[%s3 + $0x8] sm:$0xff]
          %v1631 = vld [vmem:[%s3 + $0x10] sm:$0xff]
          %v1632 = vld [vmem:[%s3 + $0x18] sm:$0xff]
          %v1633 = vld [vmem:[%s3 + $0x20] sm:$0xff]
          %v1634 = vld [vmem:[%s3 + $0x28] sm:$0xff]
          %v1635 = vld [vmem:[%s3 + $0x30] sm:$0xff]
          %v1636 = vld [vmem:[%s3 + $0x38] sm:$0xff]
          %v1637 = vld [vmem:[%s3 + $0x40] sm:$0xff]
          %v1638 = vld [vmem:[%s3 + $0x48] sm:$0xff]
          %v1639 = vld [vmem:[%s3 + $0x50] sm:$0xff]
          %v1640 = vld [vmem:[%s3 + $0x58] sm:$0xff]
          %v1641 = vld [vmem:[%s3 + $0x60] sm:$0xff]
          %v1642 = vld [vmem:[%s3 + $0x68] sm:$0xff]
          %v1643 = vld [vmem:[%s3 + $0x70] sm:$0xff]
          %v1644 = vld [vmem:[%s3 + $0x78] sm:$0xff]
          %v1645 = vld [vmem:[%s3 + $0x80] sm:$0xff]
          %v1646 = vld [vmem:[%s3 + $0x88] sm:$0xff]
          %v1647 = vld [vmem:[%s3 + $0x90] sm:$0xff]
          %v1648 = vld [vmem:[%s3 + $0x98] sm:$0xff]
          %v1649 = vld [vmem:[%s3 + $0xa0] sm:$0xff]
          %v1650 = vld [vmem:[%s3 + $0xa8] sm:$0xff]
          %v1651 = vld [vmem:[%s3 + $0xb0] sm:$0xff]
          %v1652 = vld [vmem:[%s3 + $0xb8] sm:$0xff]
          %v1653 = vld [vmem:[%s3 + $0xc0] sm:$0xff]
          %v1654 = vld [vmem:[%s3 + $0xc8] sm:$0xff]
          %v1655 = vld [vmem:[%s3 + $0xd0] sm:$0xff]
          %v1656 = vld [vmem:[%s3 + $0xd8] sm:$0xff]
          %v1657 = vld [vmem:[%s3 + $0xe0] sm:$0xff]
          %v1658 = vld [vmem:[%s3 + $0xe8] sm:$0xff]
          %v1659 = vld [vmem:[%s3 + $0xf0] sm:$0xff]
          %v1660 = vld [vmem:[%s3 + $0xf8] sm:$0xff]
          %vm1661 = vcmask 130048
          %1662 = vst.msk [vmem:[#allocation3] sm:$0xff] %vm1661, %v1629
          %1663 = vst.msk [vmem:[#allocation3 + $0x8] sm:$0xff] %vm1661, %v1630
          %1664 = vst.msk [vmem:[#allocation3 + $0x10] sm:$0xff] %vm1661, %v1631
          %1665 = vst.msk [vmem:[#allocation3 + $0x18] sm:$0xff] %vm1661, %v1632
          %1666 = vst.msk [vmem:[#allocation3 + $0x20] sm:$0xff] %vm1661, %v1633
          %1667 = vst.msk [vmem:[#allocation3 + $0x28] sm:$0xff] %vm1661, %v1634
          %1668 = vst.msk [vmem:[#allocation3 + $0x30] sm:$0xff] %vm1661, %v1635
          %1669 = vst.msk [vmem:[#allocation3 + $0x38] sm:$0xff] %vm1661, %v1636
          %1670 = vst.msk [vmem:[#allocation3 + $0x40] sm:$0xff] %vm1661, %v1637
          %1671 = vst.msk [vmem:[#allocation3 + $0x48] sm:$0xff] %vm1661, %v1638
          %1672 = vst.msk [vmem:[#allocation3 + $0x50] sm:$0xff] %vm1661, %v1639
          %1673 = vst.msk [vmem:[#allocation3 + $0x58] sm:$0xff] %vm1661, %v1640
          %1674 = vst.msk [vmem:[#allocation3 + $0x60] sm:$0xff] %vm1661, %v1641
          %1675 = vst.msk [vmem:[#allocation3 + $0x68] sm:$0xff] %vm1661, %v1642
          %1676 = vst.msk [vmem:[#allocation3 + $0x70] sm:$0xff] %vm1661, %v1643
          %1677 = vst.msk [vmem:[#allocation3 + $0x78] sm:$0xff] %vm1661, %v1644
          %1678 = vst.msk [vmem:[#allocation3 + $0x80] sm:$0xff] %vm1661, %v1645
          %1679 = vst.msk [vmem:[#allocation3 + $0x88] sm:$0xff] %vm1661, %v1646
          %1680 = vst.msk [vmem:[#allocation3 + $0x90] sm:$0xff] %vm1661, %v1647
          %1681 = vst.msk [vmem:[#allocation3 + $0x98] sm:$0xff] %vm1661, %v1648
          %1682 = vst.msk [vmem:[#allocation3 + $0xa0] sm:$0xff] %vm1661, %v1649
          %1683 = vst.msk [vmem:[#allocation3 + $0xa8] sm:$0xff] %vm1661, %v1650
          %1684 = vst.msk [vmem:[#allocation3 + $0xb0] sm:$0xff] %vm1661, %v1651
          %1685 = vst.msk [vmem:[#allocation3 + $0xb8] sm:$0xff] %vm1661, %v1652
          %1686 = vst.msk [vmem:[#allocation3 + $0xc0] sm:$0xff] %vm1661, %v1653
          %1687 = vst.msk [vmem:[#allocation3 + $0xc8] sm:$0xff] %vm1661, %v1654
          %1688 = vst.msk [vmem:[#allocation3 + $0xd0] sm:$0xff] %vm1661, %v1655
          %1689 = vst.msk [vmem:[#allocation3 + $0xd8] sm:$0xff] %vm1661, %v1656
          %1690 = vst.msk [vmem:[#allocation3 + $0xe0] sm:$0xff] %vm1661, %v1657
          %1691 = vst.msk [vmem:[#allocation3 + $0xe8] sm:$0xff] %vm1661, %v1658
          %1692 = vst.msk [vmem:[#allocation3 + $0xf0] sm:$0xff] %vm1661, %v1659
          %1693 = vst.msk [vmem:[#allocation3 + $0xf8] sm:$0xff] %vm1661, %v1660
        $region206: #{egnn_net_forward.1} parent=197 // pred_fallthru
          _
        // Predicated region
        $region207: #{egnn_net_forward.1} parent=197 // pred_check
          %p1694 = pneg %p1607
        $region208: #{egnn_net_forward.1} parent=197 // pred_check_branch
          %1696 = sbr.rel (%p1694) target = $region210
        $region209: #{egnn_net_forward.1} parent=197 // pred_region
          %vm1697 = vcmask 261120
          %1698 = vst.msk [vmem:[#allocation4] sm:$0xff] %vm1697, 0.0
          %1699 = vst.msk [vmem:[#allocation4 + $0x8] sm:$0xff] %vm1697, 0.0
          %1700 = vst.msk [vmem:[#allocation4 + $0x10] sm:$0xff] %vm1697, 0.0
          %1701 = vst.msk [vmem:[#allocation4 + $0x18] sm:$0xff] %vm1697, 0.0
          %1702 = vst.msk [vmem:[#allocation4 + $0x20] sm:$0xff] %vm1697, 0.0
          %1703 = vst.msk [vmem:[#allocation4 + $0x28] sm:$0xff] %vm1697, 0.0
          %1704 = vst.msk [vmem:[#allocation4 + $0x30] sm:$0xff] %vm1697, 0.0
          %1705 = vst.msk [vmem:[#allocation4 + $0x38] sm:$0xff] %vm1697, 0.0
        $region210: #{egnn_net_forward.1} parent=197 // pred_fallthru
          _
        %v1706 = vld [vmem:[#allocation2] sm:$0xff]
        %v1707 = vld [vmem:[#allocation2 + $0x8] sm:$0xff]
        %v1708 = vld [vmem:[#allocation2 + $0x10] sm:$0xff]
        %v1709 = vld [vmem:[#allocation2 + $0x18] sm:$0xff]
        %v1710 = vld [vmem:[#allocation2 + $0x20] sm:$0xff]
        %v1711 = vld [vmem:[#allocation2 + $0x28] sm:$0xff]
        %v1712 = vld [vmem:[#allocation2 + $0x30] sm:$0xff]
        %v1713 = vld [vmem:[#allocation2 + $0x38] sm:$0xff]
        %s1714 = scalar_lea.vmem [#allocation3], %s1605
        %v1715 = vld [vmem:[%s1714] sm:$0xff]
        %v1716 = vld [vmem:[%s1714 + $0x8] sm:$0xff]
        %v1717 = vld [vmem:[%s1714 + $0x10] sm:$0xff]
        %v1718 = vld [vmem:[%s1714 + $0x18] sm:$0xff]
        %v1719 = vld [vmem:[%s1714 + $0x20] sm:$0xff]
        %v1720 = vld [vmem:[%s1714 + $0x28] sm:$0xff]
        %v1721 = vld [vmem:[%s1714 + $0x30] sm:$0xff]
        %v1722 = vld [vmem:[%s1714 + $0x38] sm:$0xff]
        %v1723 = vld [vmem:[%s1714 + $0x40] sm:$0xff]
        %v1724 = vld [vmem:[%s1714 + $0x48] sm:$0xff]
        %v1725 = vld [vmem:[%s1714 + $0x50] sm:$0xff]
        %v1726 = vld [vmem:[%s1714 + $0x58] sm:$0xff]
        %v1727 = vld [vmem:[%s1714 + $0x60] sm:$0xff]
        %v1728 = vld [vmem:[%s1714 + $0x68] sm:$0xff]
        %v1729 = vld [vmem:[%s1714 + $0x70] sm:$0xff]
        %v1730 = vld [vmem:[%s1714 + $0x78] sm:$0xff]
        %v1731 = vld [vmem:[%s1513] sm:$0xff]
        %v1732 = vld [vmem:[%s1513 + $0x8] sm:$0xff]
        %v1733 = vld [vmem:[%s1513 + $0x10] sm:$0xff]
        %v1734 = vld [vmem:[%s1513 + $0x18] sm:$0xff]
        %v1735 = vld [vmem:[%s1513 + $0x20] sm:$0xff]
        %v1736 = vld [vmem:[%s1513 + $0x28] sm:$0xff]
        %v1737 = vld [vmem:[%s1513 + $0x30] sm:$0xff]
        %v1738 = vld [vmem:[%s1513 + $0x38] sm:$0xff]
        %v1739 = vld [vmem:[%s1513 + $0x40] sm:$0xff]
        %v1740 = vld [vmem:[%s1513 + $0x48] sm:$0xff]
        %v1741 = vld [vmem:[%s1513 + $0x50] sm:$0xff]
        %v1742 = vld [vmem:[%s1513 + $0x58] sm:$0xff]
        %v1743 = vld [vmem:[%s1513 + $0x60] sm:$0xff]
        %v1744 = vld [vmem:[%s1513 + $0x68] sm:$0xff]
        %v1745 = vld [vmem:[%s1513 + $0x70] sm:$0xff]
        %v1746 = vld [vmem:[%s1513 + $0x78] sm:$0xff]
        %vm1747 = vcmask 523264
        %v1749 = vsel %vm1747, %v1731, 0
        %v1752 = vsel %vm1747, %v1732, 0
        %v1755 = vsel %vm1747, %v1733, 0
        %v1758 = vsel %vm1747, %v1734, 0
        %v1761 = vsel %vm1747, %v1735, 0
        %v1764 = vsel %vm1747, %v1736, 0
        %v1767 = vsel %vm1747, %v1737, 0
        %v1770 = vsel %vm1747, %v1738, 0
        %v1773 = vsel %vm1747, %v1739, 0
        %v1776 = vsel %vm1747, %v1740, 0
        %v1779 = vsel %vm1747, %v1741, 0
        %v1782 = vsel %vm1747, %v1742, 0
        %v1785 = vsel %vm1747, %v1743, 0
        %v1788 = vsel %vm1747, %v1744, 0
        %v1791 = vsel %vm1747, %v1745, 0
        %v1794 = vsel %vm1747, %v1746, 0
        %1796 = vmatprep.subr.mxu0 0.0
        %1797 = vmatpush1.msra.mxu0 0.0
        %1798 = vmatprep.subr.mxu0 0.0
        %1799 = vmatpush1.msra.mxu0 0.0
        %1800 = vmatprep.subr.mxu0 0.0
        %1801 = vmatpush1.msra.mxu0 0.0
        %1802 = vmatprep.subr.mxu0 0.0
        %1803 = vmatpush1.msra.mxu0 0.0
        %1804 = vmatprep.subr.mxu0 0.0
        %1805 = vmatpush1.msra.mxu0 0.0
        %1806 = vmatprep.subr.mxu0 0.0
        %1807 = vmatpush1.msra.mxu0 0.0
        %1808 = vmatprep.subr.mxu0 0.0
        %1809 = vmatpush1.msra.mxu0 0.0
        %1810 = vmatprep.subr.mxu0 0.0
        %1811 = vmatpush1.msra.mxu0 0.0
        %1812 = vmatprep.subr.mxu0 0.0
        %1813 = vmatpush1.msra.mxu0 %v1713
        %1814 = vmatprep.subr.mxu0 0.0
        %1815 = vmatpush1.msra.mxu0 %v1712
        %1816 = vmatprep.subr.mxu0 0.0
        %1817 = vmatpush1.msra.mxu0 %v1711
        %1818 = vmatprep.subr.mxu0 0.0
        %1819 = vmatpush1.msra.mxu0 %v1710
        %1820 = vmatprep.subr.mxu0 0.0
        %1821 = vmatpush1.msra.mxu0 %v1709
        %1822 = vmatprep.subr.mxu0 0.0
        %1823 = vmatpush1.msra.mxu0 %v1708
        %1824 = vmatprep.subr.mxu0 0.0
        %1825 = vmatpush1.msra.mxu0 %v1707
        %1826 = vmatprep.subr.mxu0 0.0
        %1827 = vmatpush1.msra.mxu0 %v1706
        %1828 = vmatprep.subr.mxu0 0.0
        %1829 = vmatpush2.msra.mxu0 0.0
        %1830 = vmatprep.subr.mxu0 0.0
        %1831 = vmatpush2.msra.mxu0 0.0
        %1832 = vmatprep.subr.mxu0 0.0
        %1833 = vmatpush2.msra.mxu0 0.0
        %1834 = vmatprep.subr.mxu0 0.0
        %1835 = vmatpush2.msra.mxu0 0.0
        %1836 = vmatprep.subr.mxu0 0.0
        %1837 = vmatpush2.msra.mxu0 0.0
        %1838 = vmatprep.subr.mxu0 0.0
        %1839 = vmatpush2.msra.mxu0 0.0
        %1840 = vmatprep.subr.mxu0 0.0
        %1841 = vmatpush2.msra.mxu0 0.0
        %1842 = vmatprep.subr.mxu0 0.0
        %1843 = vmatpush2.msra.mxu0 0.0
        %1844 = vmatprep.subr.mxu0 0.0
        %1845 = vmatpush2.msra.mxu0 0.0
        %1846 = vmatprep.subr.mxu0 0.0
        %1847 = vmatpush2.msra.mxu0 0.0
        %1848 = vmatprep.subr.mxu0 0.0
        %1849 = vmatpush2.msra.mxu0 0.0
        %1850 = vmatprep.subr.mxu0 0.0
        %1851 = vmatpush2.msra.mxu0 0.0
        %1852 = vmatprep.subr.mxu0 0.0
        %1853 = vmatpush2.msra.mxu0 0.0
        %1854 = vmatprep.subr.mxu0 0.0
        %1855 = vmatpush2.msra.mxu0 0.0
        %1856 = vmatprep.subr.mxu0 0.0
        %1857 = vmatpush2.msra.mxu0 0.0
        %1858 = vmatprep.subr.mxu0 0.0
        %1859 = vmatpush2.msra.mxu0 0.0
        %1860 = vmatprep.mubr.f32.mxu0 0.0
        %1861 = vmatmul.mubr.f32.gmra.mxu0 %v1749
        %v1862 = vpop.f32.mrf.mxu0
        %v1863 = vadd.f32 0.0, %v1862
        %v1864 = vpop.f32.mrf.mxu0
        %1865 = vmatprep.mubr.f32.mxu0 0.0
        %1866 = vmatmul.mubr.f32.gmra.mxu0 %v1752
        %v1867 = vpop.f32.mrf.mxu0
        %v1868 = vadd.f32 0.0, %v1867
        %v1869 = vpop.f32.mrf.mxu0
        %1870 = vmatprep.mubr.f32.mxu0 0.0
        %1871 = vmatmul.mubr.f32.gmra.mxu0 %v1755
        %v1872 = vpop.f32.mrf.mxu0
        %v1873 = vadd.f32 0.0, %v1872
        %v1874 = vpop.f32.mrf.mxu0
        %1875 = vmatprep.mubr.f32.mxu0 0.0
        %1876 = vmatmul.mubr.f32.gmra.mxu0 %v1758
        %v1877 = vpop.f32.mrf.mxu0
        %v1878 = vadd.f32 0.0, %v1877
        %v1879 = vpop.f32.mrf.mxu0
        %1880 = vmatprep.mubr.f32.mxu0 0.0
        %1881 = vmatmul.mubr.f32.gmra.mxu0 %v1761
        %v1882 = vpop.f32.mrf.mxu0
        %v1883 = vadd.f32 0.0, %v1882
        %v1884 = vpop.f32.mrf.mxu0
        %1885 = vmatprep.mubr.f32.mxu0 0.0
        %1886 = vmatmul.mubr.f32.gmra.mxu0 %v1764
        %v1887 = vpop.f32.mrf.mxu0
        %v1888 = vadd.f32 0.0, %v1887
        %v1889 = vpop.f32.mrf.mxu0
        %1890 = vmatprep.mubr.f32.mxu0 0.0
        %1891 = vmatmul.mubr.f32.gmra.mxu0 %v1767
        %v1892 = vpop.f32.mrf.mxu0
        %v1893 = vadd.f32 0.0, %v1892
        %v1894 = vpop.f32.mrf.mxu0
        %1895 = vmatprep.mubr.f32.mxu0 0.0
        %1896 = vmatmul.mubr.f32.gmra.mxu0 %v1770
        %v1897 = vpop.f32.mrf.mxu0
        %v1898 = vadd.f32 0.0, %v1897
        %v1899 = vpop.f32.mrf.mxu0
        %1900 = vmatprep.mubr.f32.mxu0 0.0
        %1901 = vmatmul.mubr.f32.gmra.mxu0 %v1773
        %v1902 = vpop.f32.mrf.mxu0
        %v1903 = vadd.f32 0.0, %v1902
        %v1904 = vpop.f32.mrf.mxu0
        %1905 = vmatprep.mubr.f32.mxu0 0.0
        %1906 = vmatmul.mubr.f32.gmra.mxu0 %v1776
        %v1907 = vpop.f32.mrf.mxu0
        %v1908 = vadd.f32 0.0, %v1907
        %v1909 = vpop.f32.mrf.mxu0
        %1910 = vmatprep.mubr.f32.mxu0 0.0
        %1911 = vmatmul.mubr.f32.gmra.mxu0 %v1779
        %v1912 = vpop.f32.mrf.mxu0
        %v1913 = vadd.f32 0.0, %v1912
        %v1914 = vpop.f32.mrf.mxu0
        %1915 = vmatprep.mubr.f32.mxu0 0.0
        %1916 = vmatmul.mubr.f32.gmra.mxu0 %v1782
        %v1917 = vpop.f32.mrf.mxu0
        %v1918 = vadd.f32 0.0, %v1917
        %v1919 = vpop.f32.mrf.mxu0
        %1920 = vmatprep.mubr.f32.mxu0 0.0
        %1921 = vmatmul.mubr.f32.gmra.mxu0 %v1785
        %v1922 = vpop.f32.mrf.mxu0
        %v1923 = vadd.f32 0.0, %v1922
        %v1924 = vpop.f32.mrf.mxu0
        %1925 = vmatprep.mubr.f32.mxu0 0.0
        %1926 = vmatmul.mubr.f32.gmra.mxu0 %v1788
        %v1927 = vpop.f32.mrf.mxu0
        %v1928 = vadd.f32 0.0, %v1927
        %v1929 = vpop.f32.mrf.mxu0
        %1930 = vmatprep.mubr.f32.mxu0 0.0
        %1931 = vmatmul.mubr.f32.gmra.mxu0 %v1791
        %v1932 = vpop.f32.mrf.mxu0
        %v1933 = vadd.f32 0.0, %v1932
        %v1934 = vpop.f32.mrf.mxu0
        %1935 = vmatprep.mubr.f32.mxu0 0.0
        %1936 = vmatmul.mubr.f32.gmra.mxu0 %v1794
        %v1937 = vpop.f32.mrf.mxu0
        %v1938 = vadd.f32 0.0, %v1937
        %v1939 = vpop.f32.mrf.mxu0
        %1940 = vdwg.mxu0
        %v1941 = vld [vmem:[%s1507] sm:$0xff]
        %v1942 = vld [vmem:[%s1507 + $0x8] sm:$0xff]
        %v1943 = vld [vmem:[%s1507 + $0x10] sm:$0xff]
        %v1944 = vld [vmem:[%s1507 + $0x18] sm:$0xff]
        %v1945 = vld [vmem:[%s1507 + $0x20] sm:$0xff]
        %v1946 = vld [vmem:[%s1507 + $0x28] sm:$0xff]
        %v1947 = vld [vmem:[%s1507 + $0x30] sm:$0xff]
        %v1948 = vld [vmem:[%s1507 + $0x38] sm:$0xff]
        %v1949 = vld [vmem:[%s1507 + $0x40] sm:$0xff]
        %v1950 = vld [vmem:[%s1507 + $0x48] sm:$0xff]
        %v1951 = vld [vmem:[%s1507 + $0x50] sm:$0xff]
        %v1952 = vld [vmem:[%s1507 + $0x58] sm:$0xff]
        %v1953 = vld [vmem:[%s1507 + $0x60] sm:$0xff]
        %v1954 = vld [vmem:[%s1507 + $0x68] sm:$0xff]
        %v1955 = vld [vmem:[%s1507 + $0x70] sm:$0xff]
        %v1956 = vld [vmem:[%s1507 + $0x78] sm:$0xff]
        %v1958 = vsel %vm1747, %v1941, 0
        %v1961 = vsel %vm1747, %v1942, 0
        %v1964 = vsel %vm1747, %v1943, 0
        %v1967 = vsel %vm1747, %v1944, 0
        %v1970 = vsel %vm1747, %v1945, 0
        %v1973 = vsel %vm1747, %v1946, 0
        %v1976 = vsel %vm1747, %v1947, 0
        %v1979 = vsel %vm1747, %v1948, 0
        %v1982 = vsel %vm1747, %v1949, 0
        %v1985 = vsel %vm1747, %v1950, 0
        %v1988 = vsel %vm1747, %v1951, 0
        %v1991 = vsel %vm1747, %v1952, 0
        %v1994 = vsel %vm1747, %v1953, 0
        %v1997 = vsel %vm1747, %v1954, 0
        %v2000 = vsel %vm1747, %v1955, 0
        %v2003 = vsel %vm1747, %v1956, 0
        %2005 = vmatprep.subr.mxu0 0.0
        %2006 = vmatpush1.msra.mxu0 0.0
        %2007 = vmatprep.subr.mxu0 0.0
        %2008 = vmatpush1.msra.mxu0 0.0
        %2009 = vmatprep.subr.mxu0 0.0
        %2010 = vmatpush1.msra.mxu0 0.0
        %2011 = vmatprep.subr.mxu0 0.0
        %2012 = vmatpush1.msra.mxu0 0.0
        %2013 = vmatprep.subr.mxu0 0.0
        %2014 = vmatpush1.msra.mxu0 0.0
        %2015 = vmatprep.subr.mxu0 0.0
        %2016 = vmatpush1.msra.mxu0 0.0
        %2017 = vmatprep.subr.mxu0 0.0
        %2018 = vmatpush1.msra.mxu0 0.0
        %2019 = vmatprep.subr.mxu0 0.0
        %2020 = vmatpush1.msra.mxu0 0.0
        %2021 = vmatprep.subr.mxu0 0.0
        %2022 = vmatpush1.msra.mxu0 %v1713
        %2023 = vmatprep.subr.mxu0 0.0
        %2024 = vmatpush1.msra.mxu0 %v1712
        %2025 = vmatprep.subr.mxu0 0.0
        %2026 = vmatpush1.msra.mxu0 %v1711
        %2027 = vmatprep.subr.mxu0 0.0
        %2028 = vmatpush1.msra.mxu0 %v1710
        %2029 = vmatprep.subr.mxu0 0.0
        %2030 = vmatpush1.msra.mxu0 %v1709
        %2031 = vmatprep.subr.mxu0 0.0
        %2032 = vmatpush1.msra.mxu0 %v1708
        %2033 = vmatprep.subr.mxu0 0.0
        %2034 = vmatpush1.msra.mxu0 %v1707
        %2035 = vmatprep.subr.mxu0 0.0
        %2036 = vmatpush1.msra.mxu0 %v1706
        %2037 = vmatprep.subr.mxu0 0.0
        %2038 = vmatpush2.msra.mxu0 0.0
        %2039 = vmatprep.subr.mxu0 0.0
        %2040 = vmatpush2.msra.mxu0 0.0
        %2041 = vmatprep.subr.mxu0 0.0
        %2042 = vmatpush2.msra.mxu0 0.0
        %2043 = vmatprep.subr.mxu0 0.0
        %2044 = vmatpush2.msra.mxu0 0.0
        %2045 = vmatprep.subr.mxu0 0.0
        %2046 = vmatpush2.msra.mxu0 0.0
        %2047 = vmatprep.subr.mxu0 0.0
        %2048 = vmatpush2.msra.mxu0 0.0
        %2049 = vmatprep.subr.mxu0 0.0
        %2050 = vmatpush2.msra.mxu0 0.0
        %2051 = vmatprep.subr.mxu0 0.0
        %2052 = vmatpush2.msra.mxu0 0.0
        %2053 = vmatprep.subr.mxu0 0.0
        %2054 = vmatpush2.msra.mxu0 0.0
        %2055 = vmatprep.subr.mxu0 0.0
        %2056 = vmatpush2.msra.mxu0 0.0
        %2057 = vmatprep.subr.mxu0 0.0
        %2058 = vmatpush2.msra.mxu0 0.0
        %2059 = vmatprep.subr.mxu0 0.0
        %2060 = vmatpush2.msra.mxu0 0.0
        %2061 = vmatprep.subr.mxu0 0.0
        %2062 = vmatpush2.msra.mxu0 0.0
        %2063 = vmatprep.subr.mxu0 0.0
        %2064 = vmatpush2.msra.mxu0 0.0
        %2065 = vmatprep.subr.mxu0 0.0
        %2066 = vmatpush2.msra.mxu0 0.0
        %2067 = vmatprep.subr.mxu0 0.0
        %2068 = vmatpush2.msra.mxu0 0.0
        %2069 = vmatprep.mubr.f32.mxu0 0.0
        %2070 = vmatmul.mubr.f32.gmra.mxu0 %v1958
        %v2071 = vpop.f32.mrf.mxu0
        %v2072 = vadd.f32 0.0, %v2071
        %v2073 = vpop.f32.mrf.mxu0
        %2074 = vmatprep.mubr.f32.mxu0 0.0
        %2075 = vmatmul.mubr.f32.gmra.mxu0 %v1961
        %v2076 = vpop.f32.mrf.mxu0
        %v2077 = vadd.f32 0.0, %v2076
        %v2078 = vpop.f32.mrf.mxu0
        %2079 = vmatprep.mubr.f32.mxu0 0.0
        %2080 = vmatmul.mubr.f32.gmra.mxu0 %v1964
        %v2081 = vpop.f32.mrf.mxu0
        %v2082 = vadd.f32 0.0, %v2081
        %v2083 = vpop.f32.mrf.mxu0
        %2084 = vmatprep.mubr.f32.mxu0 0.0
        %2085 = vmatmul.mubr.f32.gmra.mxu0 %v1967
        %v2086 = vpop.f32.mrf.mxu0
        %v2087 = vadd.f32 0.0, %v2086
        %v2088 = vpop.f32.mrf.mxu0
        %2089 = vmatprep.mubr.f32.mxu0 0.0
        %2090 = vmatmul.mubr.f32.gmra.mxu0 %v1970
        %v2091 = vpop.f32.mrf.mxu0
        %v2092 = vadd.f32 0.0, %v2091
        %v2093 = vpop.f32.mrf.mxu0
        %2094 = vmatprep.mubr.f32.mxu0 0.0
        %2095 = vmatmul.mubr.f32.gmra.mxu0 %v1973
        %v2096 = vpop.f32.mrf.mxu0
        %v2097 = vadd.f32 0.0, %v2096
        %v2098 = vpop.f32.mrf.mxu0
        %2099 = vmatprep.mubr.f32.mxu0 0.0
        %2100 = vmatmul.mubr.f32.gmra.mxu0 %v1976
        %v2101 = vpop.f32.mrf.mxu0
        %v2102 = vadd.f32 0.0, %v2101
        %v2103 = vpop.f32.mrf.mxu0
        %2104 = vmatprep.mubr.f32.mxu0 0.0
        %2105 = vmatmul.mubr.f32.gmra.mxu0 %v1979
        %v2106 = vpop.f32.mrf.mxu0
        %v2107 = vadd.f32 0.0, %v2106
        %v2108 = vpop.f32.mrf.mxu0
        %2109 = vmatprep.mubr.f32.mxu0 0.0
        %2110 = vmatmul.mubr.f32.gmra.mxu0 %v1982
        %v2111 = vpop.f32.mrf.mxu0
        %v2112 = vadd.f32 0.0, %v2111
        %v2113 = vpop.f32.mrf.mxu0
        %2114 = vmatprep.mubr.f32.mxu0 0.0
        %2115 = vmatmul.mubr.f32.gmra.mxu0 %v1985
        %v2116 = vpop.f32.mrf.mxu0
        %v2117 = vadd.f32 0.0, %v2116
        %v2118 = vpop.f32.mrf.mxu0
        %2119 = vmatprep.mubr.f32.mxu0 0.0
        %2120 = vmatmul.mubr.f32.gmra.mxu0 %v1988
        %v2121 = vpop.f32.mrf.mxu0
        %v2122 = vadd.f32 0.0, %v2121
        %v2123 = vpop.f32.mrf.mxu0
        %2124 = vmatprep.mubr.f32.mxu0 0.0
        %2125 = vmatmul.mubr.f32.gmra.mxu0 %v1991
        %v2126 = vpop.f32.mrf.mxu0
        %v2127 = vadd.f32 0.0, %v2126
        %v2128 = vpop.f32.mrf.mxu0
        %2129 = vmatprep.mubr.f32.mxu0 0.0
        %2130 = vmatmul.mubr.f32.gmra.mxu0 %v1994
        %v2131 = vpop.f32.mrf.mxu0
        %v2132 = vadd.f32 0.0, %v2131
        %v2133 = vpop.f32.mrf.mxu0
        %2134 = vmatprep.mubr.f32.mxu0 0.0
        %2135 = vmatmul.mubr.f32.gmra.mxu0 %v1997
        %v2136 = vpop.f32.mrf.mxu0
        %v2137 = vadd.f32 0.0, %v2136
        %v2138 = vpop.f32.mrf.mxu0
        %2139 = vmatprep.mubr.f32.mxu0 0.0
        %2140 = vmatmul.mubr.f32.gmra.mxu0 %v2000
        %v2141 = vpop.f32.mrf.mxu0
        %v2142 = vadd.f32 0.0, %v2141
        %v2143 = vpop.f32.mrf.mxu0
        %2144 = vmatprep.mubr.f32.mxu0 0.0
        %2145 = vmatmul.mubr.f32.gmra.mxu0 %v2003
        %v2146 = vpop.f32.mrf.mxu0
        %v2147 = vadd.f32 0.0, %v2146
        %v2148 = vpop.f32.mrf.mxu0
        %2149 = vdwg.mxu0
        %v2150 = vld [vmem:[%s1527] sm:$0xff]
        %v2151 = vld [vmem:[%s1527 + $0x8] sm:$0xff]
        %v2152 = vld [vmem:[%s1527 + $0x10] sm:$0xff]
        %v2153 = vld [vmem:[%s1527 + $0x18] sm:$0xff]
        %v2154 = vld [vmem:[%s1527 + $0x20] sm:$0xff]
        %v2155 = vld [vmem:[%s1527 + $0x28] sm:$0xff]
        %v2156 = vld [vmem:[%s1527 + $0x30] sm:$0xff]
        %v2157 = vld [vmem:[%s1527 + $0x38] sm:$0xff]
        %v2158 = vld [vmem:[%s1532] sm:$0xff]
        %v2159 = vld [vmem:[%s1532 + $0x8] sm:$0xff]
        %v2160 = vld [vmem:[%s1532 + $0x10] sm:$0xff]
        %v2161 = vld [vmem:[%s1532 + $0x18] sm:$0xff]
        %v2162 = vld [vmem:[%s1532 + $0x20] sm:$0xff]
        %v2163 = vld [vmem:[%s1532 + $0x28] sm:$0xff]
        %v2164 = vld [vmem:[%s1532 + $0x30] sm:$0xff]
        %v2165 = vld [vmem:[%s1532 + $0x38] sm:$0xff]
        %vm2166 = vcmask 261120
        %v2168 = vsel %vm2166, %v2072, 0
        %v2171 = vsel %vm2166, %v2077, 0
        %v2174 = vsel %vm2166, %v2082, 0
        %v2177 = vsel %vm2166, %v2087, 0
        %v2180 = vsel %vm2166, %v2092, 0
        %v2183 = vsel %vm2166, %v2097, 0
        %v2186 = vsel %vm2166, %v2102, 0
        %v2189 = vsel %vm2166, %v2107, 0
        %v2192 = vsel %vm2166, %v2112, 0
        %v2195 = vsel %vm2166, %v2117, 0
        %v2198 = vsel %vm2166, %v2122, 0
        %v2201 = vsel %vm2166, %v2127, 0
        %v2204 = vsel %vm2166, %v2132, 0
        %v2207 = vsel %vm2166, %v2137, 0
        %v2210 = vsel %vm2166, %v2142, 0
        %v2213 = vsel %vm2166, %v2147, 0
        %2215 = vmatprep.subr.mxu0 0.0
        %2216 = vmatpush1.msra.mxu0 0.0
        %2217 = vmatprep.subr.mxu0 0.0
        %2218 = vmatpush1.msra.mxu0 0.0
        %2219 = vmatprep.subr.mxu0 0.0
        %2220 = vmatpush1.msra.mxu0 0.0
        %2221 = vmatprep.subr.mxu0 0.0
        %2222 = vmatpush1.msra.mxu0 0.0
        %2223 = vmatprep.subr.mxu0 0.0
        %2224 = vmatpush1.msra.mxu0 0.0
        %2225 = vmatprep.subr.mxu0 0.0
        %2226 = vmatpush1.msra.mxu0 0.0
        %2227 = vmatprep.subr.mxu0 0.0
        %2228 = vmatpush1.msra.mxu0 0.0
        %2229 = vmatprep.subr.mxu0 0.0
        %2230 = vmatpush1.msra.mxu0 0.0
        %2231 = vmatprep.subr.mxu0 0.0
        %2232 = vmatpush1.msra.mxu0 0.0
        %2233 = vmatprep.subr.mxu0 0.0
        %2234 = vmatpush1.msra.mxu0 0.0
        %2235 = vmatprep.subr.mxu0 0.0
        %2236 = vmatpush1.msra.mxu0 0.0
        %2237 = vmatprep.subr.mxu0 0.0
        %2238 = vmatpush1.msra.mxu0 0.0
        %2239 = vmatprep.subr.mxu0 %v2165
        %2240 = vmatpush1.msra.mxu0 %v2164
        %2241 = vmatprep.subr.mxu0 %v2163
        %2242 = vmatpush1.msra.mxu0 %v2162
        %2243 = vmatprep.subr.mxu0 %v2161
        %2244 = vmatpush1.msra.mxu0 %v2160
        %2245 = vmatprep.subr.mxu0 %v2159
        %2246 = vmatpush1.msra.mxu0 %v2158
        %2247 = vmatprep.subr.mxu0 0.0
        %2248 = vmatpush2.msra.mxu0 0.0
        %2249 = vmatprep.subr.mxu0 0.0
        %2250 = vmatpush2.msra.mxu0 0.0
        %2251 = vmatprep.subr.mxu0 0.0
        %2252 = vmatpush2.msra.mxu0 0.0
        %2253 = vmatprep.subr.mxu0 0.0
        %2254 = vmatpush2.msra.mxu0 0.0
        %2255 = vmatprep.subr.mxu0 0.0
        %2256 = vmatpush2.msra.mxu0 0.0
        %2257 = vmatprep.subr.mxu0 0.0
        %2258 = vmatpush2.msra.mxu0 0.0
        %2259 = vmatprep.subr.mxu0 0.0
        %2260 = vmatpush2.msra.mxu0 0.0
        %2261 = vmatprep.subr.mxu0 0.0
        %2262 = vmatpush2.msra.mxu0 0.0
        %2263 = vmatprep.subr.mxu0 0.0
        %2264 = vmatpush2.msra.mxu0 0.0
        %2265 = vmatprep.subr.mxu0 0.0
        %2266 = vmatpush2.msra.mxu0 0.0
        %2267 = vmatprep.subr.mxu0 0.0
        %2268 = vmatpush2.msra.mxu0 0.0
        %2269 = vmatprep.subr.mxu0 0.0
        %2270 = vmatpush2.msra.mxu0 0.0
        %2271 = vmatprep.subr.mxu0 0.0
        %2272 = vmatpush2.msra.mxu0 0.0
        %2273 = vmatprep.subr.mxu0 0.0
        %2274 = vmatpush2.msra.mxu0 0.0
        %2275 = vmatprep.subr.mxu0 0.0
        %2276 = vmatpush2.msra.mxu0 0.0
        %2277 = vmatprep.subr.mxu0 0.0
        %2278 = vmatpush2.msra.mxu0 0.0
        %2279 = vmatprep.mubr.f32.mxu0 0.0
        %2280 = vmatmul.mubr.f32.gmra.mxu0 %v2168
        %v2281 = vpop.f32.mrf.mxu0
        %v2282 = vadd.f32 0.0, %v2281
        %v2283 = vpop.f32.mrf.mxu0
        %v2284 = vadd.f32 0.0, %v2283
        %2285 = vmatprep.mubr.f32.mxu0 0.0
        %2286 = vmatmul.mubr.f32.gmra.mxu0 %v2171
        %v2287 = vpop.f32.mrf.mxu0
        %v2288 = vadd.f32 0.0, %v2287
        %v2289 = vpop.f32.mrf.mxu0
        %v2290 = vadd.f32 0.0, %v2289
        %2291 = vmatprep.mubr.f32.mxu0 0.0
        %2292 = vmatmul.mubr.f32.gmra.mxu0 %v2174
        %v2293 = vpop.f32.mrf.mxu0
        %v2294 = vadd.f32 0.0, %v2293
        %v2295 = vpop.f32.mrf.mxu0
        %v2296 = vadd.f32 0.0, %v2295
        %2297 = vmatprep.mubr.f32.mxu0 0.0
        %2298 = vmatmul.mubr.f32.gmra.mxu0 %v2177
        %v2299 = vpop.f32.mrf.mxu0
        %v2300 = vadd.f32 0.0, %v2299
        %v2301 = vpop.f32.mrf.mxu0
        %v2302 = vadd.f32 0.0, %v2301
        %2303 = vmatprep.mubr.f32.mxu0 0.0
        %2304 = vmatmul.mubr.f32.gmra.mxu0 %v2180
        %v2305 = vpop.f32.mrf.mxu0
        %v2306 = vadd.f32 0.0, %v2305
        %v2307 = vpop.f32.mrf.mxu0
        %v2308 = vadd.f32 0.0, %v2307
        %2309 = vmatprep.mubr.f32.mxu0 0.0
        %2310 = vmatmul.mubr.f32.gmra.mxu0 %v2183
        %v2311 = vpop.f32.mrf.mxu0
        %v2312 = vadd.f32 0.0, %v2311
        %v2313 = vpop.f32.mrf.mxu0
        %v2314 = vadd.f32 0.0, %v2313
        %2315 = vmatprep.mubr.f32.mxu0 0.0
        %2316 = vmatmul.mubr.f32.gmra.mxu0 %v2186
        %v2317 = vpop.f32.mrf.mxu0
        %v2318 = vadd.f32 0.0, %v2317
        %v2319 = vpop.f32.mrf.mxu0
        %v2320 = vadd.f32 0.0, %v2319
        %2321 = vmatprep.mubr.f32.mxu0 0.0
        %2322 = vmatmul.mubr.f32.gmra.mxu0 %v2189
        %v2323 = vpop.f32.mrf.mxu0
        %v2324 = vadd.f32 0.0, %v2323
        %v2325 = vpop.f32.mrf.mxu0
        %v2326 = vadd.f32 0.0, %v2325
        %2327 = vmatprep.mubr.f32.mxu0 0.0
        %2328 = vmatmul.mubr.f32.gmra.mxu0 %v2192
        %v2329 = vpop.f32.mrf.mxu0
        %v2330 = vadd.f32 0.0, %v2329
        %v2331 = vpop.f32.mrf.mxu0
        %v2332 = vadd.f32 0.0, %v2331
        %2333 = vmatprep.mubr.f32.mxu0 0.0
        %2334 = vmatmul.mubr.f32.gmra.mxu0 %v2195
        %v2335 = vpop.f32.mrf.mxu0
        %v2336 = vadd.f32 0.0, %v2335
        %v2337 = vpop.f32.mrf.mxu0
        %v2338 = vadd.f32 0.0, %v2337
        %2339 = vmatprep.mubr.f32.mxu0 0.0
        %2340 = vmatmul.mubr.f32.gmra.mxu0 %v2198
        %v2341 = vpop.f32.mrf.mxu0
        %v2342 = vadd.f32 0.0, %v2341
        %v2343 = vpop.f32.mrf.mxu0
        %v2344 = vadd.f32 0.0, %v2343
        %2345 = vmatprep.mubr.f32.mxu0 0.0
        %2346 = vmatmul.mubr.f32.gmra.mxu0 %v2201
        %v2347 = vpop.f32.mrf.mxu0
        %v2348 = vadd.f32 0.0, %v2347
        %v2349 = vpop.f32.mrf.mxu0
        %v2350 = vadd.f32 0.0, %v2349
        %2351 = vmatprep.mubr.f32.mxu0 0.0
        %2352 = vmatmul.mubr.f32.gmra.mxu0 %v2204
        %v2353 = vpop.f32.mrf.mxu0
        %v2354 = vadd.f32 0.0, %v2353
        %v2355 = vpop.f32.mrf.mxu0
        %v2356 = vadd.f32 0.0, %v2355
        %2357 = vmatprep.mubr.f32.mxu0 0.0
        %2358 = vmatmul.mubr.f32.gmra.mxu0 %v2207
        %v2359 = vpop.f32.mrf.mxu0
        %v2360 = vadd.f32 0.0, %v2359
        %v2361 = vpop.f32.mrf.mxu0
        %v2362 = vadd.f32 0.0, %v2361
        %2363 = vmatprep.mubr.f32.mxu0 0.0
        %2364 = vmatmul.mubr.f32.gmra.mxu0 %v2210
        %v2365 = vpop.f32.mrf.mxu0
        %v2366 = vadd.f32 0.0, %v2365
        %v2367 = vpop.f32.mrf.mxu0
        %v2368 = vadd.f32 0.0, %v2367
        %2369 = vmatprep.mubr.f32.mxu0 0.0
        %2370 = vmatmul.mubr.f32.gmra.mxu0 %v2213
        %v2371 = vpop.f32.mrf.mxu0
        %v2372 = vadd.f32 0.0, %v2371
        %v2373 = vpop.f32.mrf.mxu0
        %v2374 = vadd.f32 0.0, %v2373
        %2375 = vdwg.mxu0
        %v2377 = vsel %vm2166, %v1863, 0
        %v2380 = vsel %vm2166, %v1868, 0
        %v2383 = vsel %vm2166, %v1873, 0
        %v2386 = vsel %vm2166, %v1878, 0
        %v2389 = vsel %vm2166, %v1883, 0
        %v2392 = vsel %vm2166, %v1888, 0
        %v2395 = vsel %vm2166, %v1893, 0
        %v2398 = vsel %vm2166, %v1898, 0
        %v2401 = vsel %vm2166, %v1903, 0
        %v2404 = vsel %vm2166, %v1908, 0
        %v2407 = vsel %vm2166, %v1913, 0
        %v2410 = vsel %vm2166, %v1918, 0
        %v2413 = vsel %vm2166, %v1923, 0
        %v2416 = vsel %vm2166, %v1928, 0
        %v2419 = vsel %vm2166, %v1933, 0
        %v2422 = vsel %vm2166, %v1938, 0
        %2424 = vmatprep.subr.mxu0 0.0
        %2425 = vmatpush1.msra.mxu0 0.0
        %2426 = vmatprep.subr.mxu0 0.0
        %2427 = vmatpush1.msra.mxu0 0.0
        %2428 = vmatprep.subr.mxu0 0.0
        %2429 = vmatpush1.msra.mxu0 0.0
        %2430 = vmatprep.subr.mxu0 0.0
        %2431 = vmatpush1.msra.mxu0 0.0
        %2432 = vmatprep.subr.mxu0 0.0
        %2433 = vmatpush1.msra.mxu0 0.0
        %2434 = vmatprep.subr.mxu0 0.0
        %2435 = vmatpush1.msra.mxu0 0.0
        %2436 = vmatprep.subr.mxu0 0.0
        %2437 = vmatpush1.msra.mxu0 0.0
        %2438 = vmatprep.subr.mxu0 0.0
        %2439 = vmatpush1.msra.mxu0 0.0
        %2440 = vmatprep.subr.mxu0 0.0
        %2441 = vmatpush1.msra.mxu0 0.0
        %2442 = vmatprep.subr.mxu0 0.0
        %2443 = vmatpush1.msra.mxu0 0.0
        %2444 = vmatprep.subr.mxu0 0.0
        %2445 = vmatpush1.msra.mxu0 0.0
        %2446 = vmatprep.subr.mxu0 0.0
        %2447 = vmatpush1.msra.mxu0 0.0
        %2448 = vmatprep.subr.mxu0 %v2157
        %2449 = vmatpush1.msra.mxu0 %v2156
        %2450 = vmatprep.subr.mxu0 %v2155
        %2451 = vmatpush1.msra.mxu0 %v2154
        %2452 = vmatprep.subr.mxu0 %v2153
        %2453 = vmatpush1.msra.mxu0 %v2152
        %2454 = vmatprep.subr.mxu0 %v2151
        %2455 = vmatpush1.msra.mxu0 %v2150
        %2456 = vmatprep.subr.mxu0 0.0
        %2457 = vmatpush2.msra.mxu0 0.0
        %2458 = vmatprep.subr.mxu0 0.0
        %2459 = vmatpush2.msra.mxu0 0.0
        %2460 = vmatprep.subr.mxu0 0.0
        %2461 = vmatpush2.msra.mxu0 0.0
        %2462 = vmatprep.subr.mxu0 0.0
        %2463 = vmatpush2.msra.mxu0 0.0
        %2464 = vmatprep.subr.mxu0 0.0
        %2465 = vmatpush2.msra.mxu0 0.0
        %2466 = vmatprep.subr.mxu0 0.0
        %2467 = vmatpush2.msra.mxu0 0.0
        %2468 = vmatprep.subr.mxu0 0.0
        %2469 = vmatpush2.msra.mxu0 0.0
        %2470 = vmatprep.subr.mxu0 0.0
        %2471 = vmatpush2.msra.mxu0 0.0
        %2472 = vmatprep.subr.mxu0 0.0
        %2473 = vmatpush2.msra.mxu0 0.0
        %2474 = vmatprep.subr.mxu0 0.0
        %2475 = vmatpush2.msra.mxu0 0.0
        %2476 = vmatprep.subr.mxu0 0.0
        %2477 = vmatpush2.msra.mxu0 0.0
        %2478 = vmatprep.subr.mxu0 0.0
        %2479 = vmatpush2.msra.mxu0 0.0
        %2480 = vmatprep.subr.mxu0 0.0
        %2481 = vmatpush2.msra.mxu0 0.0
        %2482 = vmatprep.subr.mxu0 0.0
        %2483 = vmatpush2.msra.mxu0 0.0
        %2484 = vmatprep.subr.mxu0 0.0
        %2485 = vmatpush2.msra.mxu0 0.0
        %2486 = vmatprep.subr.mxu0 0.0
        %2487 = vmatpush2.msra.mxu0 0.0
        %2488 = vmatprep.mubr.f32.mxu0 0.0
        %2489 = vmatmul.mubr.f32.gmra.mxu0 %v2377
        %v2490 = vpop.f32.mrf.mxu0
        %v2491 = vadd.f32 %v2282, %v2490
        %v2492 = vpop.f32.mrf.mxu0
        %v2493 = vadd.f32 %v2284, %v2492
        %2494 = vmatprep.mubr.f32.mxu0 0.0
        %2495 = vmatmul.mubr.f32.gmra.mxu0 %v2380
        %v2496 = vpop.f32.mrf.mxu0
        %v2497 = vadd.f32 %v2288, %v2496
        %v2498 = vpop.f32.mrf.mxu0
        %v2499 = vadd.f32 %v2290, %v2498
        %2500 = vmatprep.mubr.f32.mxu0 0.0
        %2501 = vmatmul.mubr.f32.gmra.mxu0 %v2383
        %v2502 = vpop.f32.mrf.mxu0
        %v2503 = vadd.f32 %v2294, %v2502
        %v2504 = vpop.f32.mrf.mxu0
        %v2505 = vadd.f32 %v2296, %v2504
        %2506 = vmatprep.mubr.f32.mxu0 0.0
        %2507 = vmatmul.mubr.f32.gmra.mxu0 %v2386
        %v2508 = vpop.f32.mrf.mxu0
        %v2509 = vadd.f32 %v2300, %v2508
        %v2510 = vpop.f32.mrf.mxu0
        %v2511 = vadd.f32 %v2302, %v2510
        %2512 = vmatprep.mubr.f32.mxu0 0.0
        %2513 = vmatmul.mubr.f32.gmra.mxu0 %v2389
        %v2514 = vpop.f32.mrf.mxu0
        %v2515 = vadd.f32 %v2306, %v2514
        %v2516 = vpop.f32.mrf.mxu0
        %v2517 = vadd.f32 %v2308, %v2516
        %2518 = vmatprep.mubr.f32.mxu0 0.0
        %2519 = vmatmul.mubr.f32.gmra.mxu0 %v2392
        %v2520 = vpop.f32.mrf.mxu0
        %v2521 = vadd.f32 %v2312, %v2520
        %v2522 = vpop.f32.mrf.mxu0
        %v2523 = vadd.f32 %v2314, %v2522
        %2524 = vmatprep.mubr.f32.mxu0 0.0
        %2525 = vmatmul.mubr.f32.gmra.mxu0 %v2395
        %v2526 = vpop.f32.mrf.mxu0
        %v2527 = vadd.f32 %v2318, %v2526
        %v2528 = vpop.f32.mrf.mxu0
        %v2529 = vadd.f32 %v2320, %v2528
        %2530 = vmatprep.mubr.f32.mxu0 0.0
        %2531 = vmatmul.mubr.f32.gmra.mxu0 %v2398
        %v2532 = vpop.f32.mrf.mxu0
        %v2533 = vadd.f32 %v2324, %v2532
        %v2534 = vpop.f32.mrf.mxu0
        %v2535 = vadd.f32 %v2326, %v2534
        %2536 = vmatprep.mubr.f32.mxu0 0.0
        %2537 = vmatmul.mubr.f32.gmra.mxu0 %v2401
        %v2538 = vpop.f32.mrf.mxu0
        %v2539 = vadd.f32 %v2330, %v2538
        %v2540 = vpop.f32.mrf.mxu0
        %v2541 = vadd.f32 %v2332, %v2540
        %2542 = vmatprep.mubr.f32.mxu0 0.0
        %2543 = vmatmul.mubr.f32.gmra.mxu0 %v2404
        %v2544 = vpop.f32.mrf.mxu0
        %v2545 = vadd.f32 %v2336, %v2544
        %v2546 = vpop.f32.mrf.mxu0
        %v2547 = vadd.f32 %v2338, %v2546
        %2548 = vmatprep.mubr.f32.mxu0 0.0
        %2549 = vmatmul.mubr.f32.gmra.mxu0 %v2407
        %v2550 = vpop.f32.mrf.mxu0
        %v2551 = vadd.f32 %v2342, %v2550
        %v2552 = vpop.f32.mrf.mxu0
        %v2553 = vadd.f32 %v2344, %v2552
        %2554 = vmatprep.mubr.f32.mxu0 0.0
        %2555 = vmatmul.mubr.f32.gmra.mxu0 %v2410
        %v2556 = vpop.f32.mrf.mxu0
        %v2557 = vadd.f32 %v2348, %v2556
        %v2558 = vpop.f32.mrf.mxu0
        %v2559 = vadd.f32 %v2350, %v2558
        %2560 = vmatprep.mubr.f32.mxu0 0.0
        %2561 = vmatmul.mubr.f32.gmra.mxu0 %v2413
        %v2562 = vpop.f32.mrf.mxu0
        %v2563 = vadd.f32 %v2354, %v2562
        %v2564 = vpop.f32.mrf.mxu0
        %v2565 = vadd.f32 %v2356, %v2564
        %2566 = vmatprep.mubr.f32.mxu0 0.0
        %2567 = vmatmul.mubr.f32.gmra.mxu0 %v2416
        %v2568 = vpop.f32.mrf.mxu0
        %v2569 = vadd.f32 %v2360, %v2568
        %v2570 = vpop.f32.mrf.mxu0
        %v2571 = vadd.f32 %v2362, %v2570
        %2572 = vmatprep.mubr.f32.mxu0 0.0
        %2573 = vmatmul.mubr.f32.gmra.mxu0 %v2419
        %v2574 = vpop.f32.mrf.mxu0
        %v2575 = vadd.f32 %v2366, %v2574
        %v2576 = vpop.f32.mrf.mxu0
        %v2577 = vadd.f32 %v2368, %v2576
        %2578 = vmatprep.mubr.f32.mxu0 0.0
        %2579 = vmatmul.mubr.f32.gmra.mxu0 %v2422
        %v2580 = vpop.f32.mrf.mxu0
        %v2581 = vadd.f32 %v2372, %v2580
        %v2582 = vpop.f32.mrf.mxu0
        %v2583 = vadd.f32 %v2374, %v2582
        %2584 = vdwg.mxu0
        %v2585 = vld [vmem:[%s1537] sm:$0xff]
        %v2586 = vld [vmem:[%s1537 + $0x8] sm:$0xff]
        %v2587 = vld [vmem:[%s1537 + $0x10] sm:$0xff]
        %v2588 = vld [vmem:[%s1537 + $0x18] sm:$0xff]
        %vm2589 = vcmask 130048
        %v2591 = vsel %vm2589, %v1715, 0
        %v2594 = vsel %vm2589, %v1716, 0
        %v2597 = vsel %vm2589, %v1717, 0
        %v2600 = vsel %vm2589, %v1718, 0
        %v2603 = vsel %vm2589, %v1719, 0
        %v2606 = vsel %vm2589, %v1720, 0
        %v2609 = vsel %vm2589, %v1721, 0
        %v2612 = vsel %vm2589, %v1722, 0
        %v2615 = vsel %vm2589, %v1723, 0
        %v2618 = vsel %vm2589, %v1724, 0
        %v2621 = vsel %vm2589, %v1725, 0
        %v2624 = vsel %vm2589, %v1726, 0
        %v2627 = vsel %vm2589, %v1727, 0
        %v2630 = vsel %vm2589, %v1728, 0
        %v2633 = vsel %vm2589, %v1729, 0
        %v2636 = vsel %vm2589, %v1730, 0
        %2638 = vmatprep.subr.mxu0 0.0
        %2639 = vmatpush1.msra.mxu0 0.0
        %2640 = vmatprep.subr.mxu0 0.0
        %2641 = vmatpush1.msra.mxu0 0.0
        %2642 = vmatprep.subr.mxu0 0.0
        %2643 = vmatpush1.msra.mxu0 0.0
        %2644 = vmatprep.subr.mxu0 0.0
        %2645 = vmatpush1.msra.mxu0 0.0
        %2646 = vmatprep.subr.mxu0 0.0
        %2647 = vmatpush1.msra.mxu0 0.0
        %2648 = vmatprep.subr.mxu0 0.0
        %2649 = vmatpush1.msra.mxu0 0.0
        %2650 = vmatprep.subr.mxu0 0.0
        %2651 = vmatpush1.msra.mxu0 0.0
        %2652 = vmatprep.subr.mxu0 0.0
        %2653 = vmatpush1.msra.mxu0 0.0
        %2654 = vmatprep.subr.mxu0 0.0
        %2655 = vmatpush1.msra.mxu0 0.0
        %2656 = vmatprep.subr.mxu0 0.0
        %2657 = vmatpush1.msra.mxu0 0.0
        %2658 = vmatprep.subr.mxu0 0.0
        %2659 = vmatpush1.msra.mxu0 0.0
        %2660 = vmatprep.subr.mxu0 0.0
        %2661 = vmatpush1.msra.mxu0 0.0
        %2662 = vmatprep.subr.mxu0 0.0
        %2663 = vmatpush1.msra.mxu0 0.0
        %2664 = vmatprep.subr.mxu0 0.0
        %2665 = vmatpush1.msra.mxu0 0.0
        %2666 = vmatprep.subr.mxu0 %v2588
        %2667 = vmatpush1.msra.mxu0 %v2587
        %2668 = vmatprep.subr.mxu0 %v2586
        %2669 = vmatpush1.msra.mxu0 %v2585
        %2670 = vmatprep.subr.mxu0 0.0
        %2671 = vmatpush2.msra.mxu0 0.0
        %2672 = vmatprep.subr.mxu0 0.0
        %2673 = vmatpush2.msra.mxu0 0.0
        %2674 = vmatprep.subr.mxu0 0.0
        %2675 = vmatpush2.msra.mxu0 0.0
        %2676 = vmatprep.subr.mxu0 0.0
        %2677 = vmatpush2.msra.mxu0 0.0
        %2678 = vmatprep.subr.mxu0 0.0
        %2679 = vmatpush2.msra.mxu0 0.0
        %2680 = vmatprep.subr.mxu0 0.0
        %2681 = vmatpush2.msra.mxu0 0.0
        %2682 = vmatprep.subr.mxu0 0.0
        %2683 = vmatpush2.msra.mxu0 0.0
        %2684 = vmatprep.subr.mxu0 0.0
        %2685 = vmatpush2.msra.mxu0 0.0
        %2686 = vmatprep.subr.mxu0 0.0
        %2687 = vmatpush2.msra.mxu0 0.0
        %2688 = vmatprep.subr.mxu0 0.0
        %2689 = vmatpush2.msra.mxu0 0.0
        %2690 = vmatprep.subr.mxu0 0.0
        %2691 = vmatpush2.msra.mxu0 0.0
        %2692 = vmatprep.subr.mxu0 0.0
        %2693 = vmatpush2.msra.mxu0 0.0
        %2694 = vmatprep.subr.mxu0 0.0
        %2695 = vmatpush2.msra.mxu0 0.0
        %2696 = vmatprep.subr.mxu0 0.0
        %2697 = vmatpush2.msra.mxu0 0.0
        %2698 = vmatprep.subr.mxu0 0.0
        %2699 = vmatpush2.msra.mxu0 0.0
        %2700 = vmatprep.subr.mxu0 0.0
        %2701 = vmatpush2.msra.mxu0 0.0
        %2702 = vmatprep.mubr.f32.mxu0 0.0
        %2703 = vmatmul.mubr.f32.gmra.mxu0 %v2591
        %v2704 = vpop.f32.mrf.mxu0
        %v2705 = vadd.f32 0.0, %v2704
        %v2706 = vpop.f32.mrf.mxu0
        %v2707 = vadd.f32 0.0, %v2706
        %2708 = vmatprep.mubr.f32.mxu0 0.0
        %2709 = vmatmul.mubr.f32.gmra.mxu0 %v2594
        %v2710 = vpop.f32.mrf.mxu0
        %v2711 = vadd.f32 0.0, %v2710
        %v2712 = vpop.f32.mrf.mxu0
        %v2713 = vadd.f32 0.0, %v2712
        %2714 = vmatprep.mubr.f32.mxu0 0.0
        %2715 = vmatmul.mubr.f32.gmra.mxu0 %v2597
        %v2716 = vpop.f32.mrf.mxu0
        %v2717 = vadd.f32 0.0, %v2716
        %v2718 = vpop.f32.mrf.mxu0
        %v2719 = vadd.f32 0.0, %v2718
        %2720 = vmatprep.mubr.f32.mxu0 0.0
        %2721 = vmatmul.mubr.f32.gmra.mxu0 %v2600
        %v2722 = vpop.f32.mrf.mxu0
        %v2723 = vadd.f32 0.0, %v2722
        %v2724 = vpop.f32.mrf.mxu0
        %v2725 = vadd.f32 0.0, %v2724
        %2726 = vmatprep.mubr.f32.mxu0 0.0
        %2727 = vmatmul.mubr.f32.gmra.mxu0 %v2603
        %v2728 = vpop.f32.mrf.mxu0
        %v2729 = vadd.f32 0.0, %v2728
        %v2730 = vpop.f32.mrf.mxu0
        %v2731 = vadd.f32 0.0, %v2730
        %2732 = vmatprep.mubr.f32.mxu0 0.0
        %2733 = vmatmul.mubr.f32.gmra.mxu0 %v2606
        %v2734 = vpop.f32.mrf.mxu0
        %v2735 = vadd.f32 0.0, %v2734
        %v2736 = vpop.f32.mrf.mxu0
        %v2737 = vadd.f32 0.0, %v2736
        %2738 = vmatprep.mubr.f32.mxu0 0.0
        %2739 = vmatmul.mubr.f32.gmra.mxu0 %v2609
        %v2740 = vpop.f32.mrf.mxu0
        %v2741 = vadd.f32 0.0, %v2740
        %v2742 = vpop.f32.mrf.mxu0
        %v2743 = vadd.f32 0.0, %v2742
        %2744 = vmatprep.mubr.f32.mxu0 0.0
        %2745 = vmatmul.mubr.f32.gmra.mxu0 %v2612
        %v2746 = vpop.f32.mrf.mxu0
        %v2747 = vadd.f32 0.0, %v2746
        %v2748 = vpop.f32.mrf.mxu0
        %v2749 = vadd.f32 0.0, %v2748
        %2750 = vmatprep.mubr.f32.mxu0 0.0
        %2751 = vmatmul.mubr.f32.gmra.mxu0 %v2615
        %v2752 = vpop.f32.mrf.mxu0
        %v2753 = vadd.f32 0.0, %v2752
        %v2754 = vpop.f32.mrf.mxu0
        %v2755 = vadd.f32 0.0, %v2754
        %2756 = vmatprep.mubr.f32.mxu0 0.0
        %2757 = vmatmul.mubr.f32.gmra.mxu0 %v2618
        %v2758 = vpop.f32.mrf.mxu0
        %v2759 = vadd.f32 0.0, %v2758
        %v2760 = vpop.f32.mrf.mxu0
        %v2761 = vadd.f32 0.0, %v2760
        %2762 = vmatprep.mubr.f32.mxu0 0.0
        %2763 = vmatmul.mubr.f32.gmra.mxu0 %v2621
        %v2764 = vpop.f32.mrf.mxu0
        %v2765 = vadd.f32 0.0, %v2764
        %v2766 = vpop.f32.mrf.mxu0
        %v2767 = vadd.f32 0.0, %v2766
        %2768 = vmatprep.mubr.f32.mxu0 0.0
        %2769 = vmatmul.mubr.f32.gmra.mxu0 %v2624
        %v2770 = vpop.f32.mrf.mxu0
        %v2771 = vadd.f32 0.0, %v2770
        %v2772 = vpop.f32.mrf.mxu0
        %v2773 = vadd.f32 0.0, %v2772
        %2774 = vmatprep.mubr.f32.mxu0 0.0
        %2775 = vmatmul.mubr.f32.gmra.mxu0 %v2627
        %v2776 = vpop.f32.mrf.mxu0
        %v2777 = vadd.f32 0.0, %v2776
        %v2778 = vpop.f32.mrf.mxu0
        %v2779 = vadd.f32 0.0, %v2778
        %2780 = vmatprep.mubr.f32.mxu0 0.0
        %2781 = vmatmul.mubr.f32.gmra.mxu0 %v2630
        %v2782 = vpop.f32.mrf.mxu0
        %v2783 = vadd.f32 0.0, %v2782
        %v2784 = vpop.f32.mrf.mxu0
        %v2785 = vadd.f32 0.0, %v2784
        %2786 = vmatprep.mubr.f32.mxu0 0.0
        %2787 = vmatmul.mubr.f32.gmra.mxu0 %v2633
        %v2788 = vpop.f32.mrf.mxu0
        %v2789 = vadd.f32 0.0, %v2788
        %v2790 = vpop.f32.mrf.mxu0
        %v2791 = vadd.f32 0.0, %v2790
        %2792 = vmatprep.mubr.f32.mxu0 0.0
        %2793 = vmatmul.mubr.f32.gmra.mxu0 %v2636
        %v2794 = vpop.f32.mrf.mxu0
        %v2795 = vadd.f32 0.0, %v2794
        %v2796 = vpop.f32.mrf.mxu0
        %v2797 = vadd.f32 0.0, %v2796
        %2798 = vdwg.mxu0
        %v2799 = vadd.f32 %v2491, %v2705
        %v2800 = vadd.f32 %v2493, %v2707
        %v2801 = vadd.f32 %v2497, %v2711
        %v2802 = vadd.f32 %v2499, %v2713
        %v2803 = vadd.f32 %v2503, %v2717
        %v2804 = vadd.f32 %v2505, %v2719
        %v2805 = vadd.f32 %v2509, %v2723
        %v2806 = vadd.f32 %v2511, %v2725
        %v2807 = vadd.f32 %v2515, %v2729
        %v2808 = vadd.f32 %v2517, %v2731
        %v2809 = vadd.f32 %v2521, %v2735
        %v2810 = vadd.f32 %v2523, %v2737
        %v2811 = vadd.f32 %v2527, %v2741
        %v2812 = vadd.f32 %v2529, %v2743
        %v2813 = vadd.f32 %v2533, %v2747
        %v2814 = vadd.f32 %v2535, %v2749
        %v2815 = vadd.f32 %v2539, %v2753
        %v2816 = vadd.f32 %v2541, %v2755
        %v2817 = vadd.f32 %v2545, %v2759
        %v2818 = vadd.f32 %v2547, %v2761
        %v2819 = vadd.f32 %v2551, %v2765
        %v2820 = vadd.f32 %v2553, %v2767
        %v2821 = vadd.f32 %v2557, %v2771
        %v2822 = vadd.f32 %v2559, %v2773
        %v2823 = vadd.f32 %v2563, %v2777
        %v2824 = vadd.f32 %v2565, %v2779
        %v2825 = vadd.f32 %v2569, %v2783
        %v2826 = vadd.f32 %v2571, %v2785
        %v2827 = vadd.f32 %v2575, %v2789
        %v2828 = vadd.f32 %v2577, %v2791
        %v2829 = vadd.f32 %v2581, %v2795
        %v2830 = vadd.f32 %v2583, %v2797
        %v2831 = vld [vmem:[%s1501] sm:$0xff]
        %v2832 = vld [vmem:[%s1501 + $0x8] sm:$0xff]
        %v2833 = vld [vmem:[%s1501 + $0x10] sm:$0xff]
        %v2834 = vld [vmem:[%s1501 + $0x18] sm:$0xff]
        %v2835 = vld [vmem:[%s1501 + $0x20] sm:$0xff]
        %v2836 = vld [vmem:[%s1501 + $0x28] sm:$0xff]
        %v2837 = vld [vmem:[%s1501 + $0x30] sm:$0xff]
        %v2838 = vld [vmem:[%s1501 + $0x38] sm:$0xff]
        %v2839 = vld [vmem:[%s1501 + $0x40] sm:$0xff]
        %v2840 = vld [vmem:[%s1501 + $0x48] sm:$0xff]
        %v2841 = vld [vmem:[%s1501 + $0x50] sm:$0xff]
        %v2842 = vld [vmem:[%s1501 + $0x58] sm:$0xff]
        %v2843 = vld [vmem:[%s1501 + $0x60] sm:$0xff]
        %v2844 = vld [vmem:[%s1501 + $0x68] sm:$0xff]
        %v2845 = vld [vmem:[%s1501 + $0x70] sm:$0xff]
        %v2846 = vld [vmem:[%s1501 + $0x78] sm:$0xff]
        %v2847 = vld [vmem:[%s1541] sm:$0x3]
        %2849 = vset.pattern.permute.xlu0 0
        %2850 = vperm.xlu0 %2849, %v2831
        %v2851 = vpop.permute.xlu0 %2850
        %2854 = vset.pattern.permute.xlu0 0
        %2855 = vperm.xlu0 %2854, %v2832
        %v2856 = vpop.permute.xlu0 %2855
        %2859 = vset.pattern.permute.xlu0 0
        %2860 = vperm.xlu0 %2859, %v2833
        %v2861 = vpop.permute.xlu0 %2860
        %2864 = vset.pattern.permute.xlu0 0
        %2865 = vperm.xlu0 %2864, %v2834
        %v2866 = vpop.permute.xlu0 %2865
        %2869 = vset.pattern.permute.xlu0 0
        %2870 = vperm.xlu0 %2869, %v2835
        %v2871 = vpop.permute.xlu0 %2870
        %2874 = vset.pattern.permute.xlu0 0
        %2875 = vperm.xlu0 %2874, %v2836
        %v2876 = vpop.permute.xlu0 %2875
        %2879 = vset.pattern.permute.xlu0 0
        %2880 = vperm.xlu0 %2879, %v2837
        %v2881 = vpop.permute.xlu0 %2880
        %2884 = vset.pattern.permute.xlu0 0
        %2885 = vperm.xlu0 %2884, %v2838
        %v2886 = vpop.permute.xlu0 %2885
        %2889 = vset.pattern.permute.xlu0 0
        %2890 = vperm.xlu0 %2889, %v2839
        %v2891 = vpop.permute.xlu0 %2890
        %2894 = vset.pattern.permute.xlu0 0
        %2895 = vperm.xlu0 %2894, %v2840
        %v2896 = vpop.permute.xlu0 %2895
        %2899 = vset.pattern.permute.xlu0 0
        %2900 = vperm.xlu0 %2899, %v2841
        %v2901 = vpop.permute.xlu0 %2900
        %2904 = vset.pattern.permute.xlu0 0
        %2905 = vperm.xlu0 %2904, %v2842
        %v2906 = vpop.permute.xlu0 %2905
        %2909 = vset.pattern.permute.xlu0 0
        %2910 = vperm.xlu0 %2909, %v2843
        %v2911 = vpop.permute.xlu0 %2910
        %2914 = vset.pattern.permute.xlu0 0
        %2915 = vperm.xlu0 %2914, %v2844
        %v2916 = vpop.permute.xlu0 %2915
        %2919 = vset.pattern.permute.xlu0 0
        %2920 = vperm.xlu0 %2919, %v2845
        %v2921 = vpop.permute.xlu0 %2920
        %2924 = vset.pattern.permute.xlu0 0
        %2925 = vperm.xlu0 %2924, %v2846
        %v2926 = vpop.permute.xlu0 %2925
        %v2929 = vlaneseq
        %v2930 = vshrl.u32 %v2929, 7
        %v2931 = vsub.s32 0, %v2930
        %v2932 = vrot.slane %v2847, %v2931
        %v2933 = vlaneseq
        %v2934 = vshrl.u32 %v2933, 7
        %v2935 = vsub.s32 1, %v2934
        %v2936 = vrot.slane %v2847, %v2935
        %v2939 = vmul.f32 %v2851, %v2932
        %v2940 = vmul.f32 %v2851, %v2936
        %v2941 = vmul.f32 %v2856, %v2932
        %v2942 = vmul.f32 %v2856, %v2936
        %v2943 = vmul.f32 %v2861, %v2932
        %v2944 = vmul.f32 %v2861, %v2936
        %v2945 = vmul.f32 %v2866, %v2932
        %v2946 = vmul.f32 %v2866, %v2936
        %v2947 = vmul.f32 %v2871, %v2932
        %v2948 = vmul.f32 %v2871, %v2936
        %v2949 = vmul.f32 %v2876, %v2932
        %v2950 = vmul.f32 %v2876, %v2936
        %v2951 = vmul.f32 %v2881, %v2932
        %v2952 = vmul.f32 %v2881, %v2936
        %v2953 = vmul.f32 %v2886, %v2932
        %v2954 = vmul.f32 %v2886, %v2936
        %v2955 = vmul.f32 %v2891, %v2932
        %v2956 = vmul.f32 %v2891, %v2936
        %v2957 = vmul.f32 %v2896, %v2932
        %v2958 = vmul.f32 %v2896, %v2936
        %v2959 = vmul.f32 %v2901, %v2932
        %v2960 = vmul.f32 %v2901, %v2936
        %v2961 = vmul.f32 %v2906, %v2932
        %v2962 = vmul.f32 %v2906, %v2936
        %v2963 = vmul.f32 %v2911, %v2932
        %v2964 = vmul.f32 %v2911, %v2936
        %v2965 = vmul.f32 %v2916, %v2932
        %v2966 = vmul.f32 %v2916, %v2936
        %v2967 = vmul.f32 %v2921, %v2932
        %v2968 = vmul.f32 %v2921, %v2936
        %v2969 = vmul.f32 %v2926, %v2932
        %v2970 = vmul.f32 %v2926, %v2936
        %v2971 = vadd.f32 %v2799, %v2939
        %v2972 = vadd.f32 %v2800, %v2940
        %v2973 = vadd.f32 %v2801, %v2941
        %v2974 = vadd.f32 %v2802, %v2942
        %v2975 = vadd.f32 %v2803, %v2943
        %v2976 = vadd.f32 %v2804, %v2944
        %v2977 = vadd.f32 %v2805, %v2945
        %v2978 = vadd.f32 %v2806, %v2946
        %v2979 = vadd.f32 %v2807, %v2947
        %v2980 = vadd.f32 %v2808, %v2948
        %v2981 = vadd.f32 %v2809, %v2949
        %v2982 = vadd.f32 %v2810, %v2950
        %v2983 = vadd.f32 %v2811, %v2951
        %v2984 = vadd.f32 %v2812, %v2952
        %v2985 = vadd.f32 %v2813, %v2953
        %v2986 = vadd.f32 %v2814, %v2954
        %v2987 = vadd.f32 %v2815, %v2955
        %v2988 = vadd.f32 %v2816, %v2956
        %v2989 = vadd.f32 %v2817, %v2957
        %v2990 = vadd.f32 %v2818, %v2958
        %v2991 = vadd.f32 %v2819, %v2959
        %v2992 = vadd.f32 %v2820, %v2960
        %v2993 = vadd.f32 %v2821, %v2961
        %v2994 = vadd.f32 %v2822, %v2962
        %v2995 = vadd.f32 %v2823, %v2963
        %v2996 = vadd.f32 %v2824, %v2964
        %v2997 = vadd.f32 %v2825, %v2965
        %v2998 = vadd.f32 %v2826, %v2966
        %v2999 = vadd.f32 %v2827, %v2967
        %v3000 = vadd.f32 %v2828, %v2968
        %v3001 = vadd.f32 %v2829, %v2969
        %v3002 = vadd.f32 %v2830, %v2970
        %v3003 = vld [vmem:[%s1545] sm:$0x3]
        %v3005 = vlaneseq
        %v3006 = vshrl.u32 %v3005, 7
        %v3007 = vsub.s32 0, %v3006
        %v3008 = vrot.slane %v3003, %v3007
        %v3009 = vlaneseq
        %v3010 = vshrl.u32 %v3009, 7
        %v3011 = vsub.s32 1, %v3010
        %v3012 = vrot.slane %v3003, %v3011
        %v3015 = vadd.f32 %v2971, %v3008
        %v3016 = vadd.f32 %v2972, %v3012
        %v3017 = vadd.f32 %v2973, %v3008
        %v3018 = vadd.f32 %v2974, %v3012
        %v3019 = vadd.f32 %v2975, %v3008
        %v3020 = vadd.f32 %v2976, %v3012
        %v3021 = vadd.f32 %v2977, %v3008
        %v3022 = vadd.f32 %v2978, %v3012
        %v3023 = vadd.f32 %v2979, %v3008
        %v3024 = vadd.f32 %v2980, %v3012
        %v3025 = vadd.f32 %v2981, %v3008
        %v3026 = vadd.f32 %v2982, %v3012
        %v3027 = vadd.f32 %v2983, %v3008
        %v3028 = vadd.f32 %v2984, %v3012
        %v3029 = vadd.f32 %v2985, %v3008
        %v3030 = vadd.f32 %v2986, %v3012
        %v3031 = vadd.f32 %v2987, %v3008
        %v3032 = vadd.f32 %v2988, %v3012
        %v3033 = vadd.f32 %v2989, %v3008
        %v3034 = vadd.f32 %v2990, %v3012
        %v3035 = vadd.f32 %v2991, %v3008
        %v3036 = vadd.f32 %v2992, %v3012
        %v3037 = vadd.f32 %v2993, %v3008
        %v3038 = vadd.f32 %v2994, %v3012
        %v3039 = vadd.f32 %v2995, %v3008
        %v3040 = vadd.f32 %v2996, %v3012
        %v3041 = vadd.f32 %v2997, %v3008
        %v3042 = vadd.f32 %v2998, %v3012
        %v3043 = vadd.f32 %v2999, %v3008
        %v3044 = vadd.f32 %v3000, %v3012
        %v3045 = vadd.f32 %v3001, %v3008
        %v3046 = vadd.f32 %v3002, %v3012
        %v3047 = vxor.u32 %v3015, 2147483648
        %v3048 = vxor.u32 %v3016, 2147483648
        %v3049 = vxor.u32 %v3017, 2147483648
        %v3050 = vxor.u32 %v3018, 2147483648
        %v3051 = vxor.u32 %v3019, 2147483648
        %v3052 = vxor.u32 %v3020, 2147483648
        %v3053 = vxor.u32 %v3021, 2147483648
        %v3054 = vxor.u32 %v3022, 2147483648
        %v3055 = vxor.u32 %v3023, 2147483648
        %v3056 = vxor.u32 %v3024, 2147483648
        %v3057 = vxor.u32 %v3025, 2147483648
        %v3058 = vxor.u32 %v3026, 2147483648
        %v3059 = vxor.u32 %v3027, 2147483648
        %v3060 = vxor.u32 %v3028, 2147483648
        %v3061 = vxor.u32 %v3029, 2147483648
        %v3062 = vxor.u32 %v3030, 2147483648
        %v3063 = vxor.u32 %v3031, 2147483648
        %v3064 = vxor.u32 %v3032, 2147483648
        %v3065 = vxor.u32 %v3033, 2147483648
        %v3066 = vxor.u32 %v3034, 2147483648
        %v3067 = vxor.u32 %v3035, 2147483648
        %v3068 = vxor.u32 %v3036, 2147483648
        %v3069 = vxor.u32 %v3037, 2147483648
        %v3070 = vxor.u32 %v3038, 2147483648
        %v3071 = vxor.u32 %v3039, 2147483648
        %v3072 = vxor.u32 %v3040, 2147483648
        %v3073 = vxor.u32 %v3041, 2147483648
        %v3074 = vxor.u32 %v3042, 2147483648
        %v3075 = vxor.u32 %v3043, 2147483648
        %v3076 = vxor.u32 %v3044, 2147483648
        %v3077 = vxor.u32 %v3045, 2147483648
        %v3078 = vxor.u32 %v3046, 2147483648
        %v3079 = vmul.f32 %v3047, 1.442695
        %v3080 = vpow.pop %v3079
        %v3081 = vmul.f32 %v3048, 1.442695
        %v3082 = vpow.pop %v3081
        %v3083 = vmul.f32 %v3049, 1.442695
        %v3084 = vpow.pop %v3083
        %v3085 = vmul.f32 %v3050, 1.442695
        %v3086 = vpow.pop %v3085
        %v3087 = vmul.f32 %v3051, 1.442695
        %v3088 = vpow.pop %v3087
        %v3089 = vmul.f32 %v3052, 1.442695
        %v3090 = vpow.pop %v3089
        %v3091 = vmul.f32 %v3053, 1.442695
        %v3092 = vpow.pop %v3091
        %v3093 = vmul.f32 %v3054, 1.442695
        %v3094 = vpow.pop %v3093
        %v3095 = vmul.f32 %v3055, 1.442695
        %v3096 = vpow.pop %v3095
        %v3097 = vmul.f32 %v3056, 1.442695
        %v3098 = vpow.pop %v3097
        %v3099 = vmul.f32 %v3057, 1.442695
        %v3100 = vpow.pop %v3099
        %v3101 = vmul.f32 %v3058, 1.442695
        %v3102 = vpow.pop %v3101
        %v3103 = vmul.f32 %v3059, 1.442695
        %v3104 = vpow.pop %v3103
        %v3105 = vmul.f32 %v3060, 1.442695
        %v3106 = vpow.pop %v3105
        %v3107 = vmul.f32 %v3061, 1.442695
        %v3108 = vpow.pop %v3107
        %v3109 = vmul.f32 %v3062, 1.442695
        %v3110 = vpow.pop %v3109
        %v3111 = vmul.f32 %v3063, 1.442695
        %v3112 = vpow.pop %v3111
        %v3113 = vmul.f32 %v3064, 1.442695
        %v3114 = vpow.pop %v3113
        %v3115 = vmul.f32 %v3065, 1.442695
        %v3116 = vpow.pop %v3115
        %v3117 = vmul.f32 %v3066, 1.442695
        %v3118 = vpow.pop %v3117
        %v3119 = vmul.f32 %v3067, 1.442695
        %v3120 = vpow.pop %v3119
        %v3121 = vmul.f32 %v3068, 1.442695
        %v3122 = vpow.pop %v3121
        %v3123 = vmul.f32 %v3069, 1.442695
        %v3124 = vpow.pop %v3123
        %v3125 = vmul.f32 %v3070, 1.442695
        %v3126 = vpow.pop %v3125
        %v3127 = vmul.f32 %v3071, 1.442695
        %v3128 = vpow.pop %v3127
        %v3129 = vmul.f32 %v3072, 1.442695
        %v3130 = vpow.pop %v3129
        %v3131 = vmul.f32 %v3073, 1.442695
        %v3132 = vpow.pop %v3131
        %v3133 = vmul.f32 %v3074, 1.442695
        %v3134 = vpow.pop %v3133
        %v3135 = vmul.f32 %v3075, 1.442695
        %v3136 = vpow.pop %v3135
        %v3137 = vmul.f32 %v3076, 1.442695
        %v3138 = vpow.pop %v3137
        %v3139 = vmul.f32 %v3077, 1.442695
        %v3140 = vpow.pop %v3139
        %v3141 = vmul.f32 %v3078, 1.442695
        %v3142 = vpow.pop %v3141
        %v3143 = vadd.f32 %v3080, 1.0
        %v3144 = vadd.f32 %v3082, 1.0
        %v3145 = vadd.f32 %v3084, 1.0
        %v3146 = vadd.f32 %v3086, 1.0
        %v3147 = vadd.f32 %v3088, 1.0
        %v3148 = vadd.f32 %v3090, 1.0
        %v3149 = vadd.f32 %v3092, 1.0
        %v3150 = vadd.f32 %v3094, 1.0
        %v3151 = vadd.f32 %v3096, 1.0
        %v3152 = vadd.f32 %v3098, 1.0
        %v3153 = vadd.f32 %v3100, 1.0
        %v3154 = vadd.f32 %v3102, 1.0
        %v3155 = vadd.f32 %v3104, 1.0
        %v3156 = vadd.f32 %v3106, 1.0
        %v3157 = vadd.f32 %v3108, 1.0
        %v3158 = vadd.f32 %v3110, 1.0
        %v3159 = vadd.f32 %v3112, 1.0
        %v3160 = vadd.f32 %v3114, 1.0
        %v3161 = vadd.f32 %v3116, 1.0
        %v3162 = vadd.f32 %v3118, 1.0
        %v3163 = vadd.f32 %v3120, 1.0
        %v3164 = vadd.f32 %v3122, 1.0
        %v3165 = vadd.f32 %v3124, 1.0
        %v3166 = vadd.f32 %v3126, 1.0
        %v3167 = vadd.f32 %v3128, 1.0
        %v3168 = vadd.f32 %v3130, 1.0
        %v3169 = vadd.f32 %v3132, 1.0
        %v3170 = vadd.f32 %v3134, 1.0
        %v3171 = vadd.f32 %v3136, 1.0
        %v3172 = vadd.f32 %v3138, 1.0
        %v3173 = vadd.f32 %v3140, 1.0
        %v3174 = vadd.f32 %v3142, 1.0
        %v3175 = vrcp.pop %v3143
        %v3176 = vmul.f32 1.0, %v3175
        %v3177 = vrcp.pop %v3144
        %v3178 = vmul.f32 1.0, %v3177
        %v3179 = vrcp.pop %v3145
        %v3180 = vmul.f32 1.0, %v3179
        %v3181 = vrcp.pop %v3146
        %v3182 = vmul.f32 1.0, %v3181
        %v3183 = vrcp.pop %v3147
        %v3184 = vmul.f32 1.0, %v3183
        %v3185 = vrcp.pop %v3148
        %v3186 = vmul.f32 1.0, %v3185
        %v3187 = vrcp.pop %v3149
        %v3188 = vmul.f32 1.0, %v3187
        %v3189 = vrcp.pop %v3150
        %v3190 = vmul.f32 1.0, %v3189
        %v3191 = vrcp.pop %v3151
        %v3192 = vmul.f32 1.0, %v3191
        %v3193 = vrcp.pop %v3152
        %v3194 = vmul.f32 1.0, %v3193
        %v3195 = vrcp.pop %v3153
        %v3196 = vmul.f32 1.0, %v3195
        %v3197 = vrcp.pop %v3154
        %v3198 = vmul.f32 1.0, %v3197
        %v3199 = vrcp.pop %v3155
        %v3200 = vmul.f32 1.0, %v3199
        %v3201 = vrcp.pop %v3156
        %v3202 = vmul.f32 1.0, %v3201
        %v3203 = vrcp.pop %v3157
        %v3204 = vmul.f32 1.0, %v3203
        %v3205 = vrcp.pop %v3158
        %v3206 = vmul.f32 1.0, %v3205
        %v3207 = vrcp.pop %v3159
        %v3208 = vmul.f32 1.0, %v3207
        %v3209 = vrcp.pop %v3160
        %v3210 = vmul.f32 1.0, %v3209
        %v3211 = vrcp.pop %v3161
        %v3212 = vmul.f32 1.0, %v3211
        %v3213 = vrcp.pop %v3162
        %v3214 = vmul.f32 1.0, %v3213
        %v3215 = vrcp.pop %v3163
        %v3216 = vmul.f32 1.0, %v3215
        %v3217 = vrcp.pop %v3164
        %v3218 = vmul.f32 1.0, %v3217
        %v3219 = vrcp.pop %v3165
        %v3220 = vmul.f32 1.0, %v3219
        %v3221 = vrcp.pop %v3166
        %v3222 = vmul.f32 1.0, %v3221
        %v3223 = vrcp.pop %v3167
        %v3224 = vmul.f32 1.0, %v3223
        %v3225 = vrcp.pop %v3168
        %v3226 = vmul.f32 1.0, %v3225
        %v3227 = vrcp.pop %v3169
        %v3228 = vmul.f32 1.0, %v3227
        %v3229 = vrcp.pop %v3170
        %v3230 = vmul.f32 1.0, %v3229
        %v3231 = vrcp.pop %v3171
        %v3232 = vmul.f32 1.0, %v3231
        %v3233 = vrcp.pop %v3172
        %v3234 = vmul.f32 1.0, %v3233
        %v3235 = vrcp.pop %v3173
        %v3236 = vmul.f32 1.0, %v3235
        %v3237 = vrcp.pop %v3174
        %v3238 = vmul.f32 1.0, %v3237
        %v3239 = vmul.f32 %v3015, %v3176
        %v3240 = vmul.f32 %v3016, %v3178
        %v3241 = vmul.f32 %v3017, %v3180
        %v3242 = vmul.f32 %v3018, %v3182
        %v3243 = vmul.f32 %v3019, %v3184
        %v3244 = vmul.f32 %v3020, %v3186
        %v3245 = vmul.f32 %v3021, %v3188
        %v3246 = vmul.f32 %v3022, %v3190
        %v3247 = vmul.f32 %v3023, %v3192
        %v3248 = vmul.f32 %v3024, %v3194
        %v3249 = vmul.f32 %v3025, %v3196
        %v3250 = vmul.f32 %v3026, %v3198
        %v3251 = vmul.f32 %v3027, %v3200
        %v3252 = vmul.f32 %v3028, %v3202
        %v3253 = vmul.f32 %v3029, %v3204
        %v3254 = vmul.f32 %v3030, %v3206
        %v3255 = vmul.f32 %v3031, %v3208
        %v3256 = vmul.f32 %v3032, %v3210
        %v3257 = vmul.f32 %v3033, %v3212
        %v3258 = vmul.f32 %v3034, %v3214
        %v3259 = vmul.f32 %v3035, %v3216
        %v3260 = vmul.f32 %v3036, %v3218
        %v3261 = vmul.f32 %v3037, %v3220
        %v3262 = vmul.f32 %v3038, %v3222
        %v3263 = vmul.f32 %v3039, %v3224
        %v3264 = vmul.f32 %v3040, %v3226
        %v3265 = vmul.f32 %v3041, %v3228
        %v3266 = vmul.f32 %v3042, %v3230
        %v3267 = vmul.f32 %v3043, %v3232
        %v3268 = vmul.f32 %v3044, %v3234
        %v3269 = vmul.f32 %v3045, %v3236
        %v3270 = vmul.f32 %v3046, %v3238
        %v3271 = vld [vmem:[%s1550] sm:$0xff]
        %v3272 = vld [vmem:[%s1550 + $0x8] sm:$0xff]
        %v3273 = vld [vmem:[%s1550 + $0x10] sm:$0xff]
        %v3274 = vld [vmem:[%s1550 + $0x18] sm:$0xff]
        %v3275 = vld [vmem:[%s1550 + $0x20] sm:$0xff]
        %v3276 = vld [vmem:[%s1550 + $0x28] sm:$0xff]
        %v3277 = vld [vmem:[%s1550 + $0x30] sm:$0xff]
        %v3278 = vld [vmem:[%s1550 + $0x38] sm:$0xff]
        %v3279 = vld [vmem:[%s1550 + $0x40] sm:$0xff]
        %v3280 = vld [vmem:[%s1550 + $0x48] sm:$0xff]
        %v3281 = vld [vmem:[%s1550 + $0x50] sm:$0xff]
        %v3282 = vld [vmem:[%s1550 + $0x58] sm:$0xff]
        %v3283 = vld [vmem:[%s1550 + $0x60] sm:$0xff]
        %v3284 = vld [vmem:[%s1550 + $0x68] sm:$0xff]
        %v3285 = vld [vmem:[%s1550 + $0x70] sm:$0xff]
        %v3286 = vld [vmem:[%s1550 + $0x78] sm:$0xff]
        %v3287 = vld [vmem:[%s1550 + $0x80] sm:$0xff]
        %v3288 = vld [vmem:[%s1550 + $0x88] sm:$0xff]
        %v3289 = vld [vmem:[%s1550 + $0x90] sm:$0xff]
        %v3290 = vld [vmem:[%s1550 + $0x98] sm:$0xff]
        %v3291 = vld [vmem:[%s1550 + $0xa0] sm:$0x3]
        %v3292 = vld [vmem:[%s1553] sm:$0x1]
        %v3294 = vlaneseq
        %v3295 = vshrl.u32 %v3294, 7
        %v3296 = vsub.s32 0, %v3295
        %v3297 = vrot.slane %v3292, %v3296
        %vm3299 = vcmask 277504
        %v3301 = vsel %vm3299, %v3240, 0
        %v3304 = vsel %vm3299, %v3242, 0
        %v3307 = vsel %vm3299, %v3244, 0
        %v3310 = vsel %vm3299, %v3246, 0
        %v3313 = vsel %vm3299, %v3248, 0
        %v3316 = vsel %vm3299, %v3250, 0
        %v3319 = vsel %vm3299, %v3252, 0
        %v3322 = vsel %vm3299, %v3254, 0
        %v3325 = vsel %vm3299, %v3256, 0
        %v3328 = vsel %vm3299, %v3258, 0
        %v3331 = vsel %vm3299, %v3260, 0
        %v3334 = vsel %vm3299, %v3262, 0
        %v3337 = vsel %vm3299, %v3264, 0
        %v3340 = vsel %vm3299, %v3266, 0
        %v3343 = vsel %vm3299, %v3268, 0
        %v3346 = vsel %vm3299, %v3270, 0
        %vm3348 = vcmask 1041408
        %v3350 = vsel %vm3348, %v3291, 0
        %3352 = vmatprep.subr.mxu0 0.0
        %3353 = vmatpush1.msra.mxu0 %v3286
        %3354 = vmatprep.subr.mxu0 0.0
        %3355 = vmatpush1.msra.mxu0 %v3285
        %3356 = vmatprep.subr.mxu0 0.0
        %3357 = vmatpush1.msra.mxu0 %v3284
        %3358 = vmatprep.subr.mxu0 0.0
        %3359 = vmatpush1.msra.mxu0 %v3283
        %3360 = vmatprep.subr.mxu0 0.0
        %3361 = vmatpush1.msra.mxu0 %v3282
        %3362 = vmatprep.subr.mxu0 0.0
        %3363 = vmatpush1.msra.mxu0 %v3281
        %3364 = vmatprep.subr.mxu0 0.0
        %3365 = vmatpush1.msra.mxu0 %v3280
        %3366 = vmatprep.subr.mxu0 0.0
        %3367 = vmatpush1.msra.mxu0 %v3279
        %3368 = vmatprep.subr.mxu0 0.0
        %3369 = vmatpush1.msra.mxu0 %v3278
        %3370 = vmatprep.subr.mxu0 0.0
        %3371 = vmatpush1.msra.mxu0 %v3277
        %3372 = vmatprep.subr.mxu0 0.0
        %3373 = vmatpush1.msra.mxu0 %v3276
        %3374 = vmatprep.subr.mxu0 0.0
        %3375 = vmatpush1.msra.mxu0 %v3275
        %3376 = vmatprep.subr.mxu0 0.0
        %3377 = vmatpush1.msra.mxu0 %v3274
        %3378 = vmatprep.subr.mxu0 0.0
        %3379 = vmatpush1.msra.mxu0 %v3273
        %3380 = vmatprep.subr.mxu0 0.0
        %3381 = vmatpush1.msra.mxu0 %v3272
        %3382 = vmatprep.subr.mxu0 0.0
        %3383 = vmatpush1.msra.mxu0 %v3271
        %3384 = vmatprep.subr.mxu0 0.0
        %3385 = vmatpush2.msra.mxu0 0.0
        %3386 = vmatprep.subr.mxu0 0.0
        %3387 = vmatpush2.msra.mxu0 0.0
        %3388 = vmatprep.subr.mxu0 0.0
        %3389 = vmatpush2.msra.mxu0 0.0
        %3390 = vmatprep.subr.mxu0 0.0
        %3391 = vmatpush2.msra.mxu0 0.0
        %3392 = vmatprep.subr.mxu0 0.0
        %3393 = vmatpush2.msra.mxu0 0.0
        %3394 = vmatprep.subr.mxu0 0.0
        %3395 = vmatpush2.msra.mxu0 0.0
        %3396 = vmatprep.subr.mxu0 0.0
        %3397 = vmatpush2.msra.mxu0 0.0
        %3398 = vmatprep.subr.mxu0 0.0
        %3399 = vmatpush2.msra.mxu0 0.0
        %3400 = vmatprep.subr.mxu0 0.0
        %3401 = vmatpush2.msra.mxu0 0.0
        %3402 = vmatprep.subr.mxu0 0.0
        %3403 = vmatpush2.msra.mxu0 0.0
        %3404 = vmatprep.subr.mxu0 0.0
        %3405 = vmatpush2.msra.mxu0 0.0
        %3406 = vmatprep.subr.mxu0 0.0
        %3407 = vmatpush2.msra.mxu0 %v3350
        %3408 = vmatprep.subr.mxu0 0.0
        %3409 = vmatpush2.msra.mxu0 %v3290
        %3410 = vmatprep.subr.mxu0 0.0
        %3411 = vmatpush2.msra.mxu0 %v3289
        %3412 = vmatprep.subr.mxu0 0.0
        %3413 = vmatpush2.msra.mxu0 %v3288
        %3414 = vmatprep.subr.mxu0 0.0
        %3415 = vmatpush2.msra.mxu0 %v3287
        %3416 = vmatprep.mubr.f32.mxu0 %v3301
        %3417 = vmatmul.mubr.f32.gmra.mxu0 %v3239
        %v3418 = vpop.f32.mrf.mxu0
        %v3419 = vadd.f32 %v3297, %v3418
        %v3420 = vpop.f32.mrf.mxu0
        %3421 = vmatprep.mubr.f32.mxu0 %v3304
        %3422 = vmatmul.mubr.f32.gmra.mxu0 %v3241
        %v3423 = vpop.f32.mrf.mxu0
        %v3424 = vadd.f32 %v3297, %v3423
        %v3425 = vpop.f32.mrf.mxu0
        %3426 = vmatprep.mubr.f32.mxu0 %v3307
        %3427 = vmatmul.mubr.f32.gmra.mxu0 %v3243
        %v3428 = vpop.f32.mrf.mxu0
        %v3429 = vadd.f32 %v3297, %v3428
        %v3430 = vpop.f32.mrf.mxu0
        %3431 = vmatprep.mubr.f32.mxu0 %v3310
        %3432 = vmatmul.mubr.f32.gmra.mxu0 %v3245
        %v3433 = vpop.f32.mrf.mxu0
        %v3434 = vadd.f32 %v3297, %v3433
        %v3435 = vpop.f32.mrf.mxu0
        %3436 = vmatprep.mubr.f32.mxu0 %v3313
        %3437 = vmatmul.mubr.f32.gmra.mxu0 %v3247
        %v3438 = vpop.f32.mrf.mxu0
        %v3439 = vadd.f32 %v3297, %v3438
        %v3440 = vpop.f32.mrf.mxu0
        %3441 = vmatprep.mubr.f32.mxu0 %v3316
        %3442 = vmatmul.mubr.f32.gmra.mxu0 %v3249
        %v3443 = vpop.f32.mrf.mxu0
        %v3444 = vadd.f32 %v3297, %v3443
        %v3445 = vpop.f32.mrf.mxu0
        %3446 = vmatprep.mubr.f32.mxu0 %v3319
        %3447 = vmatmul.mubr.f32.gmra.mxu0 %v3251
        %v3448 = vpop.f32.mrf.mxu0
        %v3449 = vadd.f32 %v3297, %v3448
        %v3450 = vpop.f32.mrf.mxu0
        %3451 = vmatprep.mubr.f32.mxu0 %v3322
        %3452 = vmatmul.mubr.f32.gmra.mxu0 %v3253
        %v3453 = vpop.f32.mrf.mxu0
        %v3454 = vadd.f32 %v3297, %v3453
        %v3455 = vpop.f32.mrf.mxu0
        %3456 = vmatprep.mubr.f32.mxu0 %v3325
        %3457 = vmatmul.mubr.f32.gmra.mxu0 %v3255
        %v3458 = vpop.f32.mrf.mxu0
        %v3459 = vadd.f32 %v3297, %v3458
        %v3460 = vpop.f32.mrf.mxu0
        %3461 = vmatprep.mubr.f32.mxu0 %v3328
        %3462 = vmatmul.mubr.f32.gmra.mxu0 %v3257
        %v3463 = vpop.f32.mrf.mxu0
        %v3464 = vadd.f32 %v3297, %v3463
        %v3465 = vpop.f32.mrf.mxu0
        %3466 = vmatprep.mubr.f32.mxu0 %v3331
        %3467 = vmatmul.mubr.f32.gmra.mxu0 %v3259
        %v3468 = vpop.f32.mrf.mxu0
        %v3469 = vadd.f32 %v3297, %v3468
        %v3470 = vpop.f32.mrf.mxu0
        %3471 = vmatprep.mubr.f32.mxu0 %v3334
        %3472 = vmatmul.mubr.f32.gmra.mxu0 %v3261
        %v3473 = vpop.f32.mrf.mxu0
        %v3474 = vadd.f32 %v3297, %v3473
        %v3475 = vpop.f32.mrf.mxu0
        %3476 = vmatprep.mubr.f32.mxu0 %v3337
        %3477 = vmatmul.mubr.f32.gmra.mxu0 %v3263
        %v3478 = vpop.f32.mrf.mxu0
        %v3479 = vadd.f32 %v3297, %v3478
        %v3480 = vpop.f32.mrf.mxu0
        %3481 = vmatprep.mubr.f32.mxu0 %v3340
        %3482 = vmatmul.mubr.f32.gmra.mxu0 %v3265
        %v3483 = vpop.f32.mrf.mxu0
        %v3484 = vadd.f32 %v3297, %v3483
        %v3485 = vpop.f32.mrf.mxu0
        %3486 = vmatprep.mubr.f32.mxu0 %v3343
        %3487 = vmatmul.mubr.f32.gmra.mxu0 %v3267
        %v3488 = vpop.f32.mrf.mxu0
        %v3489 = vadd.f32 %v3297, %v3488
        %v3490 = vpop.f32.mrf.mxu0
        %3491 = vmatprep.mubr.f32.mxu0 %v3346
        %3492 = vmatmul.mubr.f32.gmra.mxu0 %v3269
        %v3493 = vpop.f32.mrf.mxu0
        %v3494 = vadd.f32 %v3297, %v3493
        %v3495 = vpop.f32.mrf.mxu0
        %3496 = vdwg.mxu0
        %v3497 = vxor.u32 %v3419, 2147483648
        %v3498 = vxor.u32 %v3424, 2147483648
        %v3499 = vxor.u32 %v3429, 2147483648
        %v3500 = vxor.u32 %v3434, 2147483648
        %v3501 = vxor.u32 %v3439, 2147483648
        %v3502 = vxor.u32 %v3444, 2147483648
        %v3503 = vxor.u32 %v3449, 2147483648
        %v3504 = vxor.u32 %v3454, 2147483648
        %v3505 = vxor.u32 %v3459, 2147483648
        %v3506 = vxor.u32 %v3464, 2147483648
        %v3507 = vxor.u32 %v3469, 2147483648
        %v3508 = vxor.u32 %v3474, 2147483648
        %v3509 = vxor.u32 %v3479, 2147483648
        %v3510 = vxor.u32 %v3484, 2147483648
        %v3511 = vxor.u32 %v3489, 2147483648
        %v3512 = vxor.u32 %v3494, 2147483648
        %v3513 = vmul.f32 %v3497, 1.442695
        %v3514 = vpow.pop %v3513
        %v3515 = vmul.f32 %v3498, 1.442695
        %v3516 = vpow.pop %v3515
        %v3517 = vmul.f32 %v3499, 1.442695
        %v3518 = vpow.pop %v3517
        %v3519 = vmul.f32 %v3500, 1.442695
        %v3520 = vpow.pop %v3519
        %v3521 = vmul.f32 %v3501, 1.442695
        %v3522 = vpow.pop %v3521
        %v3523 = vmul.f32 %v3502, 1.442695
        %v3524 = vpow.pop %v3523
        %v3525 = vmul.f32 %v3503, 1.442695
        %v3526 = vpow.pop %v3525
        %v3527 = vmul.f32 %v3504, 1.442695
        %v3528 = vpow.pop %v3527
        %v3529 = vmul.f32 %v3505, 1.442695
        %v3530 = vpow.pop %v3529
        %v3531 = vmul.f32 %v3506, 1.442695
        %v3532 = vpow.pop %v3531
        %v3533 = vmul.f32 %v3507, 1.442695
        %v3534 = vpow.pop %v3533
        %v3535 = vmul.f32 %v3508, 1.442695
        %v3536 = vpow.pop %v3535
        %v3537 = vmul.f32 %v3509, 1.442695
        %v3538 = vpow.pop %v3537
        %v3539 = vmul.f32 %v3510, 1.442695
        %v3540 = vpow.pop %v3539
        %v3541 = vmul.f32 %v3511, 1.442695
        %v3542 = vpow.pop %v3541
        %v3543 = vmul.f32 %v3512, 1.442695
        %v3544 = vpow.pop %v3543
        %v3545 = vadd.f32 %v3514, 1.0
        %v3546 = vadd.f32 %v3516, 1.0
        %v3547 = vadd.f32 %v3518, 1.0
        %v3548 = vadd.f32 %v3520, 1.0
        %v3549 = vadd.f32 %v3522, 1.0
        %v3550 = vadd.f32 %v3524, 1.0
        %v3551 = vadd.f32 %v3526, 1.0
        %v3552 = vadd.f32 %v3528, 1.0
        %v3553 = vadd.f32 %v3530, 1.0
        %v3554 = vadd.f32 %v3532, 1.0
        %v3555 = vadd.f32 %v3534, 1.0
        %v3556 = vadd.f32 %v3536, 1.0
        %v3557 = vadd.f32 %v3538, 1.0
        %v3558 = vadd.f32 %v3540, 1.0
        %v3559 = vadd.f32 %v3542, 1.0
        %v3560 = vadd.f32 %v3544, 1.0
        %v3561 = vrcp.pop %v3545
        %v3562 = vmul.f32 1.0, %v3561
        %v3563 = vrcp.pop %v3546
        %v3564 = vmul.f32 1.0, %v3563
        %v3565 = vrcp.pop %v3547
        %v3566 = vmul.f32 1.0, %v3565
        %v3567 = vrcp.pop %v3548
        %v3568 = vmul.f32 1.0, %v3567
        %v3569 = vrcp.pop %v3549
        %v3570 = vmul.f32 1.0, %v3569
        %v3571 = vrcp.pop %v3550
        %v3572 = vmul.f32 1.0, %v3571
        %v3573 = vrcp.pop %v3551
        %v3574 = vmul.f32 1.0, %v3573
        %v3575 = vrcp.pop %v3552
        %v3576 = vmul.f32 1.0, %v3575
        %v3577 = vrcp.pop %v3553
        %v3578 = vmul.f32 1.0, %v3577
        %v3579 = vrcp.pop %v3554
        %v3580 = vmul.f32 1.0, %v3579
        %v3581 = vrcp.pop %v3555
        %v3582 = vmul.f32 1.0, %v3581
        %v3583 = vrcp.pop %v3556
        %v3584 = vmul.f32 1.0, %v3583
        %v3585 = vrcp.pop %v3557
        %v3586 = vmul.f32 1.0, %v3585
        %v3587 = vrcp.pop %v3558
        %v3588 = vmul.f32 1.0, %v3587
        %v3589 = vrcp.pop %v3559
        %v3590 = vmul.f32 1.0, %v3589
        %v3591 = vrcp.pop %v3560
        %v3592 = vmul.f32 1.0, %v3591
        %v3593 = vmul.f32 %v3419, %v3562
        %v3594 = vmul.f32 %v3424, %v3564
        %v3595 = vmul.f32 %v3429, %v3566
        %v3596 = vmul.f32 %v3434, %v3568
        %v3597 = vmul.f32 %v3439, %v3570
        %v3598 = vmul.f32 %v3444, %v3572
        %v3599 = vmul.f32 %v3449, %v3574
        %v3600 = vmul.f32 %v3454, %v3576
        %v3601 = vmul.f32 %v3459, %v3578
        %v3602 = vmul.f32 %v3464, %v3580
        %v3603 = vmul.f32 %v3469, %v3582
        %v3604 = vmul.f32 %v3474, %v3584
        %v3605 = vmul.f32 %v3479, %v3586
        %v3606 = vmul.f32 %v3484, %v3588
        %v3607 = vmul.f32 %v3489, %v3590
        %v3608 = vmul.f32 %v3494, %v3592
        %v3609 = vld [vmem:[%s1558] sm:$0xff]
        %v3610 = vld [vmem:[%s1558 + $0x8] sm:$0xff]
        %v3611 = vld [vmem:[%s1558 + $0x10] sm:$0xff]
        %v3612 = vld [vmem:[%s1558 + $0x18] sm:$0xff]
        %v3613 = vld [vmem:[%s1561] sm:$0x1]
        %v3615 = vlaneseq
        %v3616 = vshrl.u32 %v3615, 7
        %v3617 = vsub.s32 0, %v3616
        %v3618 = vrot.slane %v3613, %v3617
        %v3621 = vsel %vm2166, %v3593, 0
        %v3624 = vsel %vm2166, %v3594, 0
        %v3627 = vsel %vm2166, %v3595, 0
        %v3630 = vsel %vm2166, %v3596, 0
        %v3633 = vsel %vm2166, %v3597, 0
        %v3636 = vsel %vm2166, %v3598, 0
        %v3639 = vsel %vm2166, %v3599, 0
        %v3642 = vsel %vm2166, %v3600, 0
        %v3645 = vsel %vm2166, %v3601, 0
        %v3648 = vsel %vm2166, %v3602, 0
        %v3651 = vsel %vm2166, %v3603, 0
        %v3654 = vsel %vm2166, %v3604, 0
        %v3657 = vsel %vm2166, %v3605, 0
        %v3660 = vsel %vm2166, %v3606, 0
        %v3663 = vsel %vm2166, %v3607, 0
        %v3666 = vsel %vm2166, %v3608, 0
        %3668 = vmatprep.subr.mxu0 0.0
        %3669 = vmatpush1.msra.mxu0 0.0
        %3670 = vmatprep.subr.mxu0 0.0
        %3671 = vmatpush1.msra.mxu0 0.0
        %3672 = vmatprep.subr.mxu0 0.0
        %3673 = vmatpush1.msra.mxu0 0.0
        %3674 = vmatprep.subr.mxu0 0.0
        %3675 = vmatpush1.msra.mxu0 0.0
        %3676 = vmatprep.subr.mxu0 0.0
        %3677 = vmatpush1.msra.mxu0 0.0
        %3678 = vmatprep.subr.mxu0 0.0
        %3679 = vmatpush1.msra.mxu0 0.0
        %3680 = vmatprep.subr.mxu0 0.0
        %3681 = vmatpush1.msra.mxu0 0.0
        %3682 = vmatprep.subr.mxu0 0.0
        %3683 = vmatpush1.msra.mxu0 0.0
        %3684 = vmatprep.subr.mxu0 0.0
        %3685 = vmatpush1.msra.mxu0 0.0
        %3686 = vmatprep.subr.mxu0 0.0
        %3687 = vmatpush1.msra.mxu0 0.0
        %3688 = vmatprep.subr.mxu0 0.0
        %3689 = vmatpush1.msra.mxu0 0.0
        %3690 = vmatprep.subr.mxu0 0.0
        %3691 = vmatpush1.msra.mxu0 0.0
        %3692 = vmatprep.subr.mxu0 0.0
        %3693 = vmatpush1.msra.mxu0 %v3612
        %3694 = vmatprep.subr.mxu0 0.0
        %3695 = vmatpush1.msra.mxu0 %v3611
        %3696 = vmatprep.subr.mxu0 0.0
        %3697 = vmatpush1.msra.mxu0 %v3610
        %3698 = vmatprep.subr.mxu0 0.0
        %3699 = vmatpush1.msra.mxu0 %v3609
        %3700 = vmatprep.subr.mxu0 0.0
        %3701 = vmatpush2.msra.mxu0 0.0
        %3702 = vmatprep.subr.mxu0 0.0
        %3703 = vmatpush2.msra.mxu0 0.0
        %3704 = vmatprep.subr.mxu0 0.0
        %3705 = vmatpush2.msra.mxu0 0.0
        %3706 = vmatprep.subr.mxu0 0.0
        %3707 = vmatpush2.msra.mxu0 0.0
        %3708 = vmatprep.subr.mxu0 0.0
        %3709 = vmatpush2.msra.mxu0 0.0
        %3710 = vmatprep.subr.mxu0 0.0
        %3711 = vmatpush2.msra.mxu0 0.0
        %3712 = vmatprep.subr.mxu0 0.0
        %3713 = vmatpush2.msra.mxu0 0.0
        %3714 = vmatprep.subr.mxu0 0.0
        %3715 = vmatpush2.msra.mxu0 0.0
        %3716 = vmatprep.subr.mxu0 0.0
        %3717 = vmatpush2.msra.mxu0 0.0
        %3718 = vmatprep.subr.mxu0 0.0
        %3719 = vmatpush2.msra.mxu0 0.0
        %3720 = vmatprep.subr.mxu0 0.0
        %3721 = vmatpush2.msra.mxu0 0.0
        %3722 = vmatprep.subr.mxu0 0.0
        %3723 = vmatpush2.msra.mxu0 0.0
        %3724 = vmatprep.subr.mxu0 0.0
        %3725 = vmatpush2.msra.mxu0 0.0
        %3726 = vmatprep.subr.mxu0 0.0
        %3727 = vmatpush2.msra.mxu0 0.0
        %3728 = vmatprep.subr.mxu0 0.0
        %3729 = vmatpush2.msra.mxu0 0.0
        %3730 = vmatprep.subr.mxu0 0.0
        %3731 = vmatpush2.msra.mxu0 0.0
        %3732 = vmatprep.mubr.f32.mxu0 0.0
        %3733 = vmatmul.mubr.f32.gmra.mxu0 %v3621
        %v3734 = vpop.f32.mrf.mxu0
        %v3735 = vadd.f32 %v3618, %v3734
        %v3736 = vpop.f32.mrf.mxu0
        %3737 = vmatprep.mubr.f32.mxu0 0.0
        %3738 = vmatmul.mubr.f32.gmra.mxu0 %v3624
        %v3739 = vpop.f32.mrf.mxu0
        %v3740 = vadd.f32 %v3618, %v3739
        %v3741 = vpop.f32.mrf.mxu0
        %3742 = vmatprep.mubr.f32.mxu0 0.0
        %3743 = vmatmul.mubr.f32.gmra.mxu0 %v3627
        %v3744 = vpop.f32.mrf.mxu0
        %v3745 = vadd.f32 %v3618, %v3744
        %v3746 = vpop.f32.mrf.mxu0
        %3747 = vmatprep.mubr.f32.mxu0 0.0
        %3748 = vmatmul.mubr.f32.gmra.mxu0 %v3630
        %v3749 = vpop.f32.mrf.mxu0
        %v3750 = vadd.f32 %v3618, %v3749
        %v3751 = vpop.f32.mrf.mxu0
        %3752 = vmatprep.mubr.f32.mxu0 0.0
        %3753 = vmatmul.mubr.f32.gmra.mxu0 %v3633
        %v3754 = vpop.f32.mrf.mxu0
        %v3755 = vadd.f32 %v3618, %v3754
        %v3756 = vpop.f32.mrf.mxu0
        %3757 = vmatprep.mubr.f32.mxu0 0.0
        %3758 = vmatmul.mubr.f32.gmra.mxu0 %v3636
        %v3759 = vpop.f32.mrf.mxu0
        %v3760 = vadd.f32 %v3618, %v3759
        %v3761 = vpop.f32.mrf.mxu0
        %3762 = vmatprep.mubr.f32.mxu0 0.0
        %3763 = vmatmul.mubr.f32.gmra.mxu0 %v3639
        %v3764 = vpop.f32.mrf.mxu0
        %v3765 = vadd.f32 %v3618, %v3764
        %v3766 = vpop.f32.mrf.mxu0
        %3767 = vmatprep.mubr.f32.mxu0 0.0
        %3768 = vmatmul.mubr.f32.gmra.mxu0 %v3642
        %v3769 = vpop.f32.mrf.mxu0
        %v3770 = vadd.f32 %v3618, %v3769
        %v3771 = vpop.f32.mrf.mxu0
        %3772 = vmatprep.mubr.f32.mxu0 0.0
        %3773 = vmatmul.mubr.f32.gmra.mxu0 %v3645
        %v3774 = vpop.f32.mrf.mxu0
        %v3775 = vadd.f32 %v3618, %v3774
        %v3776 = vpop.f32.mrf.mxu0
        %3777 = vmatprep.mubr.f32.mxu0 0.0
        %3778 = vmatmul.mubr.f32.gmra.mxu0 %v3648
        %v3779 = vpop.f32.mrf.mxu0
        %v3780 = vadd.f32 %v3618, %v3779
        %v3781 = vpop.f32.mrf.mxu0
        %3782 = vmatprep.mubr.f32.mxu0 0.0
        %3783 = vmatmul.mubr.f32.gmra.mxu0 %v3651
        %v3784 = vpop.f32.mrf.mxu0
        %v3785 = vadd.f32 %v3618, %v3784
        %v3786 = vpop.f32.mrf.mxu0
        %3787 = vmatprep.mubr.f32.mxu0 0.0
        %3788 = vmatmul.mubr.f32.gmra.mxu0 %v3654
        %v3789 = vpop.f32.mrf.mxu0
        %v3790 = vadd.f32 %v3618, %v3789
        %v3791 = vpop.f32.mrf.mxu0
        %3792 = vmatprep.mubr.f32.mxu0 0.0
        %3793 = vmatmul.mubr.f32.gmra.mxu0 %v3657
        %v3794 = vpop.f32.mrf.mxu0
        %v3795 = vadd.f32 %v3618, %v3794
        %v3796 = vpop.f32.mrf.mxu0
        %3797 = vmatprep.mubr.f32.mxu0 0.0
        %3798 = vmatmul.mubr.f32.gmra.mxu0 %v3660
        %v3799 = vpop.f32.mrf.mxu0
        %v3800 = vadd.f32 %v3618, %v3799
        %v3801 = vpop.f32.mrf.mxu0
        %3802 = vmatprep.mubr.f32.mxu0 0.0
        %3803 = vmatmul.mubr.f32.gmra.mxu0 %v3663
        %v3804 = vpop.f32.mrf.mxu0
        %v3805 = vadd.f32 %v3618, %v3804
        %v3806 = vpop.f32.mrf.mxu0
        %3807 = vmatprep.mubr.f32.mxu0 0.0
        %3808 = vmatmul.mubr.f32.gmra.mxu0 %v3666
        %v3809 = vpop.f32.mrf.mxu0
        %v3810 = vadd.f32 %v3618, %v3809
        %v3811 = vpop.f32.mrf.mxu0
        %3812 = vdwg.mxu0
        %v3813 = vxor.u32 %v3735, 2147483648
        %v3814 = vxor.u32 %v3740, 2147483648
        %v3815 = vxor.u32 %v3745, 2147483648
        %v3816 = vxor.u32 %v3750, 2147483648
        %v3817 = vxor.u32 %v3755, 2147483648
        %v3818 = vxor.u32 %v3760, 2147483648
        %v3819 = vxor.u32 %v3765, 2147483648
        %v3820 = vxor.u32 %v3770, 2147483648
        %v3821 = vxor.u32 %v3775, 2147483648
        %v3822 = vxor.u32 %v3780, 2147483648
        %v3823 = vxor.u32 %v3785, 2147483648
        %v3824 = vxor.u32 %v3790, 2147483648
        %v3825 = vxor.u32 %v3795, 2147483648
        %v3826 = vxor.u32 %v3800, 2147483648
        %v3827 = vxor.u32 %v3805, 2147483648
        %v3828 = vxor.u32 %v3810, 2147483648
        %v3829 = vmul.f32 %v3813, 1.442695
        %v3830 = vpow.pop %v3829
        %v3831 = vmul.f32 %v3814, 1.442695
        %v3832 = vpow.pop %v3831
        %v3833 = vmul.f32 %v3815, 1.442695
        %v3834 = vpow.pop %v3833
        %v3835 = vmul.f32 %v3816, 1.442695
        %v3836 = vpow.pop %v3835
        %v3837 = vmul.f32 %v3817, 1.442695
        %v3838 = vpow.pop %v3837
        %v3839 = vmul.f32 %v3818, 1.442695
        %v3840 = vpow.pop %v3839
        %v3841 = vmul.f32 %v3819, 1.442695
        %v3842 = vpow.pop %v3841
        %v3843 = vmul.f32 %v3820, 1.442695
        %v3844 = vpow.pop %v3843
        %v3845 = vmul.f32 %v3821, 1.442695
        %v3846 = vpow.pop %v3845
        %v3847 = vmul.f32 %v3822, 1.442695
        %v3848 = vpow.pop %v3847
        %v3849 = vmul.f32 %v3823, 1.442695
        %v3850 = vpow.pop %v3849
        %v3851 = vmul.f32 %v3824, 1.442695
        %v3852 = vpow.pop %v3851
        %v3853 = vmul.f32 %v3825, 1.442695
        %v3854 = vpow.pop %v3853
        %v3855 = vmul.f32 %v3826, 1.442695
        %v3856 = vpow.pop %v3855
        %v3857 = vmul.f32 %v3827, 1.442695
        %v3858 = vpow.pop %v3857
        %v3859 = vmul.f32 %v3828, 1.442695
        %v3860 = vpow.pop %v3859
        %v3861 = vadd.f32 %v3830, 1.0
        %v3862 = vadd.f32 %v3832, 1.0
        %v3863 = vadd.f32 %v3834, 1.0
        %v3864 = vadd.f32 %v3836, 1.0
        %v3865 = vadd.f32 %v3838, 1.0
        %v3866 = vadd.f32 %v3840, 1.0
        %v3867 = vadd.f32 %v3842, 1.0
        %v3868 = vadd.f32 %v3844, 1.0
        %v3869 = vadd.f32 %v3846, 1.0
        %v3870 = vadd.f32 %v3848, 1.0
        %v3871 = vadd.f32 %v3850, 1.0
        %v3872 = vadd.f32 %v3852, 1.0
        %v3873 = vadd.f32 %v3854, 1.0
        %v3874 = vadd.f32 %v3856, 1.0
        %v3875 = vadd.f32 %v3858, 1.0
        %v3876 = vadd.f32 %v3860, 1.0
        %v3877 = vrcp.pop %v3861
        %v3878 = vmul.f32 1.0, %v3877
        %v3879 = vrcp.pop %v3862
        %v3880 = vmul.f32 1.0, %v3879
        %v3881 = vrcp.pop %v3863
        %v3882 = vmul.f32 1.0, %v3881
        %v3883 = vrcp.pop %v3864
        %v3884 = vmul.f32 1.0, %v3883
        %v3885 = vrcp.pop %v3865
        %v3886 = vmul.f32 1.0, %v3885
        %v3887 = vrcp.pop %v3866
        %v3888 = vmul.f32 1.0, %v3887
        %v3889 = vrcp.pop %v3867
        %v3890 = vmul.f32 1.0, %v3889
        %v3891 = vrcp.pop %v3868
        %v3892 = vmul.f32 1.0, %v3891
        %v3893 = vrcp.pop %v3869
        %v3894 = vmul.f32 1.0, %v3893
        %v3895 = vrcp.pop %v3870
        %v3896 = vmul.f32 1.0, %v3895
        %v3897 = vrcp.pop %v3871
        %v3898 = vmul.f32 1.0, %v3897
        %v3899 = vrcp.pop %v3872
        %v3900 = vmul.f32 1.0, %v3899
        %v3901 = vrcp.pop %v3873
        %v3902 = vmul.f32 1.0, %v3901
        %v3903 = vrcp.pop %v3874
        %v3904 = vmul.f32 1.0, %v3903
        %v3905 = vrcp.pop %v3875
        %v3906 = vmul.f32 1.0, %v3905
        %v3907 = vrcp.pop %v3876
        %v3908 = vmul.f32 1.0, %v3907
        %v3909 = vmul.f32 %v3735, %v3878
        %v3910 = vmul.f32 %v3740, %v3880
        %v3911 = vmul.f32 %v3745, %v3882
        %v3912 = vmul.f32 %v3750, %v3884
        %v3913 = vmul.f32 %v3755, %v3886
        %v3914 = vmul.f32 %v3760, %v3888
        %v3915 = vmul.f32 %v3765, %v3890
        %v3916 = vmul.f32 %v3770, %v3892
        %v3917 = vmul.f32 %v3775, %v3894
        %v3918 = vmul.f32 %v3780, %v3896
        %v3919 = vmul.f32 %v3785, %v3898
        %v3920 = vmul.f32 %v3790, %v3900
        %v3921 = vmul.f32 %v3795, %v3902
        %v3922 = vmul.f32 %v3800, %v3904
        %v3923 = vmul.f32 %v3805, %v3906
        %v3924 = vmul.f32 %v3810, %v3908
        %3925 = vst.msk [vmem:[%s1714] sm:$0xff] %vm2589, %v3909
        %3926 = vst.msk [vmem:[%s1714 + $0x8] sm:$0xff] %vm2589, %v3910
        %3927 = vst.msk [vmem:[%s1714 + $0x10] sm:$0xff] %vm2589, %v3911
        %3928 = vst.msk [vmem:[%s1714 + $0x18] sm:$0xff] %vm2589, %v3912
        %3929 = vst.msk [vmem:[%s1714 + $0x20] sm:$0xff] %vm2589, %v3913
        %3930 = vst.msk [vmem:[%s1714 + $0x28] sm:$0xff] %vm2589, %v3914
        %3931 = vst.msk [vmem:[%s1714 + $0x30] sm:$0xff] %vm2589, %v3915
        %3932 = vst.msk [vmem:[%s1714 + $0x38] sm:$0xff] %vm2589, %v3916
        %3933 = vst.msk [vmem:[%s1714 + $0x40] sm:$0xff] %vm2589, %v3917
        %3934 = vst.msk [vmem:[%s1714 + $0x48] sm:$0xff] %vm2589, %v3918
        %3935 = vst.msk [vmem:[%s1714 + $0x50] sm:$0xff] %vm2589, %v3919
        %3936 = vst.msk [vmem:[%s1714 + $0x58] sm:$0xff] %vm2589, %v3920
        %3937 = vst.msk [vmem:[%s1714 + $0x60] sm:$0xff] %vm2589, %v3921
        %3938 = vst.msk [vmem:[%s1714 + $0x68] sm:$0xff] %vm2589, %v3922
        %3939 = vst.msk [vmem:[%s1714 + $0x70] sm:$0xff] %vm2589, %v3923
        %3940 = vst.msk [vmem:[%s1714 + $0x78] sm:$0xff] %vm2589, %v3924
        %v3941 = vld [vmem:[#allocation4] sm:$0xff]
        %v3942 = vld [vmem:[#allocation4 + $0x8] sm:$0xff]
        %v3943 = vld [vmem:[#allocation4 + $0x10] sm:$0xff]
        %v3944 = vld [vmem:[#allocation4 + $0x18] sm:$0xff]
        %v3945 = vld [vmem:[#allocation4 + $0x20] sm:$0xff]
        %v3946 = vld [vmem:[#allocation4 + $0x28] sm:$0xff]
        %v3947 = vld [vmem:[#allocation4 + $0x30] sm:$0xff]
        %v3948 = vld [vmem:[#allocation4 + $0x38] sm:$0xff]
        %v3949 = vld [vmem:[%s1310] sm:$0xff]
        %v3950 = vld [vmem:[%s1310 + $0x8] sm:$0xff]
        %v3951 = vld [vmem:[%s1310 + $0x10] sm:$0xff]
        %v3952 = vld [vmem:[%s1310 + $0x18] sm:$0xff]
        %v3953 = vld [vmem:[%s1310 + $0x20] sm:$0xff]
        %v3954 = vld [vmem:[%s1310 + $0x28] sm:$0xff]
        %v3955 = vld [vmem:[%s1310 + $0x30] sm:$0xff]
        %v3956 = vld [vmem:[%s1310 + $0x38] sm:$0xff]
        %3957 = vmatprep.subr.mxu0 0.0
        %3958 = vmatpush1.msra.mxu0 %v3608
        %3959 = vmatprep.subr.mxu0 0.0
        %3960 = vmatpush1.msra.mxu0 %v3607
        %3961 = vmatprep.subr.mxu0 0.0
        %3962 = vmatpush1.msra.mxu0 %v3606
        %3963 = vmatprep.subr.mxu0 0.0
        %3964 = vmatpush1.msra.mxu0 %v3605
        %3965 = vmatprep.subr.mxu0 0.0
        %3966 = vmatpush1.msra.mxu0 %v3604
        %3967 = vmatprep.subr.mxu0 0.0
        %3968 = vmatpush1.msra.mxu0 %v3603
        %3969 = vmatprep.subr.mxu0 0.0
        %3970 = vmatpush1.msra.mxu0 %v3602
        %3971 = vmatprep.subr.mxu0 0.0
        %3972 = vmatpush1.msra.mxu0 %v3601
        %3973 = vmatprep.subr.mxu0 0.0
        %3974 = vmatpush1.msra.mxu0 %v3600
        %3975 = vmatprep.subr.mxu0 0.0
        %3976 = vmatpush1.msra.mxu0 %v3599
        %3977 = vmatprep.subr.mxu0 0.0
        %3978 = vmatpush1.msra.mxu0 %v3598
        %3979 = vmatprep.subr.mxu0 0.0
        %3980 = vmatpush1.msra.mxu0 %v3597
        %3981 = vmatprep.subr.mxu0 0.0
        %3982 = vmatpush1.msra.mxu0 %v3596
        %3983 = vmatprep.subr.mxu0 0.0
        %3984 = vmatpush1.msra.mxu0 %v3595
        %3985 = vmatprep.subr.mxu0 0.0
        %3986 = vmatpush1.msra.mxu0 %v3594
        %3987 = vmatprep.subr.mxu0 0.0
        %3988 = vmatpush1.msra.mxu0 %v3593
        %3989 = vmatprep.subr.mxu0 0.0
        %3990 = vmatpush2.msra.mxu0 0.0
        %3991 = vmatprep.subr.mxu0 0.0
        %3992 = vmatpush2.msra.mxu0 0.0
        %3993 = vmatprep.subr.mxu0 0.0
        %3994 = vmatpush2.msra.mxu0 0.0
        %3995 = vmatprep.subr.mxu0 0.0
        %3996 = vmatpush2.msra.mxu0 0.0
        %3997 = vmatprep.subr.mxu0 0.0
        %3998 = vmatpush2.msra.mxu0 0.0
        %3999 = vmatprep.subr.mxu0 0.0
        %4000 = vmatpush2.msra.mxu0 0.0
        %4001 = vmatprep.subr.mxu0 0.0
        %4002 = vmatpush2.msra.mxu0 0.0
        %4003 = vmatprep.subr.mxu0 0.0
        %4004 = vmatpush2.msra.mxu0 0.0
        %4005 = vmatprep.subr.mxu0 0.0
        %4006 = vmatpush2.msra.mxu0 0.0
        %4007 = vmatprep.subr.mxu0 0.0
        %4008 = vmatpush2.msra.mxu0 0.0
        %4009 = vmatprep.subr.mxu0 0.0
        %4010 = vmatpush2.msra.mxu0 0.0
        %4011 = vmatprep.subr.mxu0 0.0
        %4012 = vmatpush2.msra.mxu0 0.0
        %4013 = vmatprep.subr.mxu0 0.0
        %4014 = vmatpush2.msra.mxu0 0.0
        %4015 = vmatprep.subr.mxu0 0.0
        %4016 = vmatpush2.msra.mxu0 0.0
        %4017 = vmatprep.subr.mxu0 0.0
        %4018 = vmatpush2.msra.mxu0 0.0
        %4019 = vmatprep.subr.mxu0 0.0
        %4020 = vmatpush2.msra.mxu0 0.0
        %4021 = vmatprep.mubr.f32.mxu0 0.0
        %4022 = vmatmul.mubr.f32.gmra.mxu0 %v3949
        %v4023 = vpop.f32.mrf.mxu0
        %v4024 = vadd.f32 0.0, %v4023
        %v4025 = vpop.f32.mrf.mxu0
        %4026 = vmatprep.mubr.f32.mxu0 0.0
        %4027 = vmatmul.mubr.f32.gmra.mxu0 %v3950
        %v4028 = vpop.f32.mrf.mxu0
        %v4029 = vadd.f32 0.0, %v4028
        %v4030 = vpop.f32.mrf.mxu0
        %4031 = vmatprep.mubr.f32.mxu0 0.0
        %4032 = vmatmul.mubr.f32.gmra.mxu0 %v3951
        %v4033 = vpop.f32.mrf.mxu0
        %v4034 = vadd.f32 0.0, %v4033
        %v4035 = vpop.f32.mrf.mxu0
        %4036 = vmatprep.mubr.f32.mxu0 0.0
        %4037 = vmatmul.mubr.f32.gmra.mxu0 %v3952
        %v4038 = vpop.f32.mrf.mxu0
        %v4039 = vadd.f32 0.0, %v4038
        %v4040 = vpop.f32.mrf.mxu0
        %4041 = vmatprep.mubr.f32.mxu0 0.0
        %4042 = vmatmul.mubr.f32.gmra.mxu0 %v3953
        %v4043 = vpop.f32.mrf.mxu0
        %v4044 = vadd.f32 0.0, %v4043
        %v4045 = vpop.f32.mrf.mxu0
        %4046 = vmatprep.mubr.f32.mxu0 0.0
        %4047 = vmatmul.mubr.f32.gmra.mxu0 %v3954
        %v4048 = vpop.f32.mrf.mxu0
        %v4049 = vadd.f32 0.0, %v4048
        %v4050 = vpop.f32.mrf.mxu0
        %4051 = vmatprep.mubr.f32.mxu0 0.0
        %4052 = vmatmul.mubr.f32.gmra.mxu0 %v3955
        %v4053 = vpop.f32.mrf.mxu0
        %v4054 = vadd.f32 0.0, %v4053
        %v4055 = vpop.f32.mrf.mxu0
        %4056 = vmatprep.mubr.f32.mxu0 0.0
        %4057 = vmatmul.mubr.f32.gmra.mxu0 %v3956
        %v4058 = vpop.f32.mrf.mxu0
        %v4059 = vadd.f32 0.0, %v4058
        %v4060 = vpop.f32.mrf.mxu0
        %4061 = vdwg.mxu0
        %v4062 = vadd.f32 %v3941, %v4024
        %v4063 = vadd.f32 %v3942, %v4029
        %v4064 = vadd.f32 %v3943, %v4034
        %v4065 = vadd.f32 %v3944, %v4039
        %v4066 = vadd.f32 %v3945, %v4044
        %v4067 = vadd.f32 %v3946, %v4049
        %v4068 = vadd.f32 %v3947, %v4054
        %v4069 = vadd.f32 %v3948, %v4059
        %4070 = vst.msk [vmem:[#allocation4] sm:$0xff] %vm2166, %v4062
        %4071 = vst.msk [vmem:[#allocation4 + $0x8] sm:$0xff] %vm2166, %v4063
        %4072 = vst.msk [vmem:[#allocation4 + $0x10] sm:$0xff] %vm2166, %v4064
        %4073 = vst.msk [vmem:[#allocation4 + $0x18] sm:$0xff] %vm2166, %v4065
        %4074 = vst.msk [vmem:[#allocation4 + $0x20] sm:$0xff] %vm2166, %v4066
        %4075 = vst.msk [vmem:[#allocation4 + $0x28] sm:$0xff] %vm2166, %v4067
        %4076 = vst.msk [vmem:[#allocation4 + $0x30] sm:$0xff] %vm2166, %v4068
        %4077 = vst.msk [vmem:[#allocation4 + $0x38] sm:$0xff] %vm2166, %v4069
        %p4078 = scmp.eq.s32.totalorder %s89, 1
        // Predicated region
        $region211: #{egnn_net_forward.1} parent=197 // pred_check
          %p4079 = pneg %p4078
        $region212: #{egnn_net_forward.1} parent=197 // pred_check_branch
          %4081 = sbr.rel (%p4079) target = $region214
        $region213: #{egnn_net_forward.1} parent=197 // pred_region
          %v4082 = vld [vmem:[#allocation4] sm:$0xff]
          %v4083 = vld [vmem:[#allocation4 + $0x8] sm:$0xff]
          %v4084 = vld [vmem:[#allocation4 + $0x10] sm:$0xff]
          %v4085 = vld [vmem:[#allocation4 + $0x18] sm:$0xff]
          %v4086 = vld [vmem:[#allocation4 + $0x20] sm:$0xff]
          %v4087 = vld [vmem:[#allocation4 + $0x28] sm:$0xff]
          %v4088 = vld [vmem:[#allocation4 + $0x30] sm:$0xff]
          %v4089 = vld [vmem:[#allocation4 + $0x38] sm:$0xff]
          %v4090 = vld [vmem:[%s1566] sm:$0xff]
          %v4091 = vld [vmem:[%s1566 + $0x8] sm:$0xff]
          %v4092 = vld [vmem:[%s1566 + $0x10] sm:$0xff]
          %v4093 = vld [vmem:[%s1566 + $0x18] sm:$0xff]
          %v4094 = vld [vmem:[%s1571] sm:$0xff]
          %v4095 = vld [vmem:[%s1571 + $0x8] sm:$0xff]
          %v4096 = vld [vmem:[%s1571 + $0x10] sm:$0xff]
          %v4097 = vld [vmem:[%s1571 + $0x18] sm:$0xff]
          %v4099 = vsel %vm2166, %v4082, 0
          %v4102 = vsel %vm2166, %v4083, 0
          %v4105 = vsel %vm2166, %v4084, 0
          %v4108 = vsel %vm2166, %v4085, 0
          %v4111 = vsel %vm2166, %v4086, 0
          %v4114 = vsel %vm2166, %v4087, 0
          %v4117 = vsel %vm2166, %v4088, 0
          %v4120 = vsel %vm2166, %v4089, 0
          %4122 = vmatprep.subr.mxu0 0.0
          %4123 = vmatpush1.msra.mxu0 0.0
          %4124 = vmatprep.subr.mxu0 0.0
          %4125 = vmatpush1.msra.mxu0 0.0
          %4126 = vmatprep.subr.mxu0 0.0
          %4127 = vmatpush1.msra.mxu0 0.0
          %4128 = vmatprep.subr.mxu0 0.0
          %4129 = vmatpush1.msra.mxu0 0.0
          %4130 = vmatprep.subr.mxu0 0.0
          %4131 = vmatpush1.msra.mxu0 0.0
          %4132 = vmatprep.subr.mxu0 0.0
          %4133 = vmatpush1.msra.mxu0 0.0
          %4134 = vmatprep.subr.mxu0 0.0
          %4135 = vmatpush1.msra.mxu0 0.0
          %4136 = vmatprep.subr.mxu0 0.0
          %4137 = vmatpush1.msra.mxu0 0.0
          %4138 = vmatprep.subr.mxu0 0.0
          %4139 = vmatpush1.msra.mxu0 0.0
          %4140 = vmatprep.subr.mxu0 0.0
          %4141 = vmatpush1.msra.mxu0 0.0
          %4142 = vmatprep.subr.mxu0 0.0
          %4143 = vmatpush1.msra.mxu0 0.0
          %4144 = vmatprep.subr.mxu0 0.0
          %4145 = vmatpush1.msra.mxu0 0.0
          %4146 = vmatprep.subr.mxu0 0.0
          %4147 = vmatpush1.msra.mxu0 %v4097
          %4148 = vmatprep.subr.mxu0 0.0
          %4149 = vmatpush1.msra.mxu0 %v4096
          %4150 = vmatprep.subr.mxu0 0.0
          %4151 = vmatpush1.msra.mxu0 %v4095
          %4152 = vmatprep.subr.mxu0 0.0
          %4153 = vmatpush1.msra.mxu0 %v4094
          %4154 = vmatprep.subr.mxu0 0.0
          %4155 = vmatpush2.msra.mxu0 0.0
          %4156 = vmatprep.subr.mxu0 0.0
          %4157 = vmatpush2.msra.mxu0 0.0
          %4158 = vmatprep.subr.mxu0 0.0
          %4159 = vmatpush2.msra.mxu0 0.0
          %4160 = vmatprep.subr.mxu0 0.0
          %4161 = vmatpush2.msra.mxu0 0.0
          %4162 = vmatprep.subr.mxu0 0.0
          %4163 = vmatpush2.msra.mxu0 0.0
          %4164 = vmatprep.subr.mxu0 0.0
          %4165 = vmatpush2.msra.mxu0 0.0
          %4166 = vmatprep.subr.mxu0 0.0
          %4167 = vmatpush2.msra.mxu0 0.0
          %4168 = vmatprep.subr.mxu0 0.0
          %4169 = vmatpush2.msra.mxu0 0.0
          %4170 = vmatprep.subr.mxu0 0.0
          %4171 = vmatpush2.msra.mxu0 0.0
          %4172 = vmatprep.subr.mxu0 0.0
          %4173 = vmatpush2.msra.mxu0 0.0
          %4174 = vmatprep.subr.mxu0 0.0
          %4175 = vmatpush2.msra.mxu0 0.0
          %4176 = vmatprep.subr.mxu0 0.0
          %4177 = vmatpush2.msra.mxu0 0.0
          %4178 = vmatprep.subr.mxu0 0.0
          %4179 = vmatpush2.msra.mxu0 0.0
          %4180 = vmatprep.subr.mxu0 0.0
          %4181 = vmatpush2.msra.mxu0 0.0
          %4182 = vmatprep.subr.mxu0 0.0
          %4183 = vmatpush2.msra.mxu0 0.0
          %4184 = vmatprep.subr.mxu0 0.0
          %4185 = vmatpush2.msra.mxu0 0.0
          %4186 = vmatprep.mubr.f32.mxu0 0.0
          %4187 = vmatmul.mubr.f32.gmra.mxu0 %v4099
          %v4188 = vpop.f32.mrf.mxu0
          %v4189 = vadd.f32 0.0, %v4188
          %v4190 = vpop.f32.mrf.mxu0
          %4191 = vmatprep.mubr.f32.mxu0 0.0
          %4192 = vmatmul.mubr.f32.gmra.mxu0 %v4102
          %v4193 = vpop.f32.mrf.mxu0
          %v4194 = vadd.f32 0.0, %v4193
          %v4195 = vpop.f32.mrf.mxu0
          %4196 = vmatprep.mubr.f32.mxu0 0.0
          %4197 = vmatmul.mubr.f32.gmra.mxu0 %v4105
          %v4198 = vpop.f32.mrf.mxu0
          %v4199 = vadd.f32 0.0, %v4198
          %v4200 = vpop.f32.mrf.mxu0
          %4201 = vmatprep.mubr.f32.mxu0 0.0
          %4202 = vmatmul.mubr.f32.gmra.mxu0 %v4108
          %v4203 = vpop.f32.mrf.mxu0
          %v4204 = vadd.f32 0.0, %v4203
          %v4205 = vpop.f32.mrf.mxu0
          %4206 = vmatprep.mubr.f32.mxu0 0.0
          %4207 = vmatmul.mubr.f32.gmra.mxu0 %v4111
          %v4208 = vpop.f32.mrf.mxu0
          %v4209 = vadd.f32 0.0, %v4208
          %v4210 = vpop.f32.mrf.mxu0
          %4211 = vmatprep.mubr.f32.mxu0 0.0
          %4212 = vmatmul.mubr.f32.gmra.mxu0 %v4114
          %v4213 = vpop.f32.mrf.mxu0
          %v4214 = vadd.f32 0.0, %v4213
          %v4215 = vpop.f32.mrf.mxu0
          %4216 = vmatprep.mubr.f32.mxu0 0.0
          %4217 = vmatmul.mubr.f32.gmra.mxu0 %v4117
          %v4218 = vpop.f32.mrf.mxu0
          %v4219 = vadd.f32 0.0, %v4218
          %v4220 = vpop.f32.mrf.mxu0
          %4221 = vmatprep.mubr.f32.mxu0 0.0
          %4222 = vmatmul.mubr.f32.gmra.mxu0 %v4120
          %v4223 = vpop.f32.mrf.mxu0
          %v4224 = vadd.f32 0.0, %v4223
          %v4225 = vpop.f32.mrf.mxu0
          %4226 = vdwg.mxu0
          %v4228 = vsel %vm2166, %v1706, 0
          %v4231 = vsel %vm2166, %v1707, 0
          %v4234 = vsel %vm2166, %v1708, 0
          %v4237 = vsel %vm2166, %v1709, 0
          %v4240 = vsel %vm2166, %v1710, 0
          %v4243 = vsel %vm2166, %v1711, 0
          %v4246 = vsel %vm2166, %v1712, 0
          %v4249 = vsel %vm2166, %v1713, 0
          %4251 = vmatprep.subr.mxu0 0.0
          %4252 = vmatpush1.msra.mxu0 0.0
          %4253 = vmatprep.subr.mxu0 0.0
          %4254 = vmatpush1.msra.mxu0 0.0
          %4255 = vmatprep.subr.mxu0 0.0
          %4256 = vmatpush1.msra.mxu0 0.0
          %4257 = vmatprep.subr.mxu0 0.0
          %4258 = vmatpush1.msra.mxu0 0.0
          %4259 = vmatprep.subr.mxu0 0.0
          %4260 = vmatpush1.msra.mxu0 0.0
          %4261 = vmatprep.subr.mxu0 0.0
          %4262 = vmatpush1.msra.mxu0 0.0
          %4263 = vmatprep.subr.mxu0 0.0
          %4264 = vmatpush1.msra.mxu0 0.0
          %4265 = vmatprep.subr.mxu0 0.0
          %4266 = vmatpush1.msra.mxu0 0.0
          %4267 = vmatprep.subr.mxu0 0.0
          %4268 = vmatpush1.msra.mxu0 0.0
          %4269 = vmatprep.subr.mxu0 0.0
          %4270 = vmatpush1.msra.mxu0 0.0
          %4271 = vmatprep.subr.mxu0 0.0
          %4272 = vmatpush1.msra.mxu0 0.0
          %4273 = vmatprep.subr.mxu0 0.0
          %4274 = vmatpush1.msra.mxu0 0.0
          %4275 = vmatprep.subr.mxu0 0.0
          %4276 = vmatpush1.msra.mxu0 %v4093
          %4277 = vmatprep.subr.mxu0 0.0
          %4278 = vmatpush1.msra.mxu0 %v4092
          %4279 = vmatprep.subr.mxu0 0.0
          %4280 = vmatpush1.msra.mxu0 %v4091
          %4281 = vmatprep.subr.mxu0 0.0
          %4282 = vmatpush1.msra.mxu0 %v4090
          %4283 = vmatprep.subr.mxu0 0.0
          %4284 = vmatpush2.msra.mxu0 0.0
          %4285 = vmatprep.subr.mxu0 0.0
          %4286 = vmatpush2.msra.mxu0 0.0
          %4287 = vmatprep.subr.mxu0 0.0
          %4288 = vmatpush2.msra.mxu0 0.0
          %4289 = vmatprep.subr.mxu0 0.0
          %4290 = vmatpush2.msra.mxu0 0.0
          %4291 = vmatprep.subr.mxu0 0.0
          %4292 = vmatpush2.msra.mxu0 0.0
          %4293 = vmatprep.subr.mxu0 0.0
          %4294 = vmatpush2.msra.mxu0 0.0
          %4295 = vmatprep.subr.mxu0 0.0
          %4296 = vmatpush2.msra.mxu0 0.0
          %4297 = vmatprep.subr.mxu0 0.0
          %4298 = vmatpush2.msra.mxu0 0.0
          %4299 = vmatprep.subr.mxu0 0.0
          %4300 = vmatpush2.msra.mxu0 0.0
          %4301 = vmatprep.subr.mxu0 0.0
          %4302 = vmatpush2.msra.mxu0 0.0
          %4303 = vmatprep.subr.mxu0 0.0
          %4304 = vmatpush2.msra.mxu0 0.0
          %4305 = vmatprep.subr.mxu0 0.0
          %4306 = vmatpush2.msra.mxu0 0.0
          %4307 = vmatprep.subr.mxu0 0.0
          %4308 = vmatpush2.msra.mxu0 0.0
          %4309 = vmatprep.subr.mxu0 0.0
          %4310 = vmatpush2.msra.mxu0 0.0
          %4311 = vmatprep.subr.mxu0 0.0
          %4312 = vmatpush2.msra.mxu0 0.0
          %4313 = vmatprep.subr.mxu0 0.0
          %4314 = vmatpush2.msra.mxu0 0.0
          %4315 = vmatprep.mubr.f32.mxu0 0.0
          %4316 = vmatmul.mubr.f32.gmra.mxu0 %v4228
          %v4317 = vpop.f32.mrf.mxu0
          %v4318 = vadd.f32 %v4189, %v4317
          %v4319 = vpop.f32.mrf.mxu0
          %4320 = vmatprep.mubr.f32.mxu0 0.0
          %4321 = vmatmul.mubr.f32.gmra.mxu0 %v4231
          %v4322 = vpop.f32.mrf.mxu0
          %v4323 = vadd.f32 %v4194, %v4322
          %v4324 = vpop.f32.mrf.mxu0
          %4325 = vmatprep.mubr.f32.mxu0 0.0
          %4326 = vmatmul.mubr.f32.gmra.mxu0 %v4234
          %v4327 = vpop.f32.mrf.mxu0
          %v4328 = vadd.f32 %v4199, %v4327
          %v4329 = vpop.f32.mrf.mxu0
          %4330 = vmatprep.mubr.f32.mxu0 0.0
          %4331 = vmatmul.mubr.f32.gmra.mxu0 %v4237
          %v4332 = vpop.f32.mrf.mxu0
          %v4333 = vadd.f32 %v4204, %v4332
          %v4334 = vpop.f32.mrf.mxu0
          %4335 = vmatprep.mubr.f32.mxu0 0.0
          %4336 = vmatmul.mubr.f32.gmra.mxu0 %v4240
          %v4337 = vpop.f32.mrf.mxu0
          %v4338 = vadd.f32 %v4209, %v4337
          %v4339 = vpop.f32.mrf.mxu0
          %4340 = vmatprep.mubr.f32.mxu0 0.0
          %4341 = vmatmul.mubr.f32.gmra.mxu0 %v4243
          %v4342 = vpop.f32.mrf.mxu0
          %v4343 = vadd.f32 %v4214, %v4342
          %v4344 = vpop.f32.mrf.mxu0
          %4345 = vmatprep.mubr.f32.mxu0 0.0
          %4346 = vmatmul.mubr.f32.gmra.mxu0 %v4246
          %v4347 = vpop.f32.mrf.mxu0
          %v4348 = vadd.f32 %v4219, %v4347
          %v4349 = vpop.f32.mrf.mxu0
          %4350 = vmatprep.mubr.f32.mxu0 0.0
          %4351 = vmatmul.mubr.f32.gmra.mxu0 %v4249
          %v4352 = vpop.f32.mrf.mxu0
          %v4353 = vadd.f32 %v4224, %v4352
          %v4354 = vpop.f32.mrf.mxu0
          %4355 = vdwg.mxu0
          %v4356 = vld [vmem:[%s1574] sm:$0x1]
          %v4358 = vlaneseq
          %v4359 = vshrl.u32 %v4358, 7
          %v4360 = vsub.s32 0, %v4359
          %v4361 = vrot.slane %v4356, %v4360
          %v4363 = vadd.f32 %v4318, %v4361
          %v4364 = vadd.f32 %v4323, %v4361
          %v4365 = vadd.f32 %v4328, %v4361
          %v4366 = vadd.f32 %v4333, %v4361
          %v4367 = vadd.f32 %v4338, %v4361
          %v4368 = vadd.f32 %v4343, %v4361
          %v4369 = vadd.f32 %v4348, %v4361
          %v4370 = vadd.f32 %v4353, %v4361
          %v4371 = vxor.u32 %v4363, 2147483648
          %v4372 = vxor.u32 %v4364, 2147483648
          %v4373 = vxor.u32 %v4365, 2147483648
          %v4374 = vxor.u32 %v4366, 2147483648
          %v4375 = vxor.u32 %v4367, 2147483648
          %v4376 = vxor.u32 %v4368, 2147483648
          %v4377 = vxor.u32 %v4369, 2147483648
          %v4378 = vxor.u32 %v4370, 2147483648
          %v4379 = vmul.f32 %v4371, 1.442695
          %v4380 = vpow.pop %v4379
          %v4381 = vmul.f32 %v4372, 1.442695
          %v4382 = vpow.pop %v4381
          %v4383 = vmul.f32 %v4373, 1.442695
          %v4384 = vpow.pop %v4383
          %v4385 = vmul.f32 %v4374, 1.442695
          %v4386 = vpow.pop %v4385
          %v4387 = vmul.f32 %v4375, 1.442695
          %v4388 = vpow.pop %v4387
          %v4389 = vmul.f32 %v4376, 1.442695
          %v4390 = vpow.pop %v4389
          %v4391 = vmul.f32 %v4377, 1.442695
          %v4392 = vpow.pop %v4391
          %v4393 = vmul.f32 %v4378, 1.442695
          %v4394 = vpow.pop %v4393
          %v4395 = vadd.f32 %v4380, 1.0
          %v4396 = vadd.f32 %v4382, 1.0
          %v4397 = vadd.f32 %v4384, 1.0
          %v4398 = vadd.f32 %v4386, 1.0
          %v4399 = vadd.f32 %v4388, 1.0
          %v4400 = vadd.f32 %v4390, 1.0
          %v4401 = vadd.f32 %v4392, 1.0
          %v4402 = vadd.f32 %v4394, 1.0
          %v4403 = vrcp.pop %v4395
          %v4404 = vmul.f32 1.0, %v4403
          %v4405 = vrcp.pop %v4396
          %v4406 = vmul.f32 1.0, %v4405
          %v4407 = vrcp.pop %v4397
          %v4408 = vmul.f32 1.0, %v4407
          %v4409 = vrcp.pop %v4398
          %v4410 = vmul.f32 1.0, %v4409
          %v4411 = vrcp.pop %v4399
          %v4412 = vmul.f32 1.0, %v4411
          %v4413 = vrcp.pop %v4400
          %v4414 = vmul.f32 1.0, %v4413
          %v4415 = vrcp.pop %v4401
          %v4416 = vmul.f32 1.0, %v4415
          %v4417 = vrcp.pop %v4402
          %v4418 = vmul.f32 1.0, %v4417
          %v4419 = vmul.f32 %v4363, %v4404
          %v4420 = vmul.f32 %v4364, %v4406
          %v4421 = vmul.f32 %v4365, %v4408
          %v4422 = vmul.f32 %v4366, %v4410
          %v4423 = vmul.f32 %v4367, %v4412
          %v4424 = vmul.f32 %v4368, %v4414
          %v4425 = vmul.f32 %v4369, %v4416
          %v4426 = vmul.f32 %v4370, %v4418
          %v4427 = vld [vmem:[%s1579] sm:$0xff]
          %v4428 = vld [vmem:[%s1579 + $0x8] sm:$0xff]
          %v4429 = vld [vmem:[%s1579 + $0x10] sm:$0xff]
          %v4430 = vld [vmem:[%s1579 + $0x18] sm:$0xff]
          %v4431 = vld [vmem:[%s1579 + $0x20] sm:$0xff]
          %v4432 = vld [vmem:[%s1579 + $0x28] sm:$0xff]
          %v4433 = vld [vmem:[%s1579 + $0x30] sm:$0xff]
          %v4434 = vld [vmem:[%s1579 + $0x38] sm:$0xff]
          %v4436 = vsel %vm1747, %v4419, 0
          %v4439 = vsel %vm1747, %v4420, 0
          %v4442 = vsel %vm1747, %v4421, 0
          %v4445 = vsel %vm1747, %v4422, 0
          %v4448 = vsel %vm1747, %v4423, 0
          %v4451 = vsel %vm1747, %v4424, 0
          %v4454 = vsel %vm1747, %v4425, 0
          %v4457 = vsel %vm1747, %v4426, 0
          %4459 = vmatprep.subr.mxu0 0.0
          %4460 = vmatpush1.msra.mxu0 0.0
          %4461 = vmatprep.subr.mxu0 0.0
          %4462 = vmatpush1.msra.mxu0 0.0
          %4463 = vmatprep.subr.mxu0 0.0
          %4464 = vmatpush1.msra.mxu0 0.0
          %4465 = vmatprep.subr.mxu0 0.0
          %4466 = vmatpush1.msra.mxu0 0.0
          %4467 = vmatprep.subr.mxu0 0.0
          %4468 = vmatpush1.msra.mxu0 0.0
          %4469 = vmatprep.subr.mxu0 0.0
          %4470 = vmatpush1.msra.mxu0 0.0
          %4471 = vmatprep.subr.mxu0 0.0
          %4472 = vmatpush1.msra.mxu0 0.0
          %4473 = vmatprep.subr.mxu0 0.0
          %4474 = vmatpush1.msra.mxu0 0.0
          %4475 = vmatprep.subr.mxu0 0.0
          %4476 = vmatpush1.msra.mxu0 %v4434
          %4477 = vmatprep.subr.mxu0 0.0
          %4478 = vmatpush1.msra.mxu0 %v4433
          %4479 = vmatprep.subr.mxu0 0.0
          %4480 = vmatpush1.msra.mxu0 %v4432
          %4481 = vmatprep.subr.mxu0 0.0
          %4482 = vmatpush1.msra.mxu0 %v4431
          %4483 = vmatprep.subr.mxu0 0.0
          %4484 = vmatpush1.msra.mxu0 %v4430
          %4485 = vmatprep.subr.mxu0 0.0
          %4486 = vmatpush1.msra.mxu0 %v4429
          %4487 = vmatprep.subr.mxu0 0.0
          %4488 = vmatpush1.msra.mxu0 %v4428
          %4489 = vmatprep.subr.mxu0 0.0
          %4490 = vmatpush1.msra.mxu0 %v4427
          %4491 = vmatprep.subr.mxu0 0.0
          %4492 = vmatpush2.msra.mxu0 0.0
          %4493 = vmatprep.subr.mxu0 0.0
          %4494 = vmatpush2.msra.mxu0 0.0
          %4495 = vmatprep.subr.mxu0 0.0
          %4496 = vmatpush2.msra.mxu0 0.0
          %4497 = vmatprep.subr.mxu0 0.0
          %4498 = vmatpush2.msra.mxu0 0.0
          %4499 = vmatprep.subr.mxu0 0.0
          %4500 = vmatpush2.msra.mxu0 0.0
          %4501 = vmatprep.subr.mxu0 0.0
          %4502 = vmatpush2.msra.mxu0 0.0
          %4503 = vmatprep.subr.mxu0 0.0
          %4504 = vmatpush2.msra.mxu0 0.0
          %4505 = vmatprep.subr.mxu0 0.0
          %4506 = vmatpush2.msra.mxu0 0.0
          %4507 = vmatprep.subr.mxu0 0.0
          %4508 = vmatpush2.msra.mxu0 0.0
          %4509 = vmatprep.subr.mxu0 0.0
          %4510 = vmatpush2.msra.mxu0 0.0
          %4511 = vmatprep.subr.mxu0 0.0
          %4512 = vmatpush2.msra.mxu0 0.0
          %4513 = vmatprep.subr.mxu0 0.0
          %4514 = vmatpush2.msra.mxu0 0.0
          %4515 = vmatprep.subr.mxu0 0.0
          %4516 = vmatpush2.msra.mxu0 0.0
          %4517 = vmatprep.subr.mxu0 0.0
          %4518 = vmatpush2.msra.mxu0 0.0
          %4519 = vmatprep.subr.mxu0 0.0
          %4520 = vmatpush2.msra.mxu0 0.0
          %4521 = vmatprep.subr.mxu0 0.0
          %4522 = vmatpush2.msra.mxu0 0.0
          %4523 = vmatprep.mubr.f32.mxu0 0.0
          %4524 = vmatmul.mubr.f32.gmra.mxu0 %v4436
          %v4525 = vpop.f32.mrf.mxu0
          %v4526 = vadd.f32 0.0, %v4525
          %v4527 = vpop.f32.mrf.mxu0
          %4528 = vmatprep.mubr.f32.mxu0 0.0
          %4529 = vmatmul.mubr.f32.gmra.mxu0 %v4439
          %v4530 = vpop.f32.mrf.mxu0
          %v4531 = vadd.f32 0.0, %v4530
          %v4532 = vpop.f32.mrf.mxu0
          %4533 = vmatprep.mubr.f32.mxu0 0.0
          %4534 = vmatmul.mubr.f32.gmra.mxu0 %v4442
          %v4535 = vpop.f32.mrf.mxu0
          %v4536 = vadd.f32 0.0, %v4535
          %v4537 = vpop.f32.mrf.mxu0
          %4538 = vmatprep.mubr.f32.mxu0 0.0
          %4539 = vmatmul.mubr.f32.gmra.mxu0 %v4445
          %v4540 = vpop.f32.mrf.mxu0
          %v4541 = vadd.f32 0.0, %v4540
          %v4542 = vpop.f32.mrf.mxu0
          %4543 = vmatprep.mubr.f32.mxu0 0.0
          %4544 = vmatmul.mubr.f32.gmra.mxu0 %v4448
          %v4545 = vpop.f32.mrf.mxu0
          %v4546 = vadd.f32 0.0, %v4545
          %v4547 = vpop.f32.mrf.mxu0
          %4548 = vmatprep.mubr.f32.mxu0 0.0
          %4549 = vmatmul.mubr.f32.gmra.mxu0 %v4451
          %v4550 = vpop.f32.mrf.mxu0
          %v4551 = vadd.f32 0.0, %v4550
          %v4552 = vpop.f32.mrf.mxu0
          %4553 = vmatprep.mubr.f32.mxu0 0.0
          %4554 = vmatmul.mubr.f32.gmra.mxu0 %v4454
          %v4555 = vpop.f32.mrf.mxu0
          %v4556 = vadd.f32 0.0, %v4555
          %v4557 = vpop.f32.mrf.mxu0
          %4558 = vmatprep.mubr.f32.mxu0 0.0
          %4559 = vmatmul.mubr.f32.gmra.mxu0 %v4457
          %v4560 = vpop.f32.mrf.mxu0
          %v4561 = vadd.f32 0.0, %v4560
          %v4562 = vpop.f32.mrf.mxu0
          %4563 = vdwg.mxu0
          %v4564 = vadd.f32 %v1706, %v4526
          %v4565 = vadd.f32 %v1707, %v4531
          %v4566 = vadd.f32 %v1708, %v4536
          %v4567 = vadd.f32 %v1709, %v4541
          %v4568 = vadd.f32 %v1710, %v4546
          %v4569 = vadd.f32 %v1711, %v4551
          %v4570 = vadd.f32 %v1712, %v4556
          %v4571 = vadd.f32 %v1713, %v4561
          %v4572 = vld [vmem:[%s1582] sm:$0x1]
          %v4574 = vlaneseq
          %v4575 = vshrl.u32 %v4574, 7
          %v4576 = vsub.s32 0, %v4575
          %v4577 = vrot.slane %v4572, %v4576
          %v4579 = vadd.f32 %v4564, %v4577
          %v4580 = vadd.f32 %v4565, %v4577
          %v4581 = vadd.f32 %v4566, %v4577
          %v4582 = vadd.f32 %v4567, %v4577
          %v4583 = vadd.f32 %v4568, %v4577
          %v4584 = vadd.f32 %v4569, %v4577
          %v4585 = vadd.f32 %v4570, %v4577
          %v4586 = vadd.f32 %v4571, %v4577
          %v4587 = vld [vmem:[%s13] sm:$0xff]
          %v4588 = vld [vmem:[%s13 + $0x8] sm:$0xff]
          %v4589 = vld [vmem:[%s13 + $0x10] sm:$0xff]
          %v4590 = vld [vmem:[%s13 + $0x18] sm:$0xff]
          %v4591 = vld [vmem:[%s13 + $0x20] sm:$0xff]
          %v4592 = vld [vmem:[%s13 + $0x28] sm:$0xff]
          %v4593 = vld [vmem:[%s13 + $0x30] sm:$0xff]
          %v4594 = vld [vmem:[%s13 + $0x38] sm:$0xff]
          %v4595 = vld [vmem:[%s1518] sm:$0x3]
          %v4596 = vld [vmem:[%s1522] sm:$0x3]
          %vm4597 = vcmask 15360
          %v4599 = vsel %vm4597, %v4587, 0
          %v4602 = vsel %vm4597, %v4588, 0
          %v4605 = vsel %vm4597, %v4589, 0
          %v4608 = vsel %vm4597, %v4590, 0
          %v4611 = vsel %vm4597, %v4591, 0
          %v4614 = vsel %vm4597, %v4592, 0
          %v4617 = vsel %vm4597, %v4593, 0
          %v4620 = vsel %vm4597, %v4594, 0
          %v4623 = vsel %vm3348, %v4596, 0
          %4625 = vmatprep.subr.mxu0 0.0
          %4626 = vmatpush1.msra.mxu0 0.0
          %4627 = vmatprep.subr.mxu0 0.0
          %4628 = vmatpush1.msra.mxu0 0.0
          %4629 = vmatprep.subr.mxu0 0.0
          %4630 = vmatpush1.msra.mxu0 0.0
          %4631 = vmatprep.subr.mxu0 0.0
          %4632 = vmatpush1.msra.mxu0 0.0
          %4633 = vmatprep.subr.mxu0 0.0
          %4634 = vmatpush1.msra.mxu0 0.0
          %4635 = vmatprep.subr.mxu0 0.0
          %4636 = vmatpush1.msra.mxu0 0.0
          %4637 = vmatprep.subr.mxu0 0.0
          %4638 = vmatpush1.msra.mxu0 0.0
          %4639 = vmatprep.subr.mxu0 0.0
          %4640 = vmatpush1.msra.mxu0 0.0
          %4641 = vmatprep.subr.mxu0 0.0
          %4642 = vmatpush1.msra.mxu0 0.0
          %4643 = vmatprep.subr.mxu0 0.0
          %4644 = vmatpush1.msra.mxu0 0.0
          %4645 = vmatprep.subr.mxu0 0.0
          %4646 = vmatpush1.msra.mxu0 0.0
          %4647 = vmatprep.subr.mxu0 0.0
          %4648 = vmatpush1.msra.mxu0 0.0
          %4649 = vmatprep.subr.mxu0 0.0
          %4650 = vmatpush1.msra.mxu0 0.0
          %4651 = vmatprep.subr.mxu0 0.0
          %4652 = vmatpush1.msra.mxu0 0.0
          %4653 = vmatprep.subr.mxu0 0.0
          %4654 = vmatpush1.msra.mxu0 0.0
          %4655 = vmatprep.subr.mxu0 0.0
          %4656 = vmatpush1.msra.mxu0 %v4623
          %4657 = vmatprep.subr.mxu0 0.0
          %4658 = vmatpush2.msra.mxu0 0.0
          %4659 = vmatprep.subr.mxu0 0.0
          %4660 = vmatpush2.msra.mxu0 0.0
          %4661 = vmatprep.subr.mxu0 0.0
          %4662 = vmatpush2.msra.mxu0 0.0
          %4663 = vmatprep.subr.mxu0 0.0
          %4664 = vmatpush2.msra.mxu0 0.0
          %4665 = vmatprep.subr.mxu0 0.0
          %4666 = vmatpush2.msra.mxu0 0.0
          %4667 = vmatprep.subr.mxu0 0.0
          %4668 = vmatpush2.msra.mxu0 0.0
          %4669 = vmatprep.subr.mxu0 0.0
          %4670 = vmatpush2.msra.mxu0 0.0
          %4671 = vmatprep.subr.mxu0 0.0
          %4672 = vmatpush2.msra.mxu0 0.0
          %4673 = vmatprep.subr.mxu0 0.0
          %4674 = vmatpush2.msra.mxu0 0.0
          %4675 = vmatprep.subr.mxu0 0.0
          %4676 = vmatpush2.msra.mxu0 0.0
          %4677 = vmatprep.subr.mxu0 0.0
          %4678 = vmatpush2.msra.mxu0 0.0
          %4679 = vmatprep.subr.mxu0 0.0
          %4680 = vmatpush2.msra.mxu0 0.0
          %4681 = vmatprep.subr.mxu0 0.0
          %4682 = vmatpush2.msra.mxu0 0.0
          %4683 = vmatprep.subr.mxu0 0.0
          %4684 = vmatpush2.msra.mxu0 0.0
          %4685 = vmatprep.subr.mxu0 0.0
          %4686 = vmatpush2.msra.mxu0 0.0
          %4687 = vmatprep.subr.mxu0 0.0
          %4688 = vmatpush2.msra.mxu0 0.0
          %4689 = vmatprep.mubr.f32.mxu0 0.0
          %4690 = vmatmul.mubr.f32.gmra.mxu0 %v4599
          %v4691 = vpop.f32.mrf.mxu0
          %v4692 = vadd.f32 0.0, %v4691
          %v4693 = vpop.f32.mrf.mxu0
          %4694 = vmatprep.mubr.f32.mxu0 0.0
          %4695 = vmatmul.mubr.f32.gmra.mxu0 %v4602
          %v4696 = vpop.f32.mrf.mxu0
          %v4697 = vadd.f32 0.0, %v4696
          %v4698 = vpop.f32.mrf.mxu0
          %4699 = vmatprep.mubr.f32.mxu0 0.0
          %4700 = vmatmul.mubr.f32.gmra.mxu0 %v4605
          %v4701 = vpop.f32.mrf.mxu0
          %v4702 = vadd.f32 0.0, %v4701
          %v4703 = vpop.f32.mrf.mxu0
          %4704 = vmatprep.mubr.f32.mxu0 0.0
          %4705 = vmatmul.mubr.f32.gmra.mxu0 %v4608
          %v4706 = vpop.f32.mrf.mxu0
          %v4707 = vadd.f32 0.0, %v4706
          %v4708 = vpop.f32.mrf.mxu0
          %4709 = vmatprep.mubr.f32.mxu0 0.0
          %4710 = vmatmul.mubr.f32.gmra.mxu0 %v4611
          %v4711 = vpop.f32.mrf.mxu0
          %v4712 = vadd.f32 0.0, %v4711
          %v4713 = vpop.f32.mrf.mxu0
          %4714 = vmatprep.mubr.f32.mxu0 0.0
          %4715 = vmatmul.mubr.f32.gmra.mxu0 %v4614
          %v4716 = vpop.f32.mrf.mxu0
          %v4717 = vadd.f32 0.0, %v4716
          %v4718 = vpop.f32.mrf.mxu0
          %4719 = vmatprep.mubr.f32.mxu0 0.0
          %4720 = vmatmul.mubr.f32.gmra.mxu0 %v4617
          %v4721 = vpop.f32.mrf.mxu0
          %v4722 = vadd.f32 0.0, %v4721
          %v4723 = vpop.f32.mrf.mxu0
          %4724 = vmatprep.mubr.f32.mxu0 0.0
          %4725 = vmatmul.mubr.f32.gmra.mxu0 %v4620
          %v4726 = vpop.f32.mrf.mxu0
          %v4727 = vadd.f32 0.0, %v4726
          %v4728 = vpop.f32.mrf.mxu0
          %4729 = vdwg.mxu0
          %v4731 = vsel %vm3348, %v4595, 0
          %4733 = vmatprep.subr.mxu0 0.0
          %4734 = vmatpush1.msra.mxu0 0.0
          %4735 = vmatprep.subr.mxu0 0.0
          %4736 = vmatpush1.msra.mxu0 0.0
          %4737 = vmatprep.subr.mxu0 0.0
          %4738 = vmatpush1.msra.mxu0 0.0
          %4739 = vmatprep.subr.mxu0 0.0
          %4740 = vmatpush1.msra.mxu0 0.0
          %4741 = vmatprep.subr.mxu0 0.0
          %4742 = vmatpush1.msra.mxu0 0.0
          %4743 = vmatprep.subr.mxu0 0.0
          %4744 = vmatpush1.msra.mxu0 0.0
          %4745 = vmatprep.subr.mxu0 0.0
          %4746 = vmatpush1.msra.mxu0 0.0
          %4747 = vmatprep.subr.mxu0 0.0
          %4748 = vmatpush1.msra.mxu0 0.0
          %4749 = vmatprep.subr.mxu0 0.0
          %4750 = vmatpush1.msra.mxu0 0.0
          %4751 = vmatprep.subr.mxu0 0.0
          %4752 = vmatpush1.msra.mxu0 0.0
          %4753 = vmatprep.subr.mxu0 0.0
          %4754 = vmatpush1.msra.mxu0 0.0
          %4755 = vmatprep.subr.mxu0 0.0
          %4756 = vmatpush1.msra.mxu0 0.0
          %4757 = vmatprep.subr.mxu0 0.0
          %4758 = vmatpush1.msra.mxu0 0.0
          %4759 = vmatprep.subr.mxu0 0.0
          %4760 = vmatpush1.msra.mxu0 0.0
          %4761 = vmatprep.subr.mxu0 0.0
          %4762 = vmatpush1.msra.mxu0 0.0
          %4763 = vmatprep.subr.mxu0 0.0
          %4764 = vmatpush1.msra.mxu0 %v4731
          %4765 = vmatprep.subr.mxu0 0.0
          %4766 = vmatpush2.msra.mxu0 0.0
          %4767 = vmatprep.subr.mxu0 0.0
          %4768 = vmatpush2.msra.mxu0 0.0
          %4769 = vmatprep.subr.mxu0 0.0
          %4770 = vmatpush2.msra.mxu0 0.0
          %4771 = vmatprep.subr.mxu0 0.0
          %4772 = vmatpush2.msra.mxu0 0.0
          %4773 = vmatprep.subr.mxu0 0.0
          %4774 = vmatpush2.msra.mxu0 0.0
          %4775 = vmatprep.subr.mxu0 0.0
          %4776 = vmatpush2.msra.mxu0 0.0
          %4777 = vmatprep.subr.mxu0 0.0
          %4778 = vmatpush2.msra.mxu0 0.0
          %4779 = vmatprep.subr.mxu0 0.0
          %4780 = vmatpush2.msra.mxu0 0.0
          %4781 = vmatprep.subr.mxu0 0.0
          %4782 = vmatpush2.msra.mxu0 0.0
          %4783 = vmatprep.subr.mxu0 0.0
          %4784 = vmatpush2.msra.mxu0 0.0
          %4785 = vmatprep.subr.mxu0 0.0
          %4786 = vmatpush2.msra.mxu0 0.0
          %4787 = vmatprep.subr.mxu0 0.0
          %4788 = vmatpush2.msra.mxu0 0.0
          %4789 = vmatprep.subr.mxu0 0.0
          %4790 = vmatpush2.msra.mxu0 0.0
          %4791 = vmatprep.subr.mxu0 0.0
          %4792 = vmatpush2.msra.mxu0 0.0
          %4793 = vmatprep.subr.mxu0 0.0
          %4794 = vmatpush2.msra.mxu0 0.0
          %4795 = vmatprep.subr.mxu0 0.0
          %4796 = vmatpush2.msra.mxu0 0.0
          %4797 = vmatprep.mubr.f32.mxu0 0.0
          %4798 = vmatmul.mubr.f32.gmra.mxu0 %v4599
          %v4799 = vpop.f32.mrf.mxu0
          %v4800 = vadd.f32 1.0, %v4799
          %v4801 = vpop.f32.mrf.mxu0
          %4802 = vmatprep.mubr.f32.mxu0 0.0
          %4803 = vmatmul.mubr.f32.gmra.mxu0 %v4602
          %v4804 = vpop.f32.mrf.mxu0
          %v4805 = vadd.f32 1.0, %v4804
          %v4806 = vpop.f32.mrf.mxu0
          %4807 = vmatprep.mubr.f32.mxu0 0.0
          %4808 = vmatmul.mubr.f32.gmra.mxu0 %v4605
          %v4809 = vpop.f32.mrf.mxu0
          %v4810 = vadd.f32 1.0, %v4809
          %v4811 = vpop.f32.mrf.mxu0
          %4812 = vmatprep.mubr.f32.mxu0 0.0
          %4813 = vmatmul.mubr.f32.gmra.mxu0 %v4608
          %v4814 = vpop.f32.mrf.mxu0
          %v4815 = vadd.f32 1.0, %v4814
          %v4816 = vpop.f32.mrf.mxu0
          %4817 = vmatprep.mubr.f32.mxu0 0.0
          %4818 = vmatmul.mubr.f32.gmra.mxu0 %v4611
          %v4819 = vpop.f32.mrf.mxu0
          %v4820 = vadd.f32 1.0, %v4819
          %v4821 = vpop.f32.mrf.mxu0
          %4822 = vmatprep.mubr.f32.mxu0 0.0
          %4823 = vmatmul.mubr.f32.gmra.mxu0 %v4614
          %v4824 = vpop.f32.mrf.mxu0
          %v4825 = vadd.f32 1.0, %v4824
          %v4826 = vpop.f32.mrf.mxu0
          %4827 = vmatprep.mubr.f32.mxu0 0.0
          %4828 = vmatmul.mubr.f32.gmra.mxu0 %v4617
          %v4829 = vpop.f32.mrf.mxu0
          %v4830 = vadd.f32 1.0, %v4829
          %v4831 = vpop.f32.mrf.mxu0
          %4832 = vmatprep.mubr.f32.mxu0 0.0
          %4833 = vmatmul.mubr.f32.gmra.mxu0 %v4620
          %v4834 = vpop.f32.mrf.mxu0
          %v4835 = vadd.f32 1.0, %v4834
          %v4836 = vpop.f32.mrf.mxu0
          %4837 = vdwg.mxu0
          %v4838 = vmul.f32 %v4579, %v4800
          %v4839 = vmul.f32 %v4580, %v4805
          %v4840 = vmul.f32 %v4581, %v4810
          %v4841 = vmul.f32 %v4582, %v4815
          %v4842 = vmul.f32 %v4583, %v4820
          %v4843 = vmul.f32 %v4584, %v4825
          %v4844 = vmul.f32 %v4585, %v4830
          %v4845 = vmul.f32 %v4586, %v4835
          %v4846 = vadd.f32 %v4838, %v4692
          %v4847 = vadd.f32 %v4839, %v4697
          %v4848 = vadd.f32 %v4840, %v4702
          %v4849 = vadd.f32 %v4841, %v4707
          %v4850 = vadd.f32 %v4842, %v4712
          %v4851 = vadd.f32 %v4843, %v4717
          %v4852 = vadd.f32 %v4844, %v4722
          %v4853 = vadd.f32 %v4845, %v4727
          %v4854 = vld [vmem:[%s1587] sm:$0xff]
          %v4855 = vld [vmem:[%s1587 + $0x8] sm:$0xff]
          %v4856 = vld [vmem:[%s1587 + $0x10] sm:$0xff]
          %v4857 = vld [vmem:[%s1587 + $0x18] sm:$0xff]
          %v4858 = vld [vmem:[%s1590] sm:$0x1]
          %v4860 = vlaneseq
          %v4861 = vshrl.u32 %v4860, 7
          %v4862 = vsub.s32 0, %v4861
          %v4863 = vrot.slane %v4858, %v4862
          %v4866 = vsel %vm2166, %v4846, 0
          %v4869 = vsel %vm2166, %v4847, 0
          %v4872 = vsel %vm2166, %v4848, 0
          %v4875 = vsel %vm2166, %v4849, 0
          %v4878 = vsel %vm2166, %v4850, 0
          %v4881 = vsel %vm2166, %v4851, 0
          %v4884 = vsel %vm2166, %v4852, 0
          %v4887 = vsel %vm2166, %v4853, 0
          %4889 = vmatprep.subr.mxu0 0.0
          %4890 = vmatpush1.msra.mxu0 0.0
          %4891 = vmatprep.subr.mxu0 0.0
          %4892 = vmatpush1.msra.mxu0 0.0
          %4893 = vmatprep.subr.mxu0 0.0
          %4894 = vmatpush1.msra.mxu0 0.0
          %4895 = vmatprep.subr.mxu0 0.0
          %4896 = vmatpush1.msra.mxu0 0.0
          %4897 = vmatprep.subr.mxu0 0.0
          %4898 = vmatpush1.msra.mxu0 0.0
          %4899 = vmatprep.subr.mxu0 0.0
          %4900 = vmatpush1.msra.mxu0 0.0
          %4901 = vmatprep.subr.mxu0 0.0
          %4902 = vmatpush1.msra.mxu0 0.0
          %4903 = vmatprep.subr.mxu0 0.0
          %4904 = vmatpush1.msra.mxu0 0.0
          %4905 = vmatprep.subr.mxu0 0.0
          %4906 = vmatpush1.msra.mxu0 0.0
          %4907 = vmatprep.subr.mxu0 0.0
          %4908 = vmatpush1.msra.mxu0 0.0
          %4909 = vmatprep.subr.mxu0 0.0
          %4910 = vmatpush1.msra.mxu0 0.0
          %4911 = vmatprep.subr.mxu0 0.0
          %4912 = vmatpush1.msra.mxu0 0.0
          %4913 = vmatprep.subr.mxu0 0.0
          %4914 = vmatpush1.msra.mxu0 %v4857
          %4915 = vmatprep.subr.mxu0 0.0
          %4916 = vmatpush1.msra.mxu0 %v4856
          %4917 = vmatprep.subr.mxu0 0.0
          %4918 = vmatpush1.msra.mxu0 %v4855
          %4919 = vmatprep.subr.mxu0 0.0
          %4920 = vmatpush1.msra.mxu0 %v4854
          %4921 = vmatprep.subr.mxu0 0.0
          %4922 = vmatpush2.msra.mxu0 0.0
          %4923 = vmatprep.subr.mxu0 0.0
          %4924 = vmatpush2.msra.mxu0 0.0
          %4925 = vmatprep.subr.mxu0 0.0
          %4926 = vmatpush2.msra.mxu0 0.0
          %4927 = vmatprep.subr.mxu0 0.0
          %4928 = vmatpush2.msra.mxu0 0.0
          %4929 = vmatprep.subr.mxu0 0.0
          %4930 = vmatpush2.msra.mxu0 0.0
          %4931 = vmatprep.subr.mxu0 0.0
          %4932 = vmatpush2.msra.mxu0 0.0
          %4933 = vmatprep.subr.mxu0 0.0
          %4934 = vmatpush2.msra.mxu0 0.0
          %4935 = vmatprep.subr.mxu0 0.0
          %4936 = vmatpush2.msra.mxu0 0.0
          %4937 = vmatprep.subr.mxu0 0.0
          %4938 = vmatpush2.msra.mxu0 0.0
          %4939 = vmatprep.subr.mxu0 0.0
          %4940 = vmatpush2.msra.mxu0 0.0
          %4941 = vmatprep.subr.mxu0 0.0
          %4942 = vmatpush2.msra.mxu0 0.0
          %4943 = vmatprep.subr.mxu0 0.0
          %4944 = vmatpush2.msra.mxu0 0.0
          %4945 = vmatprep.subr.mxu0 0.0
          %4946 = vmatpush2.msra.mxu0 0.0
          %4947 = vmatprep.subr.mxu0 0.0
          %4948 = vmatpush2.msra.mxu0 0.0
          %4949 = vmatprep.subr.mxu0 0.0
          %4950 = vmatpush2.msra.mxu0 0.0
          %4951 = vmatprep.subr.mxu0 0.0
          %4952 = vmatpush2.msra.mxu0 0.0
          %4953 = vmatprep.mubr.f32.mxu0 0.0
          %4954 = vmatmul.mubr.f32.gmra.mxu0 %v4866
          %v4955 = vpop.f32.mrf.mxu0
          %v4956 = vadd.f32 %v4863, %v4955
          %v4957 = vpop.f32.mrf.mxu0
          %4958 = vmatprep.mubr.f32.mxu0 0.0
          %4959 = vmatmul.mubr.f32.gmra.mxu0 %v4869
          %v4960 = vpop.f32.mrf.mxu0
          %v4961 = vadd.f32 %v4863, %v4960
          %v4962 = vpop.f32.mrf.mxu0
          %4963 = vmatprep.mubr.f32.mxu0 0.0
          %4964 = vmatmul.mubr.f32.gmra.mxu0 %v4872
          %v4965 = vpop.f32.mrf.mxu0
          %v4966 = vadd.f32 %v4863, %v4965
          %v4967 = vpop.f32.mrf.mxu0
          %4968 = vmatprep.mubr.f32.mxu0 0.0
          %4969 = vmatmul.mubr.f32.gmra.mxu0 %v4875
          %v4970 = vpop.f32.mrf.mxu0
          %v4971 = vadd.f32 %v4863, %v4970
          %v4972 = vpop.f32.mrf.mxu0
          %4973 = vmatprep.mubr.f32.mxu0 0.0
          %4974 = vmatmul.mubr.f32.gmra.mxu0 %v4878
          %v4975 = vpop.f32.mrf.mxu0
          %v4976 = vadd.f32 %v4863, %v4975
          %v4977 = vpop.f32.mrf.mxu0
          %4978 = vmatprep.mubr.f32.mxu0 0.0
          %4979 = vmatmul.mubr.f32.gmra.mxu0 %v4881
          %v4980 = vpop.f32.mrf.mxu0
          %v4981 = vadd.f32 %v4863, %v4980
          %v4982 = vpop.f32.mrf.mxu0
          %4983 = vmatprep.mubr.f32.mxu0 0.0
          %4984 = vmatmul.mubr.f32.gmra.mxu0 %v4884
          %v4985 = vpop.f32.mrf.mxu0
          %v4986 = vadd.f32 %v4863, %v4985
          %v4987 = vpop.f32.mrf.mxu0
          %4988 = vmatprep.mubr.f32.mxu0 0.0
          %4989 = vmatmul.mubr.f32.gmra.mxu0 %v4887
          %v4990 = vpop.f32.mrf.mxu0
          %v4991 = vadd.f32 %v4863, %v4990
          %v4992 = vpop.f32.mrf.mxu0
          %4993 = vdwg.mxu0
          %v4994 = vxor.u32 %v4956, 2147483648
          %v4995 = vxor.u32 %v4961, 2147483648
          %v4996 = vxor.u32 %v4966, 2147483648
          %v4997 = vxor.u32 %v4971, 2147483648
          %v4998 = vxor.u32 %v4976, 2147483648
          %v4999 = vxor.u32 %v4981, 2147483648
          %v5000 = vxor.u32 %v4986, 2147483648
          %v5001 = vxor.u32 %v4991, 2147483648
          %v5002 = vmul.f32 %v4994, 1.442695
          %v5003 = vpow.pop %v5002
          %v5004 = vmul.f32 %v4995, 1.442695
          %v5005 = vpow.pop %v5004
          %v5006 = vmul.f32 %v4996, 1.442695
          %v5007 = vpow.pop %v5006
          %v5008 = vmul.f32 %v4997, 1.442695
          %v5009 = vpow.pop %v5008
          %v5010 = vmul.f32 %v4998, 1.442695
          %v5011 = vpow.pop %v5010
          %v5012 = vmul.f32 %v4999, 1.442695
          %v5013 = vpow.pop %v5012
          %v5014 = vmul.f32 %v5000, 1.442695
          %v5015 = vpow.pop %v5014
          %v5016 = vmul.f32 %v5001, 1.442695
          %v5017 = vpow.pop %v5016
          %v5018 = vadd.f32 %v5003, 1.0
          %v5019 = vadd.f32 %v5005, 1.0
          %v5020 = vadd.f32 %v5007, 1.0
          %v5021 = vadd.f32 %v5009, 1.0
          %v5022 = vadd.f32 %v5011, 1.0
          %v5023 = vadd.f32 %v5013, 1.0
          %v5024 = vadd.f32 %v5015, 1.0
          %v5025 = vadd.f32 %v5017, 1.0
          %v5026 = vrcp.pop %v5018
          %v5027 = vmul.f32 1.0, %v5026
          %v5028 = vrcp.pop %v5019
          %v5029 = vmul.f32 1.0, %v5028
          %v5030 = vrcp.pop %v5020
          %v5031 = vmul.f32 1.0, %v5030
          %v5032 = vrcp.pop %v5021
          %v5033 = vmul.f32 1.0, %v5032
          %v5034 = vrcp.pop %v5022
          %v5035 = vmul.f32 1.0, %v5034
          %v5036 = vrcp.pop %v5023
          %v5037 = vmul.f32 1.0, %v5036
          %v5038 = vrcp.pop %v5024
          %v5039 = vmul.f32 1.0, %v5038
          %v5040 = vrcp.pop %v5025
          %v5041 = vmul.f32 1.0, %v5040
          %v5042 = vmul.f32 %v4956, %v5027
          %v5043 = vmul.f32 %v4961, %v5029
          %v5044 = vmul.f32 %v4966, %v5031
          %v5045 = vmul.f32 %v4971, %v5033
          %v5046 = vmul.f32 %v4976, %v5035
          %v5047 = vmul.f32 %v4981, %v5037
          %v5048 = vmul.f32 %v4986, %v5039
          %v5049 = vmul.f32 %v4991, %v5041
          %v5050 = vsel %vm2166, %v5042, 0.0
          %v5051 = vsel %vm2166, %v5043, 0.0
          %v5052 = vadd.f32 %v5050, %v5051
          %v5053 = vsel %vm2166, %v5044, 0.0
          %v5054 = vadd.f32 %v5052, %v5053
          %v5055 = vsel %vm2166, %v5045, 0.0
          %v5056 = vadd.f32 %v5054, %v5055
          %v5057 = vsel %vm2166, %v5046, 0.0
          %v5058 = vadd.f32 %v5056, %v5057
          %v5059 = vsel %vm2166, %v5047, 0.0
          %v5060 = vadd.f32 %v5058, %v5059
          %v5061 = vsel %vm2166, %v5048, 0.0
          %v5062 = vadd.f32 %v5060, %v5061
          %v5063 = vsel %vm2166, %v5049, 0.0
          %v5064 = vadd.f32 %v5062, %v5063
          %5065 = vadd.xlane.f32.xlu0 %v5064
          %v5066 = vpop.xlane.xlu0 %5065
          %v5067 = vrot.slane %v5066, 4
          %v5068 = vadd.f32 %v5066, %v5067
          %v5069 = vrot.slane %v5068, 2
          %v5070 = vadd.f32 %v5068, %v5069
          %v5071 = vrot.slane %v5070, 1
          %v5072 = vadd.f32 %v5070, %v5071
          %s5073 = vtos %v5072
          %v5074 = vrcp.pop 2048.0
          %s5075 = vtos %v5074
          %s5076 = smul.f32 %s5073, %s5075
          %v5077 = vstv %s5076
          %v5078 = vsub.f32 %v5042, %v5077
          %v5079 = vsub.f32 %v5043, %v5077
          %v5080 = vsub.f32 %v5044, %v5077
          %v5081 = vsub.f32 %v5045, %v5077
          %v5082 = vsub.f32 %v5046, %v5077
          %v5083 = vsub.f32 %v5047, %v5077
          %v5084 = vsub.f32 %v5048, %v5077
          %v5085 = vsub.f32 %v5049, %v5077
          %v5086 = vmul.f32 %v5078, %v5078
          %v5087 = vmul.f32 %v5079, %v5079
          %v5088 = vmul.f32 %v5080, %v5080
          %v5089 = vmul.f32 %v5081, %v5081
          %v5090 = vmul.f32 %v5082, %v5082
          %v5091 = vmul.f32 %v5083, %v5083
          %v5092 = vmul.f32 %v5084, %v5084
          %v5093 = vmul.f32 %v5085, %v5085
          %v5094 = vsel %vm2166, %v5086, 0.0
          %v5095 = vsel %vm2166, %v5087, 0.0
          %v5096 = vadd.f32 %v5094, %v5095
          %v5097 = vsel %vm2166, %v5088, 0.0
          %v5098 = vadd.f32 %v5096, %v5097
          %v5099 = vsel %vm2166, %v5089, 0.0
          %v5100 = vadd.f32 %v5098, %v5099
          %v5101 = vsel %vm2166, %v5090, 0.0
          %v5102 = vadd.f32 %v5100, %v5101
          %v5103 = vsel %vm2166, %v5091, 0.0
          %v5104 = vadd.f32 %v5102, %v5103
          %v5105 = vsel %vm2166, %v5092, 0.0
          %v5106 = vadd.f32 %v5104, %v5105
          %v5107 = vsel %vm2166, %v5093, 0.0
          %v5108 = vadd.f32 %v5106, %v5107
          %5109 = vadd.xlane.f32.xlu0 %v5108
          %v5110 = vpop.xlane.xlu0 %5109
          %v5111 = vrot.slane %v5110, 4
          %v5112 = vadd.f32 %v5110, %v5111
          %v5113 = vrot.slane %v5112, 2
          %v5114 = vadd.f32 %v5112, %v5113
          %v5115 = vrot.slane %v5114, 1
          %v5116 = vadd.f32 %v5114, %v5115
          %s5117 = vtos %v5116
          %v5118 = vrcp.pop 2048.0
          %s5119 = vtos %v5118
          %s5120 = smul.f32 %s5117, %s5119
          %v5121 = vstv %s5120
          %v5122 = vrsqrt.pop %v5121
          %v5123 = vmul.f32 %v5121, %v5122
          %vm5124 = vcmp.eq.f32.partialorder %v5121, inf
          %v5125 = vsel %vm5124, %v5121, %v5123
          %vm5126 = vcmp.eq.f32.partialorder %v5121, 0.0
          %v5127 = vand.u32 %v5121, 2147483648
          %v5128 = vsel %vm5126, %v5127, %v5125
          %s5129 = vtos %v5128
          %s5130 = sadd.f32 %s5129, 1e-05
          %v5131 = vstv %s5130
          %v5132 = vrcp.pop %v5131
          %s5133 = vtos %v5132
          %v5134 = vstv %s5133
          %v5135 = vmul.f32 %v5078, %v5134
          %v5136 = vmul.f32 %v5079, %v5134
          %v5137 = vmul.f32 %v5080, %v5134
          %v5138 = vmul.f32 %v5081, %v5134
          %v5139 = vmul.f32 %v5082, %v5134
          %v5140 = vmul.f32 %v5083, %v5134
          %v5141 = vmul.f32 %v5084, %v5134
          %v5142 = vmul.f32 %v5085, %v5134
          %v5143 = vld [vmem:[%s1593] sm:$0x1]
          %v5145 = vlaneseq
          %v5146 = vshrl.u32 %v5145, 7
          %v5147 = vsub.s32 0, %v5146
          %v5148 = vrot.slane %v5143, %v5147
          %v5150 = vmul.f32 %v5135, %v5148
          %v5151 = vmul.f32 %v5136, %v5148
          %v5152 = vmul.f32 %v5137, %v5148
          %v5153 = vmul.f32 %v5138, %v5148
          %v5154 = vmul.f32 %v5139, %v5148
          %v5155 = vmul.f32 %v5140, %v5148
          %v5156 = vmul.f32 %v5141, %v5148
          %v5157 = vmul.f32 %v5142, %v5148
          %v5158 = vld [vmem:[%s1596] sm:$0x1]
          %v5160 = vlaneseq
          %v5161 = vshrl.u32 %v5160, 7
          %v5162 = vsub.s32 0, %v5161
          %v5163 = vrot.slane %v5158, %v5162
          %v5165 = vadd.f32 %v5150, %v5163
          %v5166 = vadd.f32 %v5151, %v5163
          %v5167 = vadd.f32 %v5152, %v5163
          %v5168 = vadd.f32 %v5153, %v5163
          %v5169 = vadd.f32 %v5154, %v5163
          %v5170 = vadd.f32 %v5155, %v5163
          %v5171 = vadd.f32 %v5156, %v5163
          %v5172 = vadd.f32 %v5157, %v5163
          %v5173 = vld [vmem:[%s1601] sm:$0xff]
          %v5174 = vld [vmem:[%s1601 + $0x8] sm:$0xff]
          %v5175 = vld [vmem:[%s1601 + $0x10] sm:$0xff]
          %v5176 = vld [vmem:[%s1601 + $0x18] sm:$0xff]
          %v5177 = vld [vmem:[%s1604] sm:$0x1]
          %v5179 = vlaneseq
          %v5180 = vshrl.u32 %v5179, 7
          %v5181 = vsub.s32 0, %v5180
          %v5182 = vrot.slane %v5177, %v5181
          %v5185 = vsel %vm2166, %v5165, 0
          %v5188 = vsel %vm2166, %v5166, 0
          %v5191 = vsel %vm2166, %v5167, 0
          %v5194 = vsel %vm2166, %v5168, 0
          %v5197 = vsel %vm2166, %v5169, 0
          %v5200 = vsel %vm2166, %v5170, 0
          %v5203 = vsel %vm2166, %v5171, 0
          %v5206 = vsel %vm2166, %v5172, 0
          %5208 = vmatprep.subr.mxu0 0.0
          %5209 = vmatpush1.msra.mxu0 0.0
          %5210 = vmatprep.subr.mxu0 0.0
          %5211 = vmatpush1.msra.mxu0 0.0
          %5212 = vmatprep.subr.mxu0 0.0
          %5213 = vmatpush1.msra.mxu0 0.0
          %5214 = vmatprep.subr.mxu0 0.0
          %5215 = vmatpush1.msra.mxu0 0.0
          %5216 = vmatprep.subr.mxu0 0.0
          %5217 = vmatpush1.msra.mxu0 0.0
          %5218 = vmatprep.subr.mxu0 0.0
          %5219 = vmatpush1.msra.mxu0 0.0
          %5220 = vmatprep.subr.mxu0 0.0
          %5221 = vmatpush1.msra.mxu0 0.0
          %5222 = vmatprep.subr.mxu0 0.0
          %5223 = vmatpush1.msra.mxu0 0.0
          %5224 = vmatprep.subr.mxu0 0.0
          %5225 = vmatpush1.msra.mxu0 0.0
          %5226 = vmatprep.subr.mxu0 0.0
          %5227 = vmatpush1.msra.mxu0 0.0
          %5228 = vmatprep.subr.mxu0 0.0
          %5229 = vmatpush1.msra.mxu0 0.0
          %5230 = vmatprep.subr.mxu0 0.0
          %5231 = vmatpush1.msra.mxu0 0.0
          %5232 = vmatprep.subr.mxu0 0.0
          %5233 = vmatpush1.msra.mxu0 %v5176
          %5234 = vmatprep.subr.mxu0 0.0
          %5235 = vmatpush1.msra.mxu0 %v5175
          %5236 = vmatprep.subr.mxu0 0.0
          %5237 = vmatpush1.msra.mxu0 %v5174
          %5238 = vmatprep.subr.mxu0 0.0
          %5239 = vmatpush1.msra.mxu0 %v5173
          %5240 = vmatprep.subr.mxu0 0.0
          %5241 = vmatpush2.msra.mxu0 0.0
          %5242 = vmatprep.subr.mxu0 0.0
          %5243 = vmatpush2.msra.mxu0 0.0
          %5244 = vmatprep.subr.mxu0 0.0
          %5245 = vmatpush2.msra.mxu0 0.0
          %5246 = vmatprep.subr.mxu0 0.0
          %5247 = vmatpush2.msra.mxu0 0.0
          %5248 = vmatprep.subr.mxu0 0.0
          %5249 = vmatpush2.msra.mxu0 0.0
          %5250 = vmatprep.subr.mxu0 0.0
          %5251 = vmatpush2.msra.mxu0 0.0
          %5252 = vmatprep.subr.mxu0 0.0
          %5253 = vmatpush2.msra.mxu0 0.0
          %5254 = vmatprep.subr.mxu0 0.0
          %5255 = vmatpush2.msra.mxu0 0.0
          %5256 = vmatprep.subr.mxu0 0.0
          %5257 = vmatpush2.msra.mxu0 0.0
          %5258 = vmatprep.subr.mxu0 0.0
          %5259 = vmatpush2.msra.mxu0 0.0
          %5260 = vmatprep.subr.mxu0 0.0
          %5261 = vmatpush2.msra.mxu0 0.0
          %5262 = vmatprep.subr.mxu0 0.0
          %5263 = vmatpush2.msra.mxu0 0.0
          %5264 = vmatprep.subr.mxu0 0.0
          %5265 = vmatpush2.msra.mxu0 0.0
          %5266 = vmatprep.subr.mxu0 0.0
          %5267 = vmatpush2.msra.mxu0 0.0
          %5268 = vmatprep.subr.mxu0 0.0
          %5269 = vmatpush2.msra.mxu0 0.0
          %5270 = vmatprep.subr.mxu0 0.0
          %5271 = vmatpush2.msra.mxu0 0.0
          %5272 = vmatprep.mubr.f32.mxu0 0.0
          %5273 = vmatmul.mubr.f32.gmra.mxu0 %v5185
          %v5274 = vpop.f32.mrf.mxu0
          %v5275 = vadd.f32 %v5182, %v5274
          %v5276 = vpop.f32.mrf.mxu0
          %5277 = vmatprep.mubr.f32.mxu0 0.0
          %5278 = vmatmul.mubr.f32.gmra.mxu0 %v5188
          %v5279 = vpop.f32.mrf.mxu0
          %v5280 = vadd.f32 %v5182, %v5279
          %v5281 = vpop.f32.mrf.mxu0
          %5282 = vmatprep.mubr.f32.mxu0 0.0
          %5283 = vmatmul.mubr.f32.gmra.mxu0 %v5191
          %v5284 = vpop.f32.mrf.mxu0
          %v5285 = vadd.f32 %v5182, %v5284
          %v5286 = vpop.f32.mrf.mxu0
          %5287 = vmatprep.mubr.f32.mxu0 0.0
          %5288 = vmatmul.mubr.f32.gmra.mxu0 %v5194
          %v5289 = vpop.f32.mrf.mxu0
          %v5290 = vadd.f32 %v5182, %v5289
          %v5291 = vpop.f32.mrf.mxu0
          %5292 = vmatprep.mubr.f32.mxu0 0.0
          %5293 = vmatmul.mubr.f32.gmra.mxu0 %v5197
          %v5294 = vpop.f32.mrf.mxu0
          %v5295 = vadd.f32 %v5182, %v5294
          %v5296 = vpop.f32.mrf.mxu0
          %5297 = vmatprep.mubr.f32.mxu0 0.0
          %5298 = vmatmul.mubr.f32.gmra.mxu0 %v5200
          %v5299 = vpop.f32.mrf.mxu0
          %v5300 = vadd.f32 %v5182, %v5299
          %v5301 = vpop.f32.mrf.mxu0
          %5302 = vmatprep.mubr.f32.mxu0 0.0
          %5303 = vmatmul.mubr.f32.gmra.mxu0 %v5203
          %v5304 = vpop.f32.mrf.mxu0
          %v5305 = vadd.f32 %v5182, %v5304
          %v5306 = vpop.f32.mrf.mxu0
          %5307 = vmatprep.mubr.f32.mxu0 0.0
          %5308 = vmatmul.mubr.f32.gmra.mxu0 %v5206
          %v5309 = vpop.f32.mrf.mxu0
          %v5310 = vadd.f32 %v5182, %v5309
          %v5311 = vpop.f32.mrf.mxu0
          %5312 = vdwg.mxu0
          %5313 = vst.msk [vmem:[#allocation2] sm:$0xff] %vm2166, %v5275
          %5314 = vst.msk [vmem:[#allocation2 + $0x8] sm:$0xff] %vm2166, %v5280
          %5315 = vst.msk [vmem:[#allocation2 + $0x10] sm:$0xff] %vm2166, %v5285
          %5316 = vst.msk [vmem:[#allocation2 + $0x18] sm:$0xff] %vm2166, %v5290
          %5317 = vst.msk [vmem:[#allocation2 + $0x20] sm:$0xff] %vm2166, %v5295
          %5318 = vst.msk [vmem:[#allocation2 + $0x28] sm:$0xff] %vm2166, %v5300
          %5319 = vst.msk [vmem:[#allocation2 + $0x30] sm:$0xff] %vm2166, %v5305
          %5320 = vst.msk [vmem:[#allocation2 + $0x38] sm:$0xff] %vm2166, %v5310
          %p5321 = scmp.eq.s32.totalorder %s88, 1
          // Predicated region
          $region215: #{egnn_net_forward.1} parent=213 // pred_check
            %p5322 = pneg %p5321
          $region216: #{egnn_net_forward.1} parent=213 // pred_check_branch
            %5324 = sbr.rel (%p5322) target = $region218
          $region217: #{egnn_net_forward.1} parent=213 // pred_region
            %v5325 = vld [vmem:[%s19] sm:$0xff]
            %v5326 = vld [vmem:[%s19 + $0x8] sm:$0xff]
            %v5327 = vld [vmem:[%s19 + $0x10] sm:$0xff]
            %v5328 = vld [vmem:[%s19 + $0x18] sm:$0xff]
            %v5329 = vld [vmem:[%s19 + $0x20] sm:$0xff]
            %v5330 = vld [vmem:[%s19 + $0x28] sm:$0xff]
            %v5331 = vld [vmem:[%s19 + $0x30] sm:$0xff]
            %v5332 = vld [vmem:[%s19 + $0x38] sm:$0xff]
            %v5333 = vld [vmem:[%s61] sm:$0xff]
            %v5334 = vld [vmem:[%s63] sm:$0x1]
            %v5336 = vlaneseq
            %v5337 = vshrl.u32 %v5336, 7
            %v5338 = vsub.s32 0, %v5337
            %v5339 = vrot.slane %v5334, %v5338
            %vm5341 = vcmask 64512
            %v5343 = vsel %vm5341, %v5325, 0
            %v5346 = vsel %vm5341, %v5326, 0
            %v5349 = vsel %vm5341, %v5327, 0
            %v5352 = vsel %vm5341, %v5328, 0
            %v5355 = vsel %vm5341, %v5329, 0
            %v5358 = vsel %vm5341, %v5330, 0
            %v5361 = vsel %vm5341, %v5331, 0
            %v5364 = vsel %vm5341, %v5332, 0
            %5366 = vmatprep.subr.mxu0 0.0
            %5367 = vmatpush1.msra.mxu0 0.0
            %5368 = vmatprep.subr.mxu0 0.0
            %5369 = vmatpush1.msra.mxu0 0.0
            %5370 = vmatprep.subr.mxu0 0.0
            %5371 = vmatpush1.msra.mxu0 0.0
            %5372 = vmatprep.subr.mxu0 0.0
            %5373 = vmatpush1.msra.mxu0 0.0
            %5374 = vmatprep.subr.mxu0 0.0
            %5375 = vmatpush1.msra.mxu0 0.0
            %5376 = vmatprep.subr.mxu0 0.0
            %5377 = vmatpush1.msra.mxu0 0.0
            %5378 = vmatprep.subr.mxu0 0.0
            %5379 = vmatpush1.msra.mxu0 0.0
            %5380 = vmatprep.subr.mxu0 0.0
            %5381 = vmatpush1.msra.mxu0 0.0
            %5382 = vmatprep.subr.mxu0 0.0
            %5383 = vmatpush1.msra.mxu0 0.0
            %5384 = vmatprep.subr.mxu0 0.0
            %5385 = vmatpush1.msra.mxu0 0.0
            %5386 = vmatprep.subr.mxu0 0.0
            %5387 = vmatpush1.msra.mxu0 0.0
            %5388 = vmatprep.subr.mxu0 0.0
            %5389 = vmatpush1.msra.mxu0 0.0
            %5390 = vmatprep.subr.mxu0 0.0
            %5391 = vmatpush1.msra.mxu0 0.0
            %5392 = vmatprep.subr.mxu0 0.0
            %5393 = vmatpush1.msra.mxu0 0.0
            %5394 = vmatprep.subr.mxu0 0.0
            %5395 = vmatpush1.msra.mxu0 0.0
            %5396 = vmatprep.subr.mxu0 0.0
            %5397 = vmatpush1.msra.mxu0 %v5333
            %5398 = vmatprep.subr.mxu0 0.0
            %5399 = vmatpush2.msra.mxu0 0.0
            %5400 = vmatprep.subr.mxu0 0.0
            %5401 = vmatpush2.msra.mxu0 0.0
            %5402 = vmatprep.subr.mxu0 0.0
            %5403 = vmatpush2.msra.mxu0 0.0
            %5404 = vmatprep.subr.mxu0 0.0
            %5405 = vmatpush2.msra.mxu0 0.0
            %5406 = vmatprep.subr.mxu0 0.0
            %5407 = vmatpush2.msra.mxu0 0.0
            %5408 = vmatprep.subr.mxu0 0.0
            %5409 = vmatpush2.msra.mxu0 0.0
            %5410 = vmatprep.subr.mxu0 0.0
            %5411 = vmatpush2.msra.mxu0 0.0
            %5412 = vmatprep.subr.mxu0 0.0
            %5413 = vmatpush2.msra.mxu0 0.0
            %5414 = vmatprep.subr.mxu0 0.0
            %5415 = vmatpush2.msra.mxu0 0.0
            %5416 = vmatprep.subr.mxu0 0.0
            %5417 = vmatpush2.msra.mxu0 0.0
            %5418 = vmatprep.subr.mxu0 0.0
            %5419 = vmatpush2.msra.mxu0 0.0
            %5420 = vmatprep.subr.mxu0 0.0
            %5421 = vmatpush2.msra.mxu0 0.0
            %5422 = vmatprep.subr.mxu0 0.0
            %5423 = vmatpush2.msra.mxu0 0.0
            %5424 = vmatprep.subr.mxu0 0.0
            %5425 = vmatpush2.msra.mxu0 0.0
            %5426 = vmatprep.subr.mxu0 0.0
            %5427 = vmatpush2.msra.mxu0 0.0
            %5428 = vmatprep.subr.mxu0 0.0
            %5429 = vmatpush2.msra.mxu0 0.0
            %5430 = vmatprep.mubr.f32.mxu0 0.0
            %5431 = vmatmul.mubr.f32.gmra.mxu0 %v5343
            %v5432 = vpop.f32.mrf.mxu0
            %v5433 = vadd.f32 %v5339, %v5432
            %v5434 = vpop.f32.mrf.mxu0
            %5435 = vmatprep.mubr.f32.mxu0 0.0
            %5436 = vmatmul.mubr.f32.gmra.mxu0 %v5346
            %v5437 = vpop.f32.mrf.mxu0
            %v5438 = vadd.f32 %v5339, %v5437
            %v5439 = vpop.f32.mrf.mxu0
            %5440 = vmatprep.mubr.f32.mxu0 0.0
            %5441 = vmatmul.mubr.f32.gmra.mxu0 %v5349
            %v5442 = vpop.f32.mrf.mxu0
            %v5443 = vadd.f32 %v5339, %v5442
            %v5444 = vpop.f32.mrf.mxu0
            %5445 = vmatprep.mubr.f32.mxu0 0.0
            %5446 = vmatmul.mubr.f32.gmra.mxu0 %v5352
            %v5447 = vpop.f32.mrf.mxu0
            %v5448 = vadd.f32 %v5339, %v5447
            %v5449 = vpop.f32.mrf.mxu0
            %5450 = vmatprep.mubr.f32.mxu0 0.0
            %5451 = vmatmul.mubr.f32.gmra.mxu0 %v5355
            %v5452 = vpop.f32.mrf.mxu0
            %v5453 = vadd.f32 %v5339, %v5452
            %v5454 = vpop.f32.mrf.mxu0
            %5455 = vmatprep.mubr.f32.mxu0 0.0
            %5456 = vmatmul.mubr.f32.gmra.mxu0 %v5358
            %v5457 = vpop.f32.mrf.mxu0
            %v5458 = vadd.f32 %v5339, %v5457
            %v5459 = vpop.f32.mrf.mxu0
            %5460 = vmatprep.mubr.f32.mxu0 0.0
            %5461 = vmatmul.mubr.f32.gmra.mxu0 %v5361
            %v5462 = vpop.f32.mrf.mxu0
            %v5463 = vadd.f32 %v5339, %v5462
            %v5464 = vpop.f32.mrf.mxu0
            %5465 = vmatprep.mubr.f32.mxu0 0.0
            %5466 = vmatmul.mubr.f32.gmra.mxu0 %v5364
            %v5467 = vpop.f32.mrf.mxu0
            %v5468 = vadd.f32 %v5339, %v5467
            %v5469 = vpop.f32.mrf.mxu0
            %5470 = vdwg.mxu0
            %v5471 = vxor.u32 %v5433, 2147483648
            %v5472 = vxor.u32 %v5438, 2147483648
            %v5473 = vxor.u32 %v5443, 2147483648
            %v5474 = vxor.u32 %v5448, 2147483648
            %v5475 = vxor.u32 %v5453, 2147483648
            %v5476 = vxor.u32 %v5458, 2147483648
            %v5477 = vxor.u32 %v5463, 2147483648
            %v5478 = vxor.u32 %v5468, 2147483648
            %v5479 = vmul.f32 %v5471, 1.442695
            %v5480 = vpow.pop %v5479
            %v5481 = vmul.f32 %v5472, 1.442695
            %v5482 = vpow.pop %v5481
            %v5483 = vmul.f32 %v5473, 1.442695
            %v5484 = vpow.pop %v5483
            %v5485 = vmul.f32 %v5474, 1.442695
            %v5486 = vpow.pop %v5485
            %v5487 = vmul.f32 %v5475, 1.442695
            %v5488 = vpow.pop %v5487
            %v5489 = vmul.f32 %v5476, 1.442695
            %v5490 = vpow.pop %v5489
            %v5491 = vmul.f32 %v5477, 1.442695
            %v5492 = vpow.pop %v5491
            %v5493 = vmul.f32 %v5478, 1.442695
            %v5494 = vpow.pop %v5493
            %v5495 = vadd.f32 %v5480, 1.0
            %v5496 = vadd.f32 %v5482, 1.0
            %v5497 = vadd.f32 %v5484, 1.0
            %v5498 = vadd.f32 %v5486, 1.0
            %v5499 = vadd.f32 %v5488, 1.0
            %v5500 = vadd.f32 %v5490, 1.0
            %v5501 = vadd.f32 %v5492, 1.0
            %v5502 = vadd.f32 %v5494, 1.0
            %v5503 = vrcp.pop %v5495
            %v5504 = vmul.f32 1.0, %v5503
            %v5505 = vrcp.pop %v5496
            %v5506 = vmul.f32 1.0, %v5505
            %v5507 = vrcp.pop %v5497
            %v5508 = vmul.f32 1.0, %v5507
            %v5509 = vrcp.pop %v5498
            %v5510 = vmul.f32 1.0, %v5509
            %v5511 = vrcp.pop %v5499
            %v5512 = vmul.f32 1.0, %v5511
            %v5513 = vrcp.pop %v5500
            %v5514 = vmul.f32 1.0, %v5513
            %v5515 = vrcp.pop %v5501
            %v5516 = vmul.f32 1.0, %v5515
            %v5517 = vrcp.pop %v5502
            %v5518 = vmul.f32 1.0, %v5517
            %v5519 = vmul.f32 %v5433, %v5504
            %v5520 = vmul.f32 %v5438, %v5506
            %v5521 = vmul.f32 %v5443, %v5508
            %v5522 = vmul.f32 %v5448, %v5510
            %v5523 = vmul.f32 %v5453, %v5512
            %v5524 = vmul.f32 %v5458, %v5514
            %v5525 = vmul.f32 %v5463, %v5516
            %v5526 = vmul.f32 %v5468, %v5518
            %v5527 = vld [vmem:[%s65] sm:$0xff]
            %v5528 = vld [vmem:[%s65 + $0x8] sm:$0xff]
            %v5529 = vld [vmem:[%s65 + $0x10] sm:$0xff]
            %v5530 = vld [vmem:[%s65 + $0x18] sm:$0xff]
            %v5531 = vld [vmem:[%s67] sm:$0x1]
            %v5533 = vlaneseq
            %v5534 = vshrl.u32 %v5533, 7
            %v5535 = vsub.s32 0, %v5534
            %v5536 = vrot.slane %v5531, %v5535
            %v5539 = vsel %vm2166, %v5519, 0
            %v5542 = vsel %vm2166, %v5520, 0
            %v5545 = vsel %vm2166, %v5521, 0
            %v5548 = vsel %vm2166, %v5522, 0
            %v5551 = vsel %vm2166, %v5523, 0
            %v5554 = vsel %vm2166, %v5524, 0
            %v5557 = vsel %vm2166, %v5525, 0
            %v5560 = vsel %vm2166, %v5526, 0
            %5562 = vmatprep.subr.mxu0 0.0
            %5563 = vmatpush1.msra.mxu0 0.0
            %5564 = vmatprep.subr.mxu0 0.0
            %5565 = vmatpush1.msra.mxu0 0.0
            %5566 = vmatprep.subr.mxu0 0.0
            %5567 = vmatpush1.msra.mxu0 0.0
            %5568 = vmatprep.subr.mxu0 0.0
            %5569 = vmatpush1.msra.mxu0 0.0
            %5570 = vmatprep.subr.mxu0 0.0
            %5571 = vmatpush1.msra.mxu0 0.0
            %5572 = vmatprep.subr.mxu0 0.0
            %5573 = vmatpush1.msra.mxu0 0.0
            %5574 = vmatprep.subr.mxu0 0.0
            %5575 = vmatpush1.msra.mxu0 0.0
            %5576 = vmatprep.subr.mxu0 0.0
            %5577 = vmatpush1.msra.mxu0 0.0
            %5578 = vmatprep.subr.mxu0 0.0
            %5579 = vmatpush1.msra.mxu0 0.0
            %5580 = vmatprep.subr.mxu0 0.0
            %5581 = vmatpush1.msra.mxu0 0.0
            %5582 = vmatprep.subr.mxu0 0.0
            %5583 = vmatpush1.msra.mxu0 0.0
            %5584 = vmatprep.subr.mxu0 0.0
            %5585 = vmatpush1.msra.mxu0 0.0
            %5586 = vmatprep.subr.mxu0 0.0
            %5587 = vmatpush1.msra.mxu0 %v5530
            %5588 = vmatprep.subr.mxu0 0.0
            %5589 = vmatpush1.msra.mxu0 %v5529
            %5590 = vmatprep.subr.mxu0 0.0
            %5591 = vmatpush1.msra.mxu0 %v5528
            %5592 = vmatprep.subr.mxu0 0.0
            %5593 = vmatpush1.msra.mxu0 %v5527
            %5594 = vmatprep.subr.mxu0 0.0
            %5595 = vmatpush2.msra.mxu0 0.0
            %5596 = vmatprep.subr.mxu0 0.0
            %5597 = vmatpush2.msra.mxu0 0.0
            %5598 = vmatprep.subr.mxu0 0.0
            %5599 = vmatpush2.msra.mxu0 0.0
            %5600 = vmatprep.subr.mxu0 0.0
            %5601 = vmatpush2.msra.mxu0 0.0
            %5602 = vmatprep.subr.mxu0 0.0
            %5603 = vmatpush2.msra.mxu0 0.0
            %5604 = vmatprep.subr.mxu0 0.0
            %5605 = vmatpush2.msra.mxu0 0.0
            %5606 = vmatprep.subr.mxu0 0.0
            %5607 = vmatpush2.msra.mxu0 0.0
            %5608 = vmatprep.subr.mxu0 0.0
            %5609 = vmatpush2.msra.mxu0 0.0
            %5610 = vmatprep.subr.mxu0 0.0
            %5611 = vmatpush2.msra.mxu0 0.0
            %5612 = vmatprep.subr.mxu0 0.0
            %5613 = vmatpush2.msra.mxu0 0.0
            %5614 = vmatprep.subr.mxu0 0.0
            %5615 = vmatpush2.msra.mxu0 0.0
            %5616 = vmatprep.subr.mxu0 0.0
            %5617 = vmatpush2.msra.mxu0 0.0
            %5618 = vmatprep.subr.mxu0 0.0
            %5619 = vmatpush2.msra.mxu0 0.0
            %5620 = vmatprep.subr.mxu0 0.0
            %5621 = vmatpush2.msra.mxu0 0.0
            %5622 = vmatprep.subr.mxu0 0.0
            %5623 = vmatpush2.msra.mxu0 0.0
            %5624 = vmatprep.subr.mxu0 0.0
            %5625 = vmatpush2.msra.mxu0 0.0
            %5626 = vmatprep.mubr.f32.mxu0 0.0
            %5627 = vmatmul.mubr.f32.gmra.mxu0 %v5539
            %v5628 = vpop.f32.mrf.mxu0
            %v5629 = vadd.f32 %v5536, %v5628
            %v5630 = vpop.f32.mrf.mxu0
            %5631 = vmatprep.mubr.f32.mxu0 0.0
            %5632 = vmatmul.mubr.f32.gmra.mxu0 %v5542
            %v5633 = vpop.f32.mrf.mxu0
            %v5634 = vadd.f32 %v5536, %v5633
            %v5635 = vpop.f32.mrf.mxu0
            %5636 = vmatprep.mubr.f32.mxu0 0.0
            %5637 = vmatmul.mubr.f32.gmra.mxu0 %v5545
            %v5638 = vpop.f32.mrf.mxu0
            %v5639 = vadd.f32 %v5536, %v5638
            %v5640 = vpop.f32.mrf.mxu0
            %5641 = vmatprep.mubr.f32.mxu0 0.0
            %5642 = vmatmul.mubr.f32.gmra.mxu0 %v5548
            %v5643 = vpop.f32.mrf.mxu0
            %v5644 = vadd.f32 %v5536, %v5643
            %v5645 = vpop.f32.mrf.mxu0
            %5646 = vmatprep.mubr.f32.mxu0 0.0
            %5647 = vmatmul.mubr.f32.gmra.mxu0 %v5551
            %v5648 = vpop.f32.mrf.mxu0
            %v5649 = vadd.f32 %v5536, %v5648
            %v5650 = vpop.f32.mrf.mxu0
            %5651 = vmatprep.mubr.f32.mxu0 0.0
            %5652 = vmatmul.mubr.f32.gmra.mxu0 %v5554
            %v5653 = vpop.f32.mrf.mxu0
            %v5654 = vadd.f32 %v5536, %v5653
            %v5655 = vpop.f32.mrf.mxu0
            %5656 = vmatprep.mubr.f32.mxu0 0.0
            %5657 = vmatmul.mubr.f32.gmra.mxu0 %v5557
            %v5658 = vpop.f32.mrf.mxu0
            %v5659 = vadd.f32 %v5536, %v5658
            %v5660 = vpop.f32.mrf.mxu0
            %5661 = vmatprep.mubr.f32.mxu0 0.0
            %5662 = vmatmul.mubr.f32.gmra.mxu0 %v5560
            %v5663 = vpop.f32.mrf.mxu0
            %v5664 = vadd.f32 %v5536, %v5663
            %v5665 = vpop.f32.mrf.mxu0
            %5666 = vdwg.mxu0
            %v5667 = vadd.f32 %v5275, %v5629
            %v5668 = vadd.f32 %v5280, %v5634
            %v5669 = vadd.f32 %v5285, %v5639
            %v5670 = vadd.f32 %v5290, %v5644
            %v5671 = vadd.f32 %v5295, %v5649
            %v5672 = vadd.f32 %v5300, %v5654
            %v5673 = vadd.f32 %v5305, %v5659
            %v5674 = vadd.f32 %v5310, %v5664
            %v5675 = vld [vmem:[%s69] sm:$0xff]
            %v5676 = vld [vmem:[%s69 + $0x8] sm:$0xff]
            %v5677 = vld [vmem:[%s69 + $0x10] sm:$0xff]
            %v5678 = vld [vmem:[%s69 + $0x18] sm:$0xff]
            %v5679 = vld [vmem:[%s71] sm:$0x1]
            %v5681 = vlaneseq
            %v5682 = vshrl.u32 %v5681, 7
            %v5683 = vsub.s32 0, %v5682
            %v5684 = vrot.slane %v5679, %v5683
            %v5687 = vsel %vm2166, %v5667, 0
            %v5690 = vsel %vm2166, %v5668, 0
            %v5693 = vsel %vm2166, %v5669, 0
            %v5696 = vsel %vm2166, %v5670, 0
            %v5699 = vsel %vm2166, %v5671, 0
            %v5702 = vsel %vm2166, %v5672, 0
            %v5705 = vsel %vm2166, %v5673, 0
            %v5708 = vsel %vm2166, %v5674, 0
            %5710 = vmatprep.subr.mxu0 0.0
            %5711 = vmatpush1.msra.mxu0 0.0
            %5712 = vmatprep.subr.mxu0 0.0
            %5713 = vmatpush1.msra.mxu0 0.0
            %5714 = vmatprep.subr.mxu0 0.0
            %5715 = vmatpush1.msra.mxu0 0.0
            %5716 = vmatprep.subr.mxu0 0.0
            %5717 = vmatpush1.msra.mxu0 0.0
            %5718 = vmatprep.subr.mxu0 0.0
            %5719 = vmatpush1.msra.mxu0 0.0
            %5720 = vmatprep.subr.mxu0 0.0
            %5721 = vmatpush1.msra.mxu0 0.0
            %5722 = vmatprep.subr.mxu0 0.0
            %5723 = vmatpush1.msra.mxu0 0.0
            %5724 = vmatprep.subr.mxu0 0.0
            %5725 = vmatpush1.msra.mxu0 0.0
            %5726 = vmatprep.subr.mxu0 0.0
            %5727 = vmatpush1.msra.mxu0 0.0
            %5728 = vmatprep.subr.mxu0 0.0
            %5729 = vmatpush1.msra.mxu0 0.0
            %5730 = vmatprep.subr.mxu0 0.0
            %5731 = vmatpush1.msra.mxu0 0.0
            %5732 = vmatprep.subr.mxu0 0.0
            %5733 = vmatpush1.msra.mxu0 0.0
            %5734 = vmatprep.subr.mxu0 0.0
            %5735 = vmatpush1.msra.mxu0 %v5678
            %5736 = vmatprep.subr.mxu0 0.0
            %5737 = vmatpush1.msra.mxu0 %v5677
            %5738 = vmatprep.subr.mxu0 0.0
            %5739 = vmatpush1.msra.mxu0 %v5676
            %5740 = vmatprep.subr.mxu0 0.0
            %5741 = vmatpush1.msra.mxu0 %v5675
            %5742 = vmatprep.subr.mxu0 0.0
            %5743 = vmatpush2.msra.mxu0 0.0
            %5744 = vmatprep.subr.mxu0 0.0
            %5745 = vmatpush2.msra.mxu0 0.0
            %5746 = vmatprep.subr.mxu0 0.0
            %5747 = vmatpush2.msra.mxu0 0.0
            %5748 = vmatprep.subr.mxu0 0.0
            %5749 = vmatpush2.msra.mxu0 0.0
            %5750 = vmatprep.subr.mxu0 0.0
            %5751 = vmatpush2.msra.mxu0 0.0
            %5752 = vmatprep.subr.mxu0 0.0
            %5753 = vmatpush2.msra.mxu0 0.0
            %5754 = vmatprep.subr.mxu0 0.0
            %5755 = vmatpush2.msra.mxu0 0.0
            %5756 = vmatprep.subr.mxu0 0.0
            %5757 = vmatpush2.msra.mxu0 0.0
            %5758 = vmatprep.subr.mxu0 0.0
            %5759 = vmatpush2.msra.mxu0 0.0
            %5760 = vmatprep.subr.mxu0 0.0
            %5761 = vmatpush2.msra.mxu0 0.0
            %5762 = vmatprep.subr.mxu0 0.0
            %5763 = vmatpush2.msra.mxu0 0.0
            %5764 = vmatprep.subr.mxu0 0.0
            %5765 = vmatpush2.msra.mxu0 0.0
            %5766 = vmatprep.subr.mxu0 0.0
            %5767 = vmatpush2.msra.mxu0 0.0
            %5768 = vmatprep.subr.mxu0 0.0
            %5769 = vmatpush2.msra.mxu0 0.0
            %5770 = vmatprep.subr.mxu0 0.0
            %5771 = vmatpush2.msra.mxu0 0.0
            %5772 = vmatprep.subr.mxu0 0.0
            %5773 = vmatpush2.msra.mxu0 0.0
            %5774 = vmatprep.mubr.f32.mxu0 0.0
            %5775 = vmatmul.mubr.f32.gmra.mxu0 %v5687
            %v5776 = vpop.f32.mrf.mxu0
            %v5777 = vadd.f32 %v5684, %v5776
            %v5778 = vpop.f32.mrf.mxu0
            %5779 = vmatprep.mubr.f32.mxu0 0.0
            %5780 = vmatmul.mubr.f32.gmra.mxu0 %v5690
            %v5781 = vpop.f32.mrf.mxu0
            %v5782 = vadd.f32 %v5684, %v5781
            %v5783 = vpop.f32.mrf.mxu0
            %5784 = vmatprep.mubr.f32.mxu0 0.0
            %5785 = vmatmul.mubr.f32.gmra.mxu0 %v5693
            %v5786 = vpop.f32.mrf.mxu0
            %v5787 = vadd.f32 %v5684, %v5786
            %v5788 = vpop.f32.mrf.mxu0
            %5789 = vmatprep.mubr.f32.mxu0 0.0
            %5790 = vmatmul.mubr.f32.gmra.mxu0 %v5696
            %v5791 = vpop.f32.mrf.mxu0
            %v5792 = vadd.f32 %v5684, %v5791
            %v5793 = vpop.f32.mrf.mxu0
            %5794 = vmatprep.mubr.f32.mxu0 0.0
            %5795 = vmatmul.mubr.f32.gmra.mxu0 %v5699
            %v5796 = vpop.f32.mrf.mxu0
            %v5797 = vadd.f32 %v5684, %v5796
            %v5798 = vpop.f32.mrf.mxu0
            %5799 = vmatprep.mubr.f32.mxu0 0.0
            %5800 = vmatmul.mubr.f32.gmra.mxu0 %v5702
            %v5801 = vpop.f32.mrf.mxu0
            %v5802 = vadd.f32 %v5684, %v5801
            %v5803 = vpop.f32.mrf.mxu0
            %5804 = vmatprep.mubr.f32.mxu0 0.0
            %5805 = vmatmul.mubr.f32.gmra.mxu0 %v5705
            %v5806 = vpop.f32.mrf.mxu0
            %v5807 = vadd.f32 %v5684, %v5806
            %v5808 = vpop.f32.mrf.mxu0
            %5809 = vmatprep.mubr.f32.mxu0 0.0
            %5810 = vmatmul.mubr.f32.gmra.mxu0 %v5708
            %v5811 = vpop.f32.mrf.mxu0
            %v5812 = vadd.f32 %v5684, %v5811
            %v5813 = vpop.f32.mrf.mxu0
            %5814 = vdwg.mxu0
            %vm5815 = vcmask 162816
            %5816 = vst.msk [vmem:[%s73] sm:$0xff] %vm5815, %v5777
            %5817 = vst.msk [vmem:[%s73 + $0x8] sm:$0xff] %vm5815, %v5782
            %5818 = vst.msk [vmem:[%s73 + $0x10] sm:$0xff] %vm5815, %v5787
            %5819 = vst.msk [vmem:[%s73 + $0x18] sm:$0xff] %vm5815, %v5792
            %5820 = vst.msk [vmem:[%s73 + $0x20] sm:$0xff] %vm5815, %v5797
            %5821 = vst.msk [vmem:[%s73 + $0x28] sm:$0xff] %vm5815, %v5802
            %5822 = vst.msk [vmem:[%s73 + $0x30] sm:$0xff] %vm5815, %v5807
            %5823 = vst.msk [vmem:[%s73 + $0x38] sm:$0xff] %vm5815, %v5812
          $region218: #{egnn_net_forward.1} parent=213 // pred_fallthru
            _
        $region214: #{egnn_net_forward.1} parent=197 // pred_fallthru
          _
        // Predicated region
        $region219: #{egnn_net_forward.1} parent=197 // pred_check
          %p5824 = pneg %p995
        $region220: #{egnn_net_forward.1} parent=197 // pred_check_branch
          %5826 = sbr.rel (%p5824) target = $region222
        $region221: #{egnn_net_forward.1} parent=197 // pred_region
          _
        $region222: #{egnn_net_forward.1} parent=197 // pred_fallthru
          _
        // Predicated region
        $region223: #{egnn_net_forward.1} parent=197 // pred_check
          %p5827 = pneg %p995
        $region224: #{egnn_net_forward.1} parent=197 // pred_check_branch
          %5829 = sbr.rel (%p5827) target = $region226
        $region225: #{egnn_net_forward.1} parent=197 // pred_region
          _
        $region226: #{egnn_net_forward.1} parent=197 // pred_fallthru
          _
      $region198: #{egnn_net_forward.1} parent=5 // pred_fallthru
        _
      %p5830 = scmp.le.s32.totalorder 2, %s79
      // Predicated region
      $region227: #{egnn_net_forward.1} parent=5 // pred_check
        %p5831 = pneg %p5830
      $region228: #{egnn_net_forward.1} parent=5 // pred_check_branch
        %5833 = sbr.rel (%p5831) target = $region230
      $region229: #{egnn_net_forward.1} parent=5 // pred_region
        %s5834 = ssub.s32 %s79, 2
      $region230: #{egnn_net_forward.1} parent=5 // pred_fallthru
        _
    $region6: #{egnn_net_forward.1} parent=1 // loop_footer
      %s83 = sadd.s32 1, %s79
    $region7: #{egnn_net_forward.1} parent=1 // loop_footer_branch
      %78 = sbr.rel target = $region3
    $region8: #{egnn_net_forward.1} parent=1 // loop_exit
      _

</llo_original>
